<compile_context>
chip_gen: v7x
topology: tpu7x:2x2x1
jax: 0.10.0
libtpu: 0.0.40
codegen_flags: <defaults>
</compile_context>

<pallas_src>
import functools

import jax
import jax.numpy as jnp
from jax.experimental import pallas as pl
from jax.experimental.pallas import tpu as pltpu

INT32_MIN = jnp.iinfo(jnp.int32).min


def _lane_tile(L, cap=2048):
    """Largest multiple of 128 <= cap that divides L (L must be a multiple of 128)."""
    t = min(cap, L)
    t -= t % 128
    while t > 128 and L % t:
        t -= 128
    return t


def _sim_tiles(L):
    """Query/key tiles for the fused similarity+top-k kernel (<=512 per review)."""
    tq = _lane_tile(L, cap=512)
    tk = _lane_tile(L, cap=512)
    if L // tk < 2 and tk > 128:
        tk //= 2  # keep >=2 key steps so the streaming accumulator path is exercised
    return tq, tk


# -----------------------------------------------------------------------------
# Kernel 1: conv-as-matmul, lane-dense output (Cout, L-tile)
# -----------------------------------------------------------------------------
def _conv_mm_kernel(w_ref, b_ref, x_ref, o_ref, *, relu):
    acc = jnp.dot(w_ref[...], x_ref[...], preferred_element_type=jnp.float32)
    acc = acc + b_ref[...]
    if relu:
        acc = jnp.maximum(acc, 0.0)
    o_ref[...] = acc


def conv_mm(w, b, x, relu=False):
    """w: (Cout, K), b: (Cout,), x: (K, L)  ->  (Cout, L)."""
    Cout, K = w.shape
    L = x.shape[1]
    tl = _lane_tile(L)
    return pl.pallas_call(
        functools.partial(_conv_mm_kernel, relu=relu),
        out_shape=jax.ShapeDtypeStruct((Cout, L), jnp.float32),
        grid=(L // tl,),
        in_specs=[
            pl.BlockSpec((Cout, K), lambda i: (0, 0)),
            pl.BlockSpec((Cout, 1), lambda i: (0, 0)),
            pl.BlockSpec((K, tl), lambda i: (0, i)),
        ],
        out_specs=pl.BlockSpec((Cout, tl), lambda i: (0, i)),
        compiler_params=pltpu.CompilerParams(dimension_semantics=("parallel",)),
    )(w, b.reshape(Cout, 1), x)


# -----------------------------------------------------------------------------
# Kernel 2: per-patch (per-row) L2 normalization, patch-major, f32 -> bf16
# -----------------------------------------------------------------------------
def _normalize_kernel(u_ref, n_ref):
    u = u_ref[...]                                   # (tr, K) f32
    ss = jnp.sum(u * u, axis=1, keepdims=True)
    inv = jax.lax.rsqrt(jnp.maximum(ss, 1e-24))      # == 1 / max(||u||, 1e-12)
    n_ref[...] = (u * inv).astype(n_ref.dtype)


def normalize_patches_pm(u):
    """u: (L, K) f32 patch-major -> row-normalized bf16 (L, K) for the MXU."""
    L, K = u.shape
    tr = _lane_tile(L)
    return pl.pallas_call(
        _normalize_kernel,
        out_shape=jax.ShapeDtypeStruct((L, K), jnp.bfloat16),
        grid=(L // tr,),
        in_specs=[pl.BlockSpec((tr, K), lambda i: (i, 0))],
        out_specs=pl.BlockSpec((tr, K), lambda i: (i, 0)),
        compiler_params=pltpu.CompilerParams(dimension_semantics=("parallel",)),
    )(u)


# -----------------------------------------------------------------------------
# Kernel 3: fused cosine-similarity + streaming top-k (packed value/index keys)
# -----------------------------------------------------------------------------
def _sim_topk_kernel(k_ref, q_ref, maxs_ref, idxs_ref, acc_ref, *, topk, tk, idx_mask):
    kj = pl.program_id(1)
    nk = pl.num_programs(1)

    @pl.when(kj == 0)
    def _():
        acc_ref[...] = jnp.full(acc_ref.shape, INT32_MIN, jnp.int32)

    # (TK, TQ) similarity block: bf16 operands, f32 MXU accumulation, contraction over
    # the patch dim (minor dim of both operands => native A @ B^T, no transposes).
    s = jax.lax.dot_general(k_ref[...], q_ref[...], (((1,), (1,)), ((), ())),
                            preferred_element_type=jnp.float32)

    # Pack (similarity, key index) into one sortable int32 key:
    #   high bits: monotonic image of the f32 bits (low idx_bits truncated)
    #   low bits : idx_mask - key_index  => equal values tie-break to smallest index.
    bits = pltpu.bitcast(s, jnp.int32)
    mono = jnp.where(bits < 0, bits ^ jnp.int32(0x7FFFFFFF), bits)
    ids = jax.lax.broadcasted_iota(jnp.int32, s.shape, 0) + kj * tk
    packed = (mono & jnp.int32(~idx_mask)) | (jnp.int32(idx_mask) - ids)

    # Streaming top-k merge: accumulator is 8-row aligned so this concat needs no
    # relayout; each rank is a single max-reduce, winner retired by exact key match.
    all_p = jnp.concatenate([acc_ref[...], packed], axis=0)        # (8 + TK, TQ)
    rows = []
    for r in range(topk):
        m = jnp.max(all_p, axis=0, keepdims=True)                  # (1, TQ)
        rows.append(m)
        if r < topk - 1:
            all_p = jnp.where(all_p == m, jnp.int32(INT32_MIN), all_p)
    acc_ref[pl.ds(0, topk), :] = jnp.concatenate(rows, axis=0)     # rows topk..7 stay sentinel

    @pl.when(kj == nk - 1)
    def _():
        top = acc_ref[pl.ds(0, topk), :]
        idxs_ref[...] = jnp.int32(idx_mask) - (top & jnp.int32(idx_mask))
        vkey = top & jnp.int32(~idx_mask)
        vbits = jnp.where(vkey < 0, vkey ^ jnp.int32(0x7FFFFFFF), vkey)
        maxs_ref[...] = pltpu.bitcast(vbits, jnp.float32)


def sim_topk(n_pm, topk):
    """n_pm: (L, K) bf16 row-normalized patches (used as both keys and queries).
    Returns (topk, L) similarity values (descending; truncated to 31-idx_bits value
    bits) and (topk, L) int32 key indices, i.e. torch.topk(R_qk, topk, dim=1) for
    batch 1 -- without ever building the (L, L) similarity matrix."""
    L, K = n_pm.shape
    tq, tk = _sim_tiles(L)
    idx_bits = max((L - 1).bit_length(), 1)
    idx_mask = (1 << idx_bits) - 1
    flops = 2 * L * L * K
    bytes_accessed = (L // tq) * L * K * 2 + L * K * 2 + topk * L * 8
    return pl.pallas_call(
        functools.partial(_sim_topk_kernel, topk=topk, tk=tk, idx_mask=idx_mask),
        out_shape=(jax.ShapeDtypeStruct((topk, L), jnp.float32),
                   jax.ShapeDtypeStruct((topk, L), jnp.int32)),
        grid=(L // tq, L // tk),
        in_specs=[pl.BlockSpec((tk, K), lambda qi, kj: (kj, 0)),    # keys: re-streamed
                  pl.BlockSpec((tq, K), lambda qi, kj: (qi, 0))],   # queries: resident
        out_specs=(pl.BlockSpec((topk, tq), lambda qi, kj: (0, qi)),
                   pl.BlockSpec((topk, tq), lambda qi, kj: (0, qi))),
        scratch_shapes=[pltpu.VMEM((8, tq), jnp.int32)],            # 8-row aligned acc
        compiler_params=pltpu.CompilerParams(
            dimension_semantics=("parallel", "arbitrary")),
        cost_estimate=pl.CostEstimate(flops=flops, transcendentals=0,
                                      bytes_accessed=bytes_accessed),
    )(n_pm, n_pm)


# -----------------------------------------------------------------------------
# Kernel 4: fused texture_conv1 (+ per-group score scaling) + texture_conv2
#   texture = sum_g (Wt1_g @ T_g) * score_g + bt1 ;  y = Wf@feat + Wx@x + Wt@texture + b2
# -----------------------------------------------------------------------------
def _texture_final_kernel(*refs, C, G):
    tex_refs = refs[:G]
    (maxs_ref, feat_ref, x_ref, wt1_ref, bt1_ref,
     wf_ref, wx_ref, wtx_ref, b2_ref, y_ref) = refs[G:]
    wt1 = wt1_ref[...]
    maxs = maxs_ref[...]
    texture = None
    for g in range(G):
        part = jnp.dot(wt1[:, g * C:(g + 1) * C], tex_refs[g][...],
                       preferred_element_type=jnp.float32)
        part = part * maxs[g + 1:g + 2, :]           # fused per-pixel score scaling
        texture = part if texture is None else texture + part
    texture = texture + bt1_ref[...]
    y = jnp.dot(wf_ref[...], feat_ref[...], preferred_element_type=jnp.float32)
    y = y + jnp.dot(wx_ref[...], x_ref[...], preferred_element_type=jnp.float32)
    y = y + jnp.dot(wtx_ref[...], texture, preferred_element_type=jnp.float32)
    y_ref[...] = y + b2_ref[...]


def texture_final(tex_list, maxs, feat, x_flat, wt1, bt1, wt2, bt2):
    C, L = feat.shape
    G = len(tex_list)                                # topk - 1
    topk = maxs.shape[0]
    wf, wx, wtx = wt2[:, :C], wt2[:, C:2 * C], wt2[:, 2 * C:3 * C]
    tl = _lane_tile(L)
    idx_l = lambda i: (0, i)
    idx_0 = lambda i: (0, 0)
    in_specs = ([pl.BlockSpec((C, tl), idx_l) for _ in range(G)] +
                [pl.BlockSpec((topk, tl), idx_l),
                 pl.BlockSpec((C, tl), idx_l),
                 pl.BlockSpec((C, tl), idx_l),
                 pl.BlockSpec((C, C * G), idx_0),
                 pl.BlockSpec((C, 1), idx_0),
                 pl.BlockSpec((C, C), idx_0),
                 pl.BlockSpec((C, C), idx_0),
                 pl.BlockSpec((C, C), idx_0),
                 pl.BlockSpec((C, 1), idx_0)])
    return pl.pallas_call(
        functools.partial(_texture_final_kernel, C=C, G=G),
        out_shape=jax.ShapeDtypeStruct((C, L), jnp.float32),
        grid=(L // tl,),
        in_specs=in_specs,
        out_specs=pl.BlockSpec((C, tl), idx_l),
        compiler_params=pltpu.CompilerParams(dimension_semantics=("parallel",)),
    )(*tex_list, maxs, feat, x_flat, wt1, bt1.reshape(C, 1),
      wf, wx, wtx, bt2.reshape(C, 1))


# -----------------------------------------------------------------------------
# Plain-JAX glue: unfold (im2col) and fold (col2im scatter-add)
# -----------------------------------------------------------------------------
def unfold3x3_cm(x_pad):
    """x_pad: (C, H+2, W+2) -> (C*9, H*W), torch F.unfold ordering (c, ky, kx)."""
    C, Hp, Wp = x_pad.shape
    H, W = Hp - 2, Wp - 2
    planes = [x_pad[:, dy:dy + H, dx:dx + W] for dy in range(3) for dx in range(3)]
    return jnp.stack(planes, axis=1).reshape(C * 9, H * W)


def unfold3x3_pm(x_pad_hwc):
    """x_pad_hwc: (H+2, W+2, C) -> patch-major (H*W, 9*C), K order (ky, kx, c)."""
    Hp, Wp, C = x_pad_hwc.shape
    H, W = Hp - 2, Wp - 2
    planes = [x_pad_hwc[dy:dy + H, dx:dx + W, :] for dy in range(3) for dx in range(3)]
    return jnp.stack(planes, axis=2).reshape(H * W, 9 * C)


def fold3x3_pm(g, C, H, W):
    """Inverse of unfold3x3_pm: g (H*W, 9*C) with (ky, kx, c) order -> overlapping
    scatter-add, torch F.fold(output=(H,W), kernel=3, padding=1), returned as (C, H*W)."""
    t = g.reshape(H, W, 3, 3, C)
    out = jnp.zeros((H, W, C), g.dtype)
    for dy in range(3):
        for dx in range(3):
            oy, ox = dy - 1, dx - 1
            ly, lx = H - abs(oy), W - abs(ox)
            sy, sx = max(0, -oy), max(0, -ox)
            ty, tx = max(0, oy), max(0, ox)
            out = out.at[ty:ty + ly, tx:tx + lx, :].add(
                t[sy:sy + ly, sx:sx + lx, dy, dx, :])
    return out.transpose(2, 0, 1).reshape(C, H * W)


# -----------------------------------------------------------------------------
# Full forward pass (batch size 1, matching the module's B == 1 restriction)
# -----------------------------------------------------------------------------
def transformer_v5(x, params, topk=5):
    B, C, H, W = x.shape
    assert B == 1, "TransformerV5 only supports batch_size == 1"
    L = H * W
    # TODO(synk): pad the pixel axis (masking padded keys to -inf in the top-k)
    # to support H*W that is not a multiple of 128.
    assert L % 128 == 0, "H*W must be a multiple of 128 for the lane tiling"
    x0 = x[0]

    # --- feature branch: Conv3x3 -> ReLU -> Conv3x3 (zero padding, via im2col) ---
    # TODO(synk): express the two 3x3 convs as 9 shifted partial matmuls (halo'd
    # blocks) to avoid the (C*9, L) im2col round-trips through HBM.
    xz = jnp.pad(x0, ((0, 0), (1, 1), (1, 1)))
    f1 = conv_mm(params["w1"], params["b1"], unfold3x3_cm(xz), relu=True)    # (C, L)
    f1z = jnp.pad(f1.reshape(C, H, W), ((0, 0), (1, 1), (1, 1)))
    feat = conv_mm(params["w2"], params["b2"], unfold3x3_cm(f1z), relu=False)

    # --- attention branch: reflection pad, patch-major unfold, fused sim + top-k ---
    x_hwc = jnp.transpose(x0, (1, 2, 0))
    xr = jnp.pad(x_hwc, ((1, 1), (1, 1), (0, 0)), mode="reflect")  # ReflectionPad2d(1)
    x_unfold_pm = unfold3x3_pm(xr)                     # (L, 9*C) f32, patch-major
    n_pm = normalize_patches_pm(x_unfold_pm)           # (L, 9*C) bf16 (keys == queries)
    R_maxs, R_idxs = sim_topk(n_pm, topk)              # (topk, L) each

    # --- texture transfer: major-axis row gather of best-match patches, fold, /9
    #     (score scaling is fused into the final kernel) ---
    # TODO(synk): replace the XLA row gather with a Pallas scalar-prefetch DMA gather
    # (and fuse the fold) for very large L.
    tex_list = []
    for i in range(1, topk):
        g = jnp.take(x_unfold_pm, R_idxs[i], axis=0)   # (L, 9*C) row gather
        tex_list.append(fold3x3_pm(g, C, H, W) / 9.0)  # (C, L)

    # --- fused texture_conv1 (+score) + texture_conv2 over [feature, x, texture] ---
    y = texture_final(tex_list, R_maxs, feat, x0.reshape(C, L),
                      params["wt1"], params["bt1"],
                      params["wt2"], params["bt2"])    # (C, L)
    return y.reshape(1, C, H, W)


# -----------------------------------------------------------------------------
if __name__ == "__main__":
    B, C, H, W = 1, 4, 16, 16
    TOPK = 5
    key = jax.random.PRNGKey(0)
    ks = jax.random.split(key, 9)

    x = jax.random.normal(ks[0], (B, C, H, W), jnp.float32)
    # deterministic synthetic parameters; conv weights pre-reshaped to their
    # im2col / 1x1-matmul forms (Cout first):
    #   feature.0: Conv2d(C,C,3)              -> w1  (C, C*9),          b1  (C,)
    #   feature.2: Conv2d(C,C,3)              -> w2  (C, C*9),          b2  (C,)
    #   texture_conv1: Conv2d(C*(topk-1),C,1) -> wt1 (C, C*(topk-1)),   bt1 (C,)
    #   texture_conv2: Conv2d(3C,C,1)         -> wt2 (C, 3C),           bt2 (C,)
    params = {
        "w1": 0.10 * jax.random.normal(ks[1], (C, C * 9), jnp.float32),
        "b1": 0.05 * jax.random.normal(ks[2], (C,), jnp.float32),
        "w2": 0.10 * jax.random.normal(ks[3], (C, C * 9), jnp.float32),
        "b2": 0.05 * jax.random.normal(ks[4], (C,), jnp.float32),
        "wt1": 0.10 * jax.random.normal(ks[5], (C, C * (TOPK - 1)), jnp.float32),
        "bt1": 0.05 * jax.random.normal(ks[6], (C,), jnp.float32),
        "wt2": 0.10 * jax.random.normal(ks[7], (C, 3 * C), jnp.float32),
        "bt2": 0.05 * jax.random.normal(ks[8], (C,), jnp.float32),
    }

    fwd = jax.jit(functools.partial(transformer_v5, topk=TOPK))
    y = jax.block_until_ready(fwd(x, params))
    assert y.shape == (B, C, H, W)
    assert bool(jnp.all(jnp.isfinite(y)))
    print("KERNEL_OK")
</pallas_src>

<mosaic_0001>
module attributes {stable_mosaic.version = 11 : i64} {
  func.func @_normalize_kernel(%arg0: i32, %arg1: memref<256x36xf32, #tpu.memory_space<vmem>>, %arg2: memref<256x36xbf16, #tpu.memory_space<vmem>>) attributes {dimension_semantics = [#tpu.dimension_semantics<parallel>], iteration_bounds = array<i64: 1>, scalar_prefetch = 0 : i64, scratch_operands = 0 : i64, tpu.core_type = #tpu.core_type<tc>, window_params = [{transform_indices = @transform_0, window_bounds = array<i64: 256, 36>}, {transform_indices = @transform_1, window_bounds = array<i64: 256, 36>}]} {
    %c0 = arith.constant 0 : index
    %c0_0 = arith.constant 0 : index
    %0 = vector.load %arg1[%c0, %c0_0] : memref<256x36xf32, #tpu.memory_space<vmem>>, vector<256x36xf32>
    %1 = arith.mulf %0, %0 : vector<256x36xf32>
    %cst = arith.constant dense<0.000000e+00> : vector<256xf32>
    %2 = vector.multi_reduction <add>, %1, %cst [1] : vector<256x36xf32> to vector<256xf32>
    %3 = vector.shape_cast %2 : vector<256xf32> to vector<256x1xf32>
    %cst_1 = arith.constant 1.000000e-24 : f32
    %4 = vector.broadcast %cst_1 : f32 to vector<256x1xf32>
    %5 = arith.maximumf %3, %4 : vector<256x1xf32>
    %6 = math.rsqrt %5 : vector<256x1xf32>
    %7 = vector.broadcast %6 : vector<256x1xf32> to vector<256x36xf32>
    %8 = arith.mulf %0, %7 : vector<256x36xf32>
    %9 = arith.truncf %8 : vector<256x36xf32> to vector<256x36xbf16>
    %c0_2 = arith.constant 0 : index
    %c0_3 = arith.constant 0 : index
    %10 = vector.load %arg2[%c0_2, %c0_3] : memref<256x36xbf16, #tpu.memory_space<vmem>>, vector<256x36xbf16>
    tpu.vector_store %arg2[%c0_2, %c0_3], %9 {strides = array<i32>} : memref<256x36xbf16, #tpu.memory_space<vmem>>, vector<256x36xbf16>,
    return
  }
  func.func @transform_0(%arg0: i32) -> (i32, i32) {
    %c0_i32 = arith.constant 0 : i32
    %c0_i32_0 = arith.constant 0 : i32
    return %arg0, %c0_i32 : i32, i32
  }
  func.func @transform_1(%arg0: i32) -> (i32, i32) {
    %c0_i32 = arith.constant 0 : i32
    %c0_i32_0 = arith.constant 0 : i32
    return %arg0, %c0_i32 : i32, i32
  }
}

module attributes {stable_mosaic.version = 11 : i64} {
  func.func @_sim_topk_kernel(%arg0: i32, %arg1: i32, %arg2: memref<128x36xbf16, #tpu.memory_space<vmem>>, %arg3: memref<256x36xbf16, #tpu.memory_space<vmem>>, %arg4: memref<5x256xf32, #tpu.memory_space<vmem>>, %arg5: memref<5x256xi32, #tpu.memory_space<vmem>>, %arg6: memref<8x256xi32, #tpu.memory_space<vmem>>) attributes {dimension_semantics = [#tpu.dimension_semantics<parallel>, #tpu.dimension_semantics<arbitrary>], iteration_bounds = array<i64: 1, 2>, scalar_prefetch = 0 : i64, scratch_operands = 1 : i64, tpu.core_type = #tpu.core_type<tc>, window_params = [{transform_indices = @transform_0, window_bounds = array<i64: 128, 36>}, {transform_indices = @transform_1, window_bounds = array<i64: 256, 36>}, {transform_indices = @transform_2, window_bounds = array<i64: 5, 256>}, {transform_indices = @transform_3, window_bounds = array<i64: 5, 256>}]} {
    %c0_i32 = arith.constant 0 : i32
    %0 = arith.cmpi eq, %arg1, %c0_i32 : i32
    %1 = arith.extui %0 : i1 to i32
    %c0_i32_0 = arith.constant 0 : i32
    %2 = arith.cmpi ne, %1, %c0_i32_0 : i32
    scf.if %2 {
      %c-2147483648_i32_18 = arith.constant -2147483648 : i32
      %54 = vector.broadcast %c-2147483648_i32_18 : i32 to vector<8x256xi32>
      %c0_19 = arith.constant 0 : index
      %c0_20 = arith.constant 0 : index
      %55 = vector.load %arg6[%c0_19, %c0_20] : memref<8x256xi32, #tpu.memory_space<vmem>>, vector<8x256xi32>
      tpu.vector_store %arg6[%c0_19, %c0_20], %54 {strides = array<i32>} : memref<8x256xi32, #tpu.memory_space<vmem>>, vector<8x256xi32>,
    } else {
    }
    %c0 = arith.constant 0 : index
    %c0_1 = arith.constant 0 : index
    %3 = vector.load %arg2[%c0, %c0_1] : memref<128x36xbf16, #tpu.memory_space<vmem>>, vector<128x36xbf16>
    %c0_2 = arith.constant 0 : index
    %c0_3 = arith.constant 0 : index
    %4 = vector.load %arg3[%c0_2, %c0_3] : memref<256x36xbf16, #tpu.memory_space<vmem>>, vector<256x36xbf16>
    %cst = arith.constant dense<0.000000e+00> : vector<128x256xf32>
    %5 = tpu.matmul %3, %4, %cst {dimension_numbers = #tpu.dot_dimension_numbers<[1], [1], [0], [0], [0, 0, 1, 0], [], []>} : vector<128x36xbf16>, vector<256x36xbf16>, vector<128x256xf32> -> vector<128x256xf32>
    %6 = tpu.bitcast %5 : vector<128x256xf32> -> vector<128x256xi32>
    %c0_i32_4 = arith.constant 0 : i32
    %7 = vector.broadcast %c0_i32_4 : i32 to vector<128x256xi32>
    %8 = arith.cmpi slt, %6, %7 : vector<128x256xi32>
    %c2147483647_i32 = arith.constant 2147483647 : i32
    %9 = vector.broadcast %c2147483647_i32 : i32 to vector<128x256xi32>
    %10 = arith.xori %6, %9 : vector<128x256xi32>
    %11 = arith.select %8, %10, %6 : vector<128x256xi1>, vector<128x256xi32>
    %12 = tpu.iota {dimensions = array<i32: 0>} : vector<128x256xi32>
    %c128_i32 = arith.constant 128 : i32
    %13 = arith.muli %arg1, %c128_i32 : i32
    %14 = vector.broadcast %13 : i32 to vector<128x256xi32>
    %15 = arith.addi %12, %14 : vector<128x256xi32>
    %c-256_i32 = arith.constant -256 : i32
    %16 = vector.broadcast %c-256_i32 : i32 to vector<128x256xi32>
    %17 = arith.andi %11, %16 : vector<128x256xi32>
    %c255_i32 = arith.constant 255 : i32
    %18 = vector.broadcast %c255_i32 : i32 to vector<128x256xi32>
    %19 = arith.subi %18, %15 : vector<128x256xi32>
    %20 = arith.ori %17, %19 : vector<128x256xi32>
    %c0_5 = arith.constant 0 : index
    %c0_6 = arith.constant 0 : index
    %21 = vector.load %arg6[%c0_5, %c0_6] : memref<8x256xi32, #tpu.memory_space<vmem>>, vector<8x256xi32>
    %22 = tpu.concatenate %21, %20 in 0 : vector<8x256xi32>, vector<128x256xi32> -> vector<136x256xi32>
    %cst_7 = arith.constant dense<-2147483648> : vector<256xi32>
    %23 = vector.multi_reduction <maxsi>, %22, %cst_7 [0] : vector<136x256xi32> to vector<256xi32>
    %24 = vector.shape_cast %23 : vector<256xi32> to vector<1x256xi32>
    %25 = vector.broadcast %24 : vector<1x256xi32> to vector<136x256xi32>
    %26 = arith.cmpi eq, %22, %25 : vector<136x256xi32>
    %c-2147483648_i32 = arith.constant -2147483648 : i32
    %27 = vector.broadcast %c-2147483648_i32 : i32 to vector<136x256xi32>
    %28 = arith.select %26, %27, %22 : vector<136x256xi1>, vector<136x256xi32>
    %cst_8 = arith.constant dense<-2147483648> : vector<256xi32>
    %29 = vector.multi_reduction <maxsi>, %28, %cst_8 [0] : vector<136x256xi32> to vector<256xi32>
    %30 = vector.shape_cast %29 : vector<256xi32> to vector<1x256xi32>
    %31 = vector.broadcast %30 : vector<1x256xi32> to vector<136x256xi32>
    %32 = arith.cmpi eq, %28, %31 : vector<136x256xi32>
    %c-2147483648_i32_9 = arith.constant -2147483648 : i32
    %33 = vector.broadcast %c-2147483648_i32_9 : i32 to vector<136x256xi32>
    %34 = arith.select %32, %33, %28 : vector<136x256xi1>, vector<136x256xi32>
    %cst_10 = arith.constant dense<-2147483648> : vector<256xi32>
    %35 = vector.multi_reduction <maxsi>, %34, %cst_10 [0] : vector<136x256xi32> to vector<256xi32>
    %36 = vector.shape_cast %35 : vector<256xi32> to vector<1x256xi32>
    %37 = vector.broadcast %36 : vector<1x256xi32> to vector<136x256xi32>
    %38 = arith.cmpi eq, %34, %37 : vector<136x256xi32>
    %c-2147483648_i32_11 = arith.constant -2147483648 : i32
    %39 = vector.broadcast %c-2147483648_i32_11 : i32 to vector<136x256xi32>
    %40 = arith.select %38, %39, %34 : vector<136x256xi1>, vector<136x256xi32>
    %cst_12 = arith.constant dense<-2147483648> : vector<256xi32>
    %41 = vector.multi_reduction <maxsi>, %40, %cst_12 [0] : vector<136x256xi32> to vector<256xi32>
    %42 = vector.shape_cast %41 : vector<256xi32> to vector<1x256xi32>
    %43 = vector.broadcast %42 : vector<1x256xi32> to vector<136x256xi32>
    %44 = arith.cmpi eq, %40, %43 : vector<136x256xi32>
    %c-2147483648_i32_13 = arith.constant -2147483648 : i32
    %45 = vector.broadcast %c-2147483648_i32_13 : i32 to vector<136x256xi32>
    %46 = arith.select %44, %45, %40 : vector<136x256xi1>, vector<136x256xi32>
    %cst_14 = arith.constant dense<-2147483648> : vector<256xi32>
    %47 = vector.multi_reduction <maxsi>, %46, %cst_14 [0] : vector<136x256xi32> to vector<256xi32>
    %48 = vector.shape_cast %47 : vector<256xi32> to vector<1x256xi32>
    %49 = tpu.concatenate %24, %30, %36, %42, %48 in 0 : vector<1x256xi32>, vector<1x256xi32>, vector<1x256xi32>, vector<1x256xi32>, vector<1x256xi32> -> vector<5x256xi32>
    %c0_15 = arith.constant 0 : index
    %c0_16 = arith.constant 0 : index
    %50 = vector.load %arg6[%c0_15, %c0_16] : memref<8x256xi32, #tpu.memory_space<vmem>>, vector<5x256xi32>
    tpu.vector_store %arg6[%c0_15, %c0_16], %49 {strides = array<i32>} : memref<8x256xi32, #tpu.memory_space<vmem>>, vector<5x256xi32>,
    %c1_i32 = arith.constant 1 : i32
    %51 = arith.cmpi eq, %arg1, %c1_i32 : i32
    %52 = arith.extui %51 : i1 to i32
    %c0_i32_17 = arith.constant 0 : i32
    %53 = arith.cmpi ne, %52, %c0_i32_17 : i32
    scf.if %53 {
      %c0_18 = arith.constant 0 : index
      %c0_19 = arith.constant 0 : index
      %54 = vector.load %arg6[%c0_18, %c0_19] : memref<8x256xi32, #tpu.memory_space<vmem>>, vector<5x256xi32>
      %c255_i32_20 = arith.constant 255 : i32
      %55 = vector.broadcast %c255_i32_20 : i32 to vector<5x256xi32>
      %56 = arith.andi %54, %55 : vector<5x256xi32>
      %c255_i32_21 = arith.constant 255 : i32
      %57 = vector.broadcast %c255_i32_21 : i32 to vector<5x256xi32>
      %58 = arith.subi %57, %56 : vector<5x256xi32>
      %c0_22 = arith.constant 0 : index
      %c0_23 = arith.constant 0 : index
      %59 = vector.load %arg5[%c0_22, %c0_23] : memref<5x256xi32, #tpu.memory_space<vmem>>, vector<5x256xi32>
      tpu.vector_store %arg5[%c0_22, %c0_23], %58 {strides = array<i32>} : memref<5x256xi32, #tpu.memory_space<vmem>>, vector<5x256xi32>,
      %c-256_i32_24 = arith.constant -256 : i32
      %60 = vector.broadcast %c-256_i32_24 : i32 to vector<5x256xi32>
      %61 = arith.andi %54, %60 : vector<5x256xi32>
      %c0_i32_25 = arith.constant 0 : i32
      %62 = vector.broadcast %c0_i32_25 : i32 to vector<5x256xi32>
      %63 = arith.cmpi slt, %61, %62 : vector<5x256xi32>
      %c2147483647_i32_26 = arith.constant 2147483647 : i32
      %64 = vector.broadcast %c2147483647_i32_26 : i32 to vector<5x256xi32>
      %65 = arith.xori %61, %64 : vector<5x256xi32>
      %66 = arith.select %63, %65, %61 : vector<5x256xi1>, vector<5x256xi32>
      %67 = tpu.bitcast %66 : vector<5x256xi32> -> vector<5x256xf32>
      %c0_27 = arith.constant 0 : index
      %c0_28 = arith.constant 0 : index
      %68 = vector.load %arg4[%c0_27, %c0_28] : memref<5x256xf32, #tpu.memory_space<vmem>>, vector<5x256xf32>
      tpu.vector_store %arg4[%c0_27, %c0_28], %67 {strides = array<i32>} : memref<5x256xf32, #tpu.memory_space<vmem>>, vector<5x256xf32>,
    } else {
    }
    return
  }
  func.func @transform_0(%arg0: i32, %arg1: i32) -> (i32, i32) {
    %c0_i32 = arith.constant 0 : i32
    %c0_i32_0 = arith.constant 0 : i32
    return %arg1, %c0_i32 : i32, i32
  }
  func.func @transform_1(%arg0: i32, %arg1: i32) -> (i32, i32) {
    %c0_i32 = arith.constant 0 : i32
    %c0_i32_0 = arith.constant 0 : i32
    return %arg0, %c0_i32 : i32, i32
  }
  func.func @transform_2(%arg0: i32, %arg1: i32) -> (i32, i32) {
    %c0_i32 = arith.constant 0 : i32
    %c0_i32_0 = arith.constant 0 : i32
    return %c0_i32, %arg0 : i32, i32
  }
  func.func @transform_3(%arg0: i32, %arg1: i32) -> (i32, i32) {
    %c0_i32 = arith.constant 0 : i32
    %c0_i32_0 = arith.constant 0 : i32
    return %c0_i32, %arg0 : i32, i32
  }
}

module attributes {stable_mosaic.version = 11 : i64} {
  func.func @_conv_mm_kernel(%arg0: i32, %arg1: memref<4x36xf32, #tpu.memory_space<vmem>>, %arg2: memref<4x1xf32, #tpu.memory_space<vmem>>, %arg3: memref<36x256xf32, #tpu.memory_space<vmem>>, %arg4: memref<4x256xf32, #tpu.memory_space<vmem>>) attributes {dimension_semantics = [#tpu.dimension_semantics<parallel>], iteration_bounds = array<i64: 1>, scalar_prefetch = 0 : i64, scratch_operands = 0 : i64, tpu.core_type = #tpu.core_type<tc>, window_params = [{pipeline_mode = #tpu.pipeline_mode<synchronous>, transform_indices = @transform_0, window_bounds = array<i64: 4, 36>}, {pipeline_mode = #tpu.pipeline_mode<synchronous>, transform_indices = @transform_1, window_bounds = array<i64: 4, 1>}, {transform_indices = @transform_2, window_bounds = array<i64: 36, 256>}, {transform_indices = @transform_3, window_bounds = array<i64: 4, 256>}]} {
    %c0 = arith.constant 0 : index
    %c0_0 = arith.constant 0 : index
    %0 = vector.load %arg1[%c0, %c0_0] : memref<4x36xf32, #tpu.memory_space<vmem>>, vector<4x36xf32>
    %c0_1 = arith.constant 0 : index
    %c0_2 = arith.constant 0 : index
    %1 = vector.load %arg3[%c0_1, %c0_2] : memref<36x256xf32, #tpu.memory_space<vmem>>, vector<36x256xf32>
    %cst = arith.constant dense<0.000000e+00> : vector<4x256xf32>
    %2 = tpu.matmul %0, %1, %cst {dimension_numbers = #tpu.dot_dimension_numbers<[1], [0], [0], [1], [0, 0, 1, 1], [], []>} : vector<4x36xf32>, vector<36x256xf32>, vector<4x256xf32> -> vector<4x256xf32>
    %c0_3 = arith.constant 0 : index
    %c0_4 = arith.constant 0 : index
    %3 = vector.load %arg2[%c0_3, %c0_4] : memref<4x1xf32, #tpu.memory_space<vmem>>, vector<4x1xf32>
    %4 = vector.broadcast %3 : vector<4x1xf32> to vector<4x256xf32>
    %5 = arith.addf %2, %4 : vector<4x256xf32>
    %cst_5 = arith.constant 0.000000e+00 : f32
    %6 = vector.broadcast %cst_5 : f32 to vector<4x256xf32>
    %7 = arith.maximumf %5, %6 : vector<4x256xf32>
    %c0_6 = arith.constant 0 : index
    %c0_7 = arith.constant 0 : index
    %8 = vector.load %arg4[%c0_6, %c0_7] : memref<4x256xf32, #tpu.memory_space<vmem>>, vector<4x256xf32>
    tpu.vector_store %arg4[%c0_6, %c0_7], %7 {strides = array<i32>} : memref<4x256xf32, #tpu.memory_space<vmem>>, vector<4x256xf32>,
    return
  }
  func.func @transform_0(%arg0: i32) -> (i32, i32) {
    %c0_i32 = arith.constant 0 : i32
    %c0_i32_0 = arith.constant 0 : i32
    %c0_i32_1 = arith.constant 0 : i32
    return %c0_i32, %c0_i32_0 : i32, i32
  }
  func.func @transform_1(%arg0: i32) -> (i32, i32) {
    %c0_i32 = arith.constant 0 : i32
    %c0_i32_0 = arith.constant 0 : i32
    %c0_i32_1 = arith.constant 0 : i32
    return %c0_i32, %c0_i32_0 : i32, i32
  }
  func.func @transform_2(%arg0: i32) -> (i32, i32) {
    %c0_i32 = arith.constant 0 : i32
    %c0_i32_0 = arith.constant 0 : i32
    return %c0_i32, %arg0 : i32, i32
  }
  func.func @transform_3(%arg0: i32) -> (i32, i32) {
    %c0_i32 = arith.constant 0 : i32
    %c0_i32_0 = arith.constant 0 : i32
    return %c0_i32, %arg0 : i32, i32
  }
}

module attributes {stable_mosaic.version = 11 : i64} {
  func.func @_conv_mm_kernel(%arg0: i32, %arg1: memref<4x36xf32, #tpu.memory_space<vmem>>, %arg2: memref<4x1xf32, #tpu.memory_space<vmem>>, %arg3: memref<36x256xf32, #tpu.memory_space<vmem>>, %arg4: memref<4x256xf32, #tpu.memory_space<vmem>>) attributes {dimension_semantics = [#tpu.dimension_semantics<parallel>], iteration_bounds = array<i64: 1>, scalar_prefetch = 0 : i64, scratch_operands = 0 : i64, tpu.core_type = #tpu.core_type<tc>, window_params = [{pipeline_mode = #tpu.pipeline_mode<synchronous>, transform_indices = @transform_0, window_bounds = array<i64: 4, 36>}, {pipeline_mode = #tpu.pipeline_mode<synchronous>, transform_indices = @transform_1, window_bounds = array<i64: 4, 1>}, {transform_indices = @transform_2, window_bounds = array<i64: 36, 256>}, {transform_indices = @transform_3, window_bounds = array<i64: 4, 256>}]} {
    %c0 = arith.constant 0 : index
    %c0_0 = arith.constant 0 : index
    %0 = vector.load %arg1[%c0, %c0_0] : memref<4x36xf32, #tpu.memory_space<vmem>>, vector<4x36xf32>
    %c0_1 = arith.constant 0 : index
    %c0_2 = arith.constant 0 : index
    %1 = vector.load %arg3[%c0_1, %c0_2] : memref<36x256xf32, #tpu.memory_space<vmem>>, vector<36x256xf32>
    %cst = arith.constant dense<0.000000e+00> : vector<4x256xf32>
    %2 = tpu.matmul %0, %1, %cst {dimension_numbers = #tpu.dot_dimension_numbers<[1], [0], [0], [1], [0, 0, 1, 1], [], []>} : vector<4x36xf32>, vector<36x256xf32>, vector<4x256xf32> -> vector<4x256xf32>
    %c0_3 = arith.constant 0 : index
    %c0_4 = arith.constant 0 : index
    %3 = vector.load %arg2[%c0_3, %c0_4] : memref<4x1xf32, #tpu.memory_space<vmem>>, vector<4x1xf32>
    %4 = vector.broadcast %3 : vector<4x1xf32> to vector<4x256xf32>
    %5 = arith.addf %2, %4 : vector<4x256xf32>
    %c0_5 = arith.constant 0 : index
    %c0_6 = arith.constant 0 : index
    %6 = vector.load %arg4[%c0_5, %c0_6] : memref<4x256xf32, #tpu.memory_space<vmem>>, vector<4x256xf32>
    tpu.vector_store %arg4[%c0_5, %c0_6], %5 {strides = array<i32>} : memref<4x256xf32, #tpu.memory_space<vmem>>, vector<4x256xf32>,
    return
  }
  func.func @transform_0(%arg0: i32) -> (i32, i32) {
    %c0_i32 = arith.constant 0 : i32
    %c0_i32_0 = arith.constant 0 : i32
    %c0_i32_1 = arith.constant 0 : i32
    return %c0_i32, %c0_i32_0 : i32, i32
  }
  func.func @transform_1(%arg0: i32) -> (i32, i32) {
    %c0_i32 = arith.constant 0 : i32
    %c0_i32_0 = arith.constant 0 : i32
    %c0_i32_1 = arith.constant 0 : i32
    return %c0_i32, %c0_i32_0 : i32, i32
  }
  func.func @transform_2(%arg0: i32) -> (i32, i32) {
    %c0_i32 = arith.constant 0 : i32
    %c0_i32_0 = arith.constant 0 : i32
    return %c0_i32, %arg0 : i32, i32
  }
  func.func @transform_3(%arg0: i32) -> (i32, i32) {
    %c0_i32 = arith.constant 0 : i32
    %c0_i32_0 = arith.constant 0 : i32
    return %c0_i32, %arg0 : i32, i32
  }
}

module attributes {stable_mosaic.version = 11 : i64} {
  func.func @_texture_final_kernel(%arg0: i32, %arg1: memref<4x256xf32, #tpu.memory_space<vmem>>, %arg2: memref<4x256xf32, #tpu.memory_space<vmem>>, %arg3: memref<4x256xf32, #tpu.memory_space<vmem>>, %arg4: memref<4x256xf32, #tpu.memory_space<vmem>>, %arg5: memref<5x256xf32, #tpu.memory_space<vmem>>, %arg6: memref<4x256xf32, #tpu.memory_space<vmem>>, %arg7: memref<4x256xf32, #tpu.memory_space<vmem>>, %arg8: memref<4x16xf32, #tpu.memory_space<vmem>>, %arg9: memref<4x1xf32, #tpu.memory_space<vmem>>, %arg10: memref<4x4xf32, #tpu.memory_space<vmem>>, %arg11: memref<4x4xf32, #tpu.memory_space<vmem>>, %arg12: memref<4x4xf32, #tpu.memory_space<vmem>>, %arg13: memref<4x1xf32, #tpu.memory_space<vmem>>, %arg14: memref<4x256xf32, #tpu.memory_space<vmem>>) attributes {dimension_semantics = [#tpu.dimension_semantics<parallel>], iteration_bounds = array<i64: 1>, scalar_prefetch = 0 : i64, scratch_operands = 0 : i64, tpu.core_type = #tpu.core_type<tc>, window_params = [{transform_indices = @transform_0, window_bounds = array<i64: 4, 256>}, {transform_indices = @transform_1, window_bounds = array<i64: 4, 256>}, {transform_indices = @transform_2, window_bounds = array<i64: 4, 256>}, {transform_indices = @transform_3, window_bounds = array<i64: 4, 256>}, {transform_indices = @transform_4, window_bounds = array<i64: 5, 256>}, {transform_indices = @transform_5, window_bounds = array<i64: 4, 256>}, {transform_indices = @transform_6, window_bounds = array<i64: 4, 256>}, {pipeline_mode = #tpu.pipeline_mode<synchronous>, transform_indices = @transform_7, window_bounds = array<i64: 4, 16>}, {pipeline_mode = #tpu.pipeline_mode<synchronous>, transform_indices = @transform_8, window_bounds = array<i64: 4, 1>}, {pipeline_mode = #tpu.pipeline_mode<synchronous>, transform_indices = @transform_9, window_bounds = array<i64: 4, 4>}, {pipeline_mode = #tpu.pipeline_mode<synchronous>, transform_indices = @transform_10, window_bounds = array<i64: 4, 4>}, {pipeline_mode = #tpu.pipeline_mode<synchronous>, transform_indices = @transform_11, window_bounds = array<i64: 4, 4>}, {pipeline_mode = #tpu.pipeline_mode<synchronous>, transform_indices = @transform_12, window_bounds = array<i64: 4, 1>}, {transform_indices = @transform_13, window_bounds = array<i64: 4, 256>}]} {
    %c0 = arith.constant 0 : index
    %c0_0 = arith.constant 0 : index
    %0 = vector.load %arg8[%c0, %c0_0] : memref<4x16xf32, #tpu.memory_space<vmem>>, vector<4x16xf32>
    %c0_1 = arith.constant 0 : index
    %c0_2 = arith.constant 0 : index
    %1 = vector.load %arg5[%c0_1, %c0_2] : memref<5x256xf32, #tpu.memory_space<vmem>>, vector<5x256xf32>
    %2 = vector.extract_strided_slice %0 {offsets = [0, 0], sizes = [4, 4], strides = [1, 1]} : vector<4x16xf32> to vector<4x4xf32>
    %c0_3 = arith.constant 0 : index
    %c0_4 = arith.constant 0 : index
    %3 = vector.load %arg1[%c0_3, %c0_4] : memref<4x256xf32, #tpu.memory_space<vmem>>, vector<4x256xf32>
    %cst = arith.constant dense<0.000000e+00> : vector<4x256xf32>
    %4 = tpu.matmul %2, %3, %cst {dimension_numbers = #tpu.dot_dimension_numbers<[1], [0], [0], [1], [0, 0, 1, 1], [], []>} : vector<4x4xf32>, vector<4x256xf32>, vector<4x256xf32> -> vector<4x256xf32>
    %5 = vector.extract_strided_slice %1 {offsets = [1, 0], sizes = [1, 256], strides = [1, 1]} : vector<5x256xf32> to vector<1x256xf32>
    %6 = vector.broadcast %5 : vector<1x256xf32> to vector<4x256xf32>
    %7 = arith.mulf %4, %6 : vector<4x256xf32>
    %8 = vector.extract_strided_slice %0 {offsets = [0, 4], sizes = [4, 4], strides = [1, 1]} : vector<4x16xf32> to vector<4x4xf32>
    %c0_5 = arith.constant 0 : index
    %c0_6 = arith.constant 0 : index
    %9 = vector.load %arg2[%c0_5, %c0_6] : memref<4x256xf32, #tpu.memory_space<vmem>>, vector<4x256xf32>
    %cst_7 = arith.constant dense<0.000000e+00> : vector<4x256xf32>
    %10 = tpu.matmul %8, %9, %cst_7 {dimension_numbers = #tpu.dot_dimension_numbers<[1], [0], [0], [1], [0, 0, 1, 1], [], []>} : vector<4x4xf32>, vector<4x256xf32>, vector<4x256xf32> -> vector<4x256xf32>
    %11 = vector.extract_strided_slice %1 {offsets = [2, 0], sizes = [1, 256], strides = [1, 1]} : vector<5x256xf32> to vector<1x256xf32>
    %12 = vector.broadcast %11 : vector<1x256xf32> to vector<4x256xf32>
    %13 = arith.mulf %10, %12 : vector<4x256xf32>
    %14 = arith.addf %7, %13 : vector<4x256xf32>
    %15 = vector.extract_strided_slice %0 {offsets = [0, 8], sizes = [4, 4], strides = [1, 1]} : vector<4x16xf32> to vector<4x4xf32>
    %c0_8 = arith.constant 0 : index
    %c0_9 = arith.constant 0 : index
    %16 = vector.load %arg3[%c0_8, %c0_9] : memref<4x256xf32, #tpu.memory_space<vmem>>, vector<4x256xf32>
    %cst_10 = arith.constant dense<0.000000e+00> : vector<4x256xf32>
    %17 = tpu.matmul %15, %16, %cst_10 {dimension_numbers = #tpu.dot_dimension_numbers<[1], [0], [0], [1], [0, 0, 1, 1], [], []>} : vector<4x4xf32>, vector<4x256xf32>, vector<4x256xf32> -> vector<4x256xf32>
    %18 = vector.extract_strided_slice %1 {offsets = [3, 0], sizes = [1, 256], strides = [1, 1]} : vector<5x256xf32> to vector<1x256xf32>
    %19 = vector.broadcast %18 : vector<1x256xf32> to vector<4x256xf32>
    %20 = arith.mulf %17, %19 : vector<4x256xf32>
    %21 = arith.addf %14, %20 : vector<4x256xf32>
    %22 = vector.extract_strided_slice %0 {offsets = [0, 12], sizes = [4, 4], strides = [1, 1]} : vector<4x16xf32> to vector<4x4xf32>
    %c0_11 = arith.constant 0 : index
    %c0_12 = arith.constant 0 : index
    %23 = vector.load %arg4[%c0_11, %c0_12] : memref<4x256xf32, #tpu.memory_space<vmem>>, vector<4x256xf32>
    %cst_13 = arith.constant dense<0.000000e+00> : vector<4x256xf32>
    %24 = tpu.matmul %22, %23, %cst_13 {dimension_numbers = #tpu.dot_dimension_numbers<[1], [0], [0], [1], [0, 0, 1, 1], [], []>} : vector<4x4xf32>, vector<4x256xf32>, vector<4x256xf32> -> vector<4x256xf32>
    %25 = vector.extract_strided_slice %1 {offsets = [4, 0], sizes = [1, 256], strides = [1, 1]} : vector<5x256xf32> to vector<1x256xf32>
    %26 = vector.broadcast %25 : vector<1x256xf32> to vector<4x256xf32>
    %27 = arith.mulf %24, %26 : vector<4x256xf32>
    %28 = arith.addf %21, %27 : vector<4x256xf32>
    %c0_14 = arith.constant 0 : index
    %c0_15 = arith.constant 0 : index
    %29 = vector.load %arg9[%c0_14, %c0_15] : memref<4x1xf32, #tpu.memory_space<vmem>>, vector<4x1xf32>
    %30 = vector.broadcast %29 : vector<4x1xf32> to vector<4x256xf32>
    %31 = arith.addf %28, %30 : vector<4x256xf32>
    %c0_16 = arith.constant 0 : index
    %c0_17 = arith.constant 0 : index
    %32 = vector.load %arg10[%c0_16, %c0_17] : memref<4x4xf32, #tpu.memory_space<vmem>>, vector<4x4xf32>
    %c0_18 = arith.constant 0 : index
    %c0_19 = arith.constant 0 : index
    %33 = vector.load %arg6[%c0_18, %c0_19] : memref<4x256xf32, #tpu.memory_space<vmem>>, vector<4x256xf32>
    %cst_20 = arith.constant dense<0.000000e+00> : vector<4x256xf32>
    %34 = tpu.matmul %32, %33, %cst_20 {dimension_numbers = #tpu.dot_dimension_numbers<[1], [0], [0], [1], [0, 0, 1, 1], [], []>} : vector<4x4xf32>, vector<4x256xf32>, vector<4x256xf32> -> vector<4x256xf32>
    %c0_21 = arith.constant 0 : index
    %c0_22 = arith.constant 0 : index
    %35 = vector.load %arg11[%c0_21, %c0_22] : memref<4x4xf32, #tpu.memory_space<vmem>>, vector<4x4xf32>
    %c0_23 = arith.constant 0 : index
    %c0_24 = arith.constant 0 : index
    %36 = vector.load %arg7[%c0_23, %c0_24] : memref<4x256xf32, #tpu.memory_space<vmem>>, vector<4x256xf32>
    %cst_25 = arith.constant dense<0.000000e+00> : vector<4x256xf32>
    %37 = tpu.matmul %35, %36, %cst_25 {dimension_numbers = #tpu.dot_dimension_numbers<[1], [0], [0], [1], [0, 0, 1, 1], [], []>} : vector<4x4xf32>, vector<4x256xf32>, vector<4x256xf32> -> vector<4x256xf32>
    %38 = arith.addf %34, %37 : vector<4x256xf32>
    %c0_26 = arith.constant 0 : index
    %c0_27 = arith.constant 0 : index
    %39 = vector.load %arg12[%c0_26, %c0_27] : memref<4x4xf32, #tpu.memory_space<vmem>>, vector<4x4xf32>
    %cst_28 = arith.constant dense<0.000000e+00> : vector<4x256xf32>
    %40 = tpu.matmul %39, %31, %cst_28 {dimension_numbers = #tpu.dot_dimension_numbers<[1], [0], [0], [1], [0, 0, 1, 1], [], []>} : vector<4x4xf32>, vector<4x256xf32>, vector<4x256xf32> -> vector<4x256xf32>
    %41 = arith.addf %38, %40 : vector<4x256xf32>
    %c0_29 = arith.constant 0 : index
    %c0_30 = arith.constant 0 : index
    %42 = vector.load %arg13[%c0_29, %c0_30] : memref<4x1xf32, #tpu.memory_space<vmem>>, vector<4x1xf32>
    %43 = vector.broadcast %42 : vector<4x1xf32> to vector<4x256xf32>
    %44 = arith.addf %41, %43 : vector<4x256xf32>
    %c0_31 = arith.constant 0 : index
    %c0_32 = arith.constant 0 : index
    %45 = vector.load %arg14[%c0_31, %c0_32] : memref<4x256xf32, #tpu.memory_space<vmem>>, vector<4x256xf32>
    tpu.vector_store %arg14[%c0_31, %c0_32], %44 {strides = array<i32>} : memref<4x256xf32, #tpu.memory_space<vmem>>, vector<4x256xf32>,
    return
  }
  func.func @transform_0(%arg0: i32) -> (i32, i32) {
    %c0_i32 = arith.constant 0 : i32
    %c0_i32_0 = arith.constant 0 : i32
    return %c0_i32, %arg0 : i32, i32
  }
  func.func @transform_1(%arg0: i32) -> (i32, i32) {
    %c0_i32 = arith.constant 0 : i32
    %c0_i32_0 = arith.constant 0 : i32
    return %c0_i32, %arg0 : i32, i32
  }
  func.func @transform_2(%arg0: i32) -> (i32, i32) {
    %c0_i32 = arith.constant 0 : i32
    %c0_i32_0 = arith.constant 0 : i32
    return %c0_i32, %arg0 : i32, i32
  }
  func.func @transform_3(%arg0: i32) -> (i32, i32) {
    %c0_i32 = arith.constant 0 : i32
    %c0_i32_0 = arith.constant 0 : i32
    return %c0_i32, %arg0 : i32, i32
  }
  func.func @transform_4(%arg0: i32) -> (i32, i32) {
    %c0_i32 = arith.constant 0 : i32
    %c0_i32_0 = arith.constant 0 : i32
    return %c0_i32, %arg0 : i32, i32
  }
  func.func @transform_5(%arg0: i32) -> (i32, i32) {
    %c0_i32 = arith.constant 0 : i32
    %c0_i32_0 = arith.constant 0 : i32
    return %c0_i32, %arg0 : i32, i32
  }
  func.func @transform_6(%arg0: i32) -> (i32, i32) {
    %c0_i32 = arith.constant 0 : i32
    %c0_i32_0 = arith.constant 0 : i32
    return %c0_i32, %arg0 : i32, i32
  }
  func.func @transform_7(%arg0: i32) -> (i32, i32) {
    %c0_i32 = arith.constant 0 : i32
    %c0_i32_0 = arith.constant 0 : i32
    %c0_i32_1 = arith.constant 0 : i32
    return %c0_i32, %c0_i32_0 : i32, i32
  }
  func.func @transform_8(%arg0: i32) -> (i32, i32) {
    %c0_i32 = arith.constant 0 : i32
    %c0_i32_0 = arith.constant 0 : i32
    %c0_i32_1 = arith.constant 0 : i32
    return %c0_i32, %c0_i32_0 : i32, i32
  }
  func.func @transform_9(%arg0: i32) -> (i32, i32) {
    %c0_i32 = arith.constant 0 : i32
    %c0_i32_0 = arith.constant 0 : i32
    %c0_i32_1 = arith.constant 0 : i32
    return %c0_i32, %c0_i32_0 : i32, i32
  }
  func.func @transform_10(%arg0: i32) -> (i32, i32) {
    %c0_i32 = arith.constant 0 : i32
    %c0_i32_0 = arith.constant 0 : i32
    %c0_i32_1 = arith.constant 0 : i32
    return %c0_i32, %c0_i32_0 : i32, i32
  }
  func.func @transform_11(%arg0: i32) -> (i32, i32) {
    %c0_i32 = arith.constant 0 : i32
    %c0_i32_0 = arith.constant 0 : i32
    %c0_i32_1 = arith.constant 0 : i32
    return %c0_i32, %c0_i32_0 : i32, i32
  }
  func.func @transform_12(%arg0: i32) -> (i32, i32) {
    %c0_i32 = arith.constant 0 : i32
    %c0_i32_0 = arith.constant 0 : i32
    %c0_i32_1 = arith.constant 0 : i32
    return %c0_i32, %c0_i32_0 : i32, i32
  }
  func.func @transform_13(%arg0: i32) -> (i32, i32) {
    %c0_i32 = arith.constant 0 : i32
    %c0_i32_0 = arith.constant 0 : i32
    return %c0_i32, %arg0 : i32, i32
  }
}

</mosaic_0001>

<llo_original>
// kernel: transformer_v5.7
$region0: #{transformer_v5.7}
  #allocation0 [shape = 'u32[]', space=smem, size = 0x4, offset = 0x4, fixed_abs, tag = 'smem constant byte address 0x4 - core index']
  #allocation1 [shape = 'u32[144,128]{1,0:T(1,128)}', space=vmem, size = 0x12000, scoped, tag = 'internal scratch']
  %s0 = inlined_call_operand.vmem [shape: f32[256,36], index: 0, kind: input, shape index: {}]
  %s1 = inlined_call_operand.vmem [shape: bf16[256,36], index: 1, kind: output, shape index: {}]
  %s2 = sld [smem:[#allocation0]]
  $region14: #{transformer_v5.7} parent=0
    _
  %s4 = ssub.s32 1, %s2
  %s5 = scalar_select 0, %s4, %s2
  // Predicated region
  $region2: #{transformer_v5.7} parent=0 // pred_check
    _
  $region3: #{transformer_v5.7} parent=0 // pred_check_branch
    %7 = sbr.rel (0) target = $region5
  $region4: #{transformer_v5.7} parent=0 // pred_region
    _
  $region5: #{transformer_v5.7} parent=0 // pred_fallthru
    _
  %v8 = vld [vmem:[%s0] sm:$0xff]
  %v9 = vld [vmem:[%s0 + $0x8] sm:$0xff]
  %v10 = vld [vmem:[%s0 + $0x10] sm:$0xff]
  %v11 = vld [vmem:[%s0 + $0x18] sm:$0xff]
  %v12 = vld [vmem:[%s0 + $0x20] sm:$0xff]
  %v13 = vld [vmem:[%s0 + $0x28] sm:$0xff]
  %v14 = vld [vmem:[%s0 + $0x30] sm:$0xff]
  %v15 = vld [vmem:[%s0 + $0x38] sm:$0xff]
  %v16 = vld [vmem:[%s0 + $0x40] sm:$0xff]
  %v17 = vld [vmem:[%s0 + $0x48] sm:$0xff]
  %v18 = vld [vmem:[%s0 + $0x50] sm:$0xff]
  %v19 = vld [vmem:[%s0 + $0x58] sm:$0xff]
  %v20 = vld [vmem:[%s0 + $0x60] sm:$0xff]
  %v21 = vld [vmem:[%s0 + $0x68] sm:$0xff]
  %v22 = vld [vmem:[%s0 + $0x70] sm:$0xff]
  %v23 = vld [vmem:[%s0 + $0x78] sm:$0xff]
  %v24 = vld [vmem:[%s0 + $0x80] sm:$0xff]
  %v25 = vld [vmem:[%s0 + $0x88] sm:$0xff]
  %v26 = vld [vmem:[%s0 + $0x90] sm:$0xff]
  %v27 = vld [vmem:[%s0 + $0x98] sm:$0xff]
  %v28 = vld [vmem:[%s0 + $0xa0] sm:$0xff]
  %v29 = vld [vmem:[%s0 + $0xa8] sm:$0xff]
  %v30 = vld [vmem:[%s0 + $0xb0] sm:$0xff]
  %v31 = vld [vmem:[%s0 + $0xb8] sm:$0xff]
  %v32 = vld [vmem:[%s0 + $0xc0] sm:$0xff]
  %v33 = vld [vmem:[%s0 + $0xc8] sm:$0xff]
  %v34 = vld [vmem:[%s0 + $0xd0] sm:$0xff]
  %v35 = vld [vmem:[%s0 + $0xd8] sm:$0xff]
  %v36 = vld [vmem:[%s0 + $0xe0] sm:$0xff]
  %v37 = vld [vmem:[%s0 + $0xe8] sm:$0xff]
  %v38 = vld [vmem:[%s0 + $0xf0] sm:$0xff]
  %v39 = vld [vmem:[%s0 + $0xf8] sm:$0xff]
  %v40 = vmul.f32 %v8, %v8
  %v41 = vmul.f32 %v9, %v9
  %v42 = vmul.f32 %v10, %v10
  %v43 = vmul.f32 %v11, %v11
  %v44 = vmul.f32 %v12, %v12
  %v45 = vmul.f32 %v13, %v13
  %v46 = vmul.f32 %v14, %v14
  %v47 = vmul.f32 %v15, %v15
  %v48 = vmul.f32 %v16, %v16
  %v49 = vmul.f32 %v17, %v17
  %v50 = vmul.f32 %v18, %v18
  %v51 = vmul.f32 %v19, %v19
  %v52 = vmul.f32 %v20, %v20
  %v53 = vmul.f32 %v21, %v21
  %v54 = vmul.f32 %v22, %v22
  %v55 = vmul.f32 %v23, %v23
  %v56 = vmul.f32 %v24, %v24
  %v57 = vmul.f32 %v25, %v25
  %v58 = vmul.f32 %v26, %v26
  %v59 = vmul.f32 %v27, %v27
  %v60 = vmul.f32 %v28, %v28
  %v61 = vmul.f32 %v29, %v29
  %v62 = vmul.f32 %v30, %v30
  %v63 = vmul.f32 %v31, %v31
  %v64 = vmul.f32 %v32, %v32
  %v65 = vmul.f32 %v33, %v33
  %v66 = vmul.f32 %v34, %v34
  %v67 = vmul.f32 %v35, %v35
  %v68 = vmul.f32 %v36, %v36
  %v69 = vmul.f32 %v37, %v37
  %v70 = vmul.f32 %v38, %v38
  %v71 = vmul.f32 %v39, %v39
  %vm72 = vcmask 293888
  %v73 = vsel %vm72, %v40, 0.0
  %74 = vadd.xlane.f32.xlu0 %v73
  %v75 = vpop.xlane.xlu0 %74
  %v76 = vsel %vm72, %v41, 0.0
  %77 = vadd.xlane.f32.xlu0 %v76
  %v78 = vpop.xlane.xlu0 %77
  %v79 = vsel %vm72, %v42, 0.0
  %80 = vadd.xlane.f32.xlu0 %v79
  %v81 = vpop.xlane.xlu0 %80
  %v82 = vsel %vm72, %v43, 0.0
  %83 = vadd.xlane.f32.xlu0 %v82
  %v84 = vpop.xlane.xlu0 %83
  %v85 = vsel %vm72, %v44, 0.0
  %86 = vadd.xlane.f32.xlu0 %v85
  %v87 = vpop.xlane.xlu0 %86
  %v88 = vsel %vm72, %v45, 0.0
  %89 = vadd.xlane.f32.xlu0 %v88
  %v90 = vpop.xlane.xlu0 %89
  %v91 = vsel %vm72, %v46, 0.0
  %92 = vadd.xlane.f32.xlu0 %v91
  %v93 = vpop.xlane.xlu0 %92
  %v94 = vsel %vm72, %v47, 0.0
  %95 = vadd.xlane.f32.xlu0 %v94
  %v96 = vpop.xlane.xlu0 %95
  %v97 = vsel %vm72, %v48, 0.0
  %98 = vadd.xlane.f32.xlu0 %v97
  %v99 = vpop.xlane.xlu0 %98
  %v100 = vsel %vm72, %v49, 0.0
  %101 = vadd.xlane.f32.xlu0 %v100
  %v102 = vpop.xlane.xlu0 %101
  %v103 = vsel %vm72, %v50, 0.0
  %104 = vadd.xlane.f32.xlu0 %v103
  %v105 = vpop.xlane.xlu0 %104
  %v106 = vsel %vm72, %v51, 0.0
  %107 = vadd.xlane.f32.xlu0 %v106
  %v108 = vpop.xlane.xlu0 %107
  %v109 = vsel %vm72, %v52, 0.0
  %110 = vadd.xlane.f32.xlu0 %v109
  %v111 = vpop.xlane.xlu0 %110
  %v112 = vsel %vm72, %v53, 0.0
  %113 = vadd.xlane.f32.xlu0 %v112
  %v114 = vpop.xlane.xlu0 %113
  %v115 = vsel %vm72, %v54, 0.0
  %116 = vadd.xlane.f32.xlu0 %v115
  %v117 = vpop.xlane.xlu0 %116
  %v118 = vsel %vm72, %v55, 0.0
  %119 = vadd.xlane.f32.xlu0 %v118
  %v120 = vpop.xlane.xlu0 %119
  %v121 = vsel %vm72, %v56, 0.0
  %122 = vadd.xlane.f32.xlu0 %v121
  %v123 = vpop.xlane.xlu0 %122
  %v124 = vsel %vm72, %v57, 0.0
  %125 = vadd.xlane.f32.xlu0 %v124
  %v126 = vpop.xlane.xlu0 %125
  %v127 = vsel %vm72, %v58, 0.0
  %128 = vadd.xlane.f32.xlu0 %v127
  %v129 = vpop.xlane.xlu0 %128
  %v130 = vsel %vm72, %v59, 0.0
  %131 = vadd.xlane.f32.xlu0 %v130
  %v132 = vpop.xlane.xlu0 %131
  %v133 = vsel %vm72, %v60, 0.0
  %134 = vadd.xlane.f32.xlu0 %v133
  %v135 = vpop.xlane.xlu0 %134
  %v136 = vsel %vm72, %v61, 0.0
  %137 = vadd.xlane.f32.xlu0 %v136
  %v138 = vpop.xlane.xlu0 %137
  %v139 = vsel %vm72, %v62, 0.0
  %140 = vadd.xlane.f32.xlu0 %v139
  %v141 = vpop.xlane.xlu0 %140
  %v142 = vsel %vm72, %v63, 0.0
  %143 = vadd.xlane.f32.xlu0 %v142
  %v144 = vpop.xlane.xlu0 %143
  %v145 = vsel %vm72, %v64, 0.0
  %146 = vadd.xlane.f32.xlu0 %v145
  %v147 = vpop.xlane.xlu0 %146
  %v148 = vsel %vm72, %v65, 0.0
  %149 = vadd.xlane.f32.xlu0 %v148
  %v150 = vpop.xlane.xlu0 %149
  %v151 = vsel %vm72, %v66, 0.0
  %152 = vadd.xlane.f32.xlu0 %v151
  %v153 = vpop.xlane.xlu0 %152
  %v154 = vsel %vm72, %v67, 0.0
  %155 = vadd.xlane.f32.xlu0 %v154
  %v156 = vpop.xlane.xlu0 %155
  %v157 = vsel %vm72, %v68, 0.0
  %158 = vadd.xlane.f32.xlu0 %v157
  %v159 = vpop.xlane.xlu0 %158
  %v160 = vsel %vm72, %v69, 0.0
  %161 = vadd.xlane.f32.xlu0 %v160
  %v162 = vpop.xlane.xlu0 %161
  %v163 = vsel %vm72, %v70, 0.0
  %164 = vadd.xlane.f32.xlu0 %v163
  %v165 = vpop.xlane.xlu0 %164
  %v166 = vsel %vm72, %v71, 0.0
  %167 = vadd.xlane.f32.xlu0 %v166
  %v168 = vpop.xlane.xlu0 %167
  %v169 = vmax.f32 %v75, 1e-24
  %v170 = vmax.f32 %v78, 1e-24
  %v171 = vmax.f32 %v81, 1e-24
  %v172 = vmax.f32 %v84, 1e-24
  %v173 = vmax.f32 %v87, 1e-24
  %v174 = vmax.f32 %v90, 1e-24
  %v175 = vmax.f32 %v93, 1e-24
  %v176 = vmax.f32 %v96, 1e-24
  %v177 = vmax.f32 %v99, 1e-24
  %v178 = vmax.f32 %v102, 1e-24
  %v179 = vmax.f32 %v105, 1e-24
  %v180 = vmax.f32 %v108, 1e-24
  %v181 = vmax.f32 %v111, 1e-24
  %v182 = vmax.f32 %v114, 1e-24
  %v183 = vmax.f32 %v117, 1e-24
  %v184 = vmax.f32 %v120, 1e-24
  %v185 = vmax.f32 %v123, 1e-24
  %v186 = vmax.f32 %v126, 1e-24
  %v187 = vmax.f32 %v129, 1e-24
  %v188 = vmax.f32 %v132, 1e-24
  %v189 = vmax.f32 %v135, 1e-24
  %v190 = vmax.f32 %v138, 1e-24
  %v191 = vmax.f32 %v141, 1e-24
  %v192 = vmax.f32 %v144, 1e-24
  %v193 = vmax.f32 %v147, 1e-24
  %v194 = vmax.f32 %v150, 1e-24
  %v195 = vmax.f32 %v153, 1e-24
  %v196 = vmax.f32 %v156, 1e-24
  %v197 = vmax.f32 %v159, 1e-24
  %v198 = vmax.f32 %v162, 1e-24
  %v199 = vmax.f32 %v165, 1e-24
  %v200 = vmax.f32 %v168, 1e-24
  %v201 = vrsqrt.pop %v169
  %v202 = vrsqrt.pop %v170
  %v203 = vrsqrt.pop %v171
  %v204 = vrsqrt.pop %v172
  %v205 = vrsqrt.pop %v173
  %v206 = vrsqrt.pop %v174
  %v207 = vrsqrt.pop %v175
  %v208 = vrsqrt.pop %v176
  %v209 = vrsqrt.pop %v177
  %v210 = vrsqrt.pop %v178
  %v211 = vrsqrt.pop %v179
  %v212 = vrsqrt.pop %v180
  %v213 = vrsqrt.pop %v181
  %v214 = vrsqrt.pop %v182
  %v215 = vrsqrt.pop %v183
  %v216 = vrsqrt.pop %v184
  %v217 = vrsqrt.pop %v185
  %v218 = vrsqrt.pop %v186
  %v219 = vrsqrt.pop %v187
  %v220 = vrsqrt.pop %v188
  %v221 = vrsqrt.pop %v189
  %v222 = vrsqrt.pop %v190
  %v223 = vrsqrt.pop %v191
  %v224 = vrsqrt.pop %v192
  %v225 = vrsqrt.pop %v193
  %v226 = vrsqrt.pop %v194
  %v227 = vrsqrt.pop %v195
  %v228 = vrsqrt.pop %v196
  %v229 = vrsqrt.pop %v197
  %v230 = vrsqrt.pop %v198
  %v231 = vrsqrt.pop %v199
  %v232 = vrsqrt.pop %v200
  %v233 = vmul.f32 %v8, %v201
  %v234 = vmul.f32 %v9, %v202
  %v235 = vmul.f32 %v10, %v203
  %v236 = vmul.f32 %v11, %v204
  %v237 = vmul.f32 %v12, %v205
  %v238 = vmul.f32 %v13, %v206
  %v239 = vmul.f32 %v14, %v207
  %v240 = vmul.f32 %v15, %v208
  %v241 = vmul.f32 %v16, %v209
  %v242 = vmul.f32 %v17, %v210
  %v243 = vmul.f32 %v18, %v211
  %v244 = vmul.f32 %v19, %v212
  %v245 = vmul.f32 %v20, %v213
  %v246 = vmul.f32 %v21, %v214
  %v247 = vmul.f32 %v22, %v215
  %v248 = vmul.f32 %v23, %v216
  %v249 = vmul.f32 %v24, %v217
  %v250 = vmul.f32 %v25, %v218
  %v251 = vmul.f32 %v26, %v219
  %v252 = vmul.f32 %v27, %v220
  %v253 = vmul.f32 %v28, %v221
  %v254 = vmul.f32 %v29, %v222
  %v255 = vmul.f32 %v30, %v223
  %v256 = vmul.f32 %v31, %v224
  %v257 = vmul.f32 %v32, %v225
  %v258 = vmul.f32 %v33, %v226
  %v259 = vmul.f32 %v34, %v227
  %v260 = vmul.f32 %v35, %v228
  %v261 = vmul.f32 %v36, %v229
  %v262 = vmul.f32 %v37, %v230
  %v263 = vmul.f32 %v38, %v231
  %v264 = vmul.f32 %v39, %v232
  %v265 = vpack.c.bf16 %v234, %v233
  %v266 = vpack.c.bf16 %v236, %v235
  %v267 = vpack.c.bf16 %v238, %v237
  %v268 = vpack.c.bf16 %v240, %v239
  %v269 = vpack.c.bf16 %v242, %v241
  %v270 = vpack.c.bf16 %v244, %v243
  %v271 = vpack.c.bf16 %v246, %v245
  %v272 = vpack.c.bf16 %v248, %v247
  %v273 = vpack.c.bf16 %v250, %v249
  %v274 = vpack.c.bf16 %v252, %v251
  %v275 = vpack.c.bf16 %v254, %v253
  %v276 = vpack.c.bf16 %v256, %v255
  %v277 = vpack.c.bf16 %v258, %v257
  %v278 = vpack.c.bf16 %v260, %v259
  %v279 = vpack.c.bf16 %v262, %v261
  %v280 = vpack.c.bf16 %v264, %v263
  %v297 = vunpack.c.l.b16 %v265
  %v298 = vunpack.c.h.b16 %v265
  %v299 = vunpack.c.l.b16 %v266
  %v300 = vunpack.c.h.b16 %v266
  %v301 = vunpack.c.l.b16 %v267
  %v302 = vunpack.c.h.b16 %v267
  %v303 = vunpack.c.l.b16 %v268
  %v304 = vunpack.c.h.b16 %v268
  %v305 = vunpack.c.l.b16 %v269
  %v306 = vunpack.c.h.b16 %v269
  %v307 = vunpack.c.l.b16 %v270
  %v308 = vunpack.c.h.b16 %v270
  %v309 = vunpack.c.l.b16 %v271
  %v310 = vunpack.c.h.b16 %v271
  %v311 = vunpack.c.l.b16 %v272
  %v312 = vunpack.c.h.b16 %v272
  %v313 = vunpack.c.l.b16 %v273
  %v314 = vunpack.c.h.b16 %v273
  %v315 = vunpack.c.l.b16 %v274
  %v316 = vunpack.c.h.b16 %v274
  %v317 = vunpack.c.l.b16 %v275
  %v318 = vunpack.c.h.b16 %v275
  %v319 = vunpack.c.l.b16 %v276
  %v320 = vunpack.c.h.b16 %v276
  %v321 = vunpack.c.l.b16 %v277
  %v322 = vunpack.c.h.b16 %v277
  %v323 = vunpack.c.l.b16 %v278
  %v324 = vunpack.c.h.b16 %v278
  %v325 = vunpack.c.l.b16 %v279
  %v326 = vunpack.c.h.b16 %v279
  %v327 = vunpack.c.l.b16 %v280
  %v328 = vunpack.c.h.b16 %v280
  %v329 = vpack.c.b16 %v297, %v297
  %v330 = vpack.c.b16 %v298, %v298
  %v331 = vpack.c.b16 %v299, %v299
  %v332 = vpack.c.b16 %v300, %v300
  %v333 = vpack.c.b16 %v301, %v301
  %v334 = vpack.c.b16 %v302, %v302
  %v335 = vpack.c.b16 %v303, %v303
  %v336 = vpack.c.b16 %v304, %v304
  %v337 = vpack.c.b16 %v305, %v305
  %v338 = vpack.c.b16 %v306, %v306
  %v339 = vpack.c.b16 %v307, %v307
  %v340 = vpack.c.b16 %v308, %v308
  %v341 = vpack.c.b16 %v309, %v309
  %v342 = vpack.c.b16 %v310, %v310
  %v343 = vpack.c.b16 %v311, %v311
  %v344 = vpack.c.b16 %v312, %v312
  %v345 = vpack.c.b16 %v313, %v313
  %v346 = vpack.c.b16 %v314, %v314
  %v347 = vpack.c.b16 %v315, %v315
  %v348 = vpack.c.b16 %v316, %v316
  %v349 = vpack.c.b16 %v317, %v317
  %v350 = vpack.c.b16 %v318, %v318
  %v351 = vpack.c.b16 %v319, %v319
  %v352 = vpack.c.b16 %v320, %v320
  %v353 = vpack.c.b16 %v321, %v321
  %v354 = vpack.c.b16 %v322, %v322
  %v355 = vpack.c.b16 %v323, %v323
  %v356 = vpack.c.b16 %v324, %v324
  %v357 = vpack.c.b16 %v325, %v325
  %v358 = vpack.c.b16 %v326, %v326
  %v359 = vpack.c.b16 %v327, %v327
  %v360 = vpack.c.b16 %v328, %v328
  %vm393 = vcmask 289792
  %394 = vst.msk [vmem:[%s1] sm:$0xf] %vm393, %v329
  %395 = vst.msk [vmem:[%s1 + $0x4] sm:$0xf] %vm393, %v330
  %396 = vst.msk [vmem:[%s1 + $0x8] sm:$0xf] %vm393, %v331
  %397 = vst.msk [vmem:[%s1 + $0xc] sm:$0xf] %vm393, %v332
  %398 = vst.msk [vmem:[%s1 + $0x10] sm:$0xf] %vm393, %v333
  %399 = vst.msk [vmem:[%s1 + $0x14] sm:$0xf] %vm393, %v334
  %400 = vst.msk [vmem:[%s1 + $0x18] sm:$0xf] %vm393, %v335
  %401 = vst.msk [vmem:[%s1 + $0x1c] sm:$0xf] %vm393, %v336
  %402 = vst.msk [vmem:[%s1 + $0x20] sm:$0xf] %vm393, %v337
  %403 = vst.msk [vmem:[%s1 + $0x24] sm:$0xf] %vm393, %v338
  %404 = vst.msk [vmem:[%s1 + $0x28] sm:$0xf] %vm393, %v339
  %405 = vst.msk [vmem:[%s1 + $0x2c] sm:$0xf] %vm393, %v340
  %406 = vst.msk [vmem:[%s1 + $0x30] sm:$0xf] %vm393, %v341
  %407 = vst.msk [vmem:[%s1 + $0x34] sm:$0xf] %vm393, %v342
  %408 = vst.msk [vmem:[%s1 + $0x38] sm:$0xf] %vm393, %v343
  %409 = vst.msk [vmem:[%s1 + $0x3c] sm:$0xf] %vm393, %v344
  %410 = vst.msk [vmem:[%s1 + $0x40] sm:$0xf] %vm393, %v345
  %411 = vst.msk [vmem:[%s1 + $0x44] sm:$0xf] %vm393, %v346
  %412 = vst.msk [vmem:[%s1 + $0x48] sm:$0xf] %vm393, %v347
  %413 = vst.msk [vmem:[%s1 + $0x4c] sm:$0xf] %vm393, %v348
  %414 = vst.msk [vmem:[%s1 + $0x50] sm:$0xf] %vm393, %v349
  %415 = vst.msk [vmem:[%s1 + $0x54] sm:$0xf] %vm393, %v350
  %416 = vst.msk [vmem:[%s1 + $0x58] sm:$0xf] %vm393, %v351
  %417 = vst.msk [vmem:[%s1 + $0x5c] sm:$0xf] %vm393, %v352
  %418 = vst.msk [vmem:[%s1 + $0x60] sm:$0xf] %vm393, %v353
  %419 = vst.msk [vmem:[%s1 + $0x64] sm:$0xf] %vm393, %v354
  %420 = vst.msk [vmem:[%s1 + $0x68] sm:$0xf] %vm393, %v355
  %421 = vst.msk [vmem:[%s1 + $0x6c] sm:$0xf] %vm393, %v356
  %422 = vst.msk [vmem:[%s1 + $0x70] sm:$0xf] %vm393, %v357
  %423 = vst.msk [vmem:[%s1 + $0x74] sm:$0xf] %vm393, %v358
  %424 = vst.msk [vmem:[%s1 + $0x78] sm:$0xf] %vm393, %v359
  %425 = vst.msk [vmem:[%s1 + $0x7c] sm:$0xf] %vm393, %v360
  // Predicated region
  $region6: #{transformer_v5.7} parent=0 // pred_check
    _
  $region7: #{transformer_v5.7} parent=0 // pred_check_branch
    %427 = sbr.rel (0) target = $region9
  $region8: #{transformer_v5.7} parent=0 // pred_region
    _
  $region9: #{transformer_v5.7} parent=0 // pred_fallthru
    _
  // Predicated region
  $region10: #{transformer_v5.7} parent=0 // pred_check
    _
  $region11: #{transformer_v5.7} parent=0 // pred_check_branch
    %429 = sbr.rel (0) target = $region13
  $region12: #{transformer_v5.7} parent=0 // pred_region
    _
  $region13: #{transformer_v5.7} parent=0 // pred_fallthru
    _

// kernel: transformer_v5.8
$region0: #{transformer_v5.8}
  #allocation0 [shape = 'u32[]', space=smem, size = 0x4, offset = 0x4, fixed_abs, tag = 'smem constant byte address 0x4 - core index']
  #allocation1 [shape = 'u32[144,128]{1,0:T(1,128)}', space=vmem, size = 0x12000, scoped, tag = 'internal scratch']
  #allocation2 [shape = 's32[8,256]{1,0:T(8,128)}', space=vmem, size = 0x2000, scoped, tag = 'scratch operand']
  %s0 = inlined_call_operand.vmem [shape: bf16[256,36], index: 0, kind: input, shape index: {}, may-alias: {0,1}]
  %s1 = inlined_call_operand.vmem [shape: bf16[256,36], index: 1, kind: input, shape index: {}, may-alias: {0,1}]
  %s2 = inlined_call_operand.vmem [shape: f32[5,256], index: 2, kind: output, shape index: {0}]
  %s3 = inlined_call_operand.vmem [shape: s32[5,256], index: 3, kind: output, shape index: {1}]
  %4 = xla_tuple %s2, %s3
  %s5 = sld [smem:[#allocation0]]
  $region57: #{transformer_v5.8} parent=0
    _
  %s7 = ssub.s32 1, %s5
  %s8 = scalar_select 0, %s7, %s5
  loop: start=0, step=1, limit=4
  $region2: #{transformer_v5.8} parent=0 // loop_pre_header
    _
  $region3: #{transformer_v5.8} parent=0 // loop_header
    %s10 = sphi 0, %s14
    %p11 = scmp.ge.s32.totalorder %s10, 4
    %s17 = sphi 0, %s29
    %s18 = sphi 0, %s25
    %s19 = sphi 0, %s17
    %s20 = sphi 0, %s18
    %s21 = sphi 0, %s19
    %s22 = sphi 0, %s20
    %s32 = sphi 0, %s34
    %s35 = sphi 0, %s32
    %s36 = sphi 0, %s35
    %s52 = sphi 0, %s36
    %s58 = sphi 0, %s60
    %s61 = sphi 0, %s58
    %s62 = sphi 0, %s61
    %s78 = sphi 0, %s62
    %s84 = sphi 0, %s86
    %s87 = sphi 0, %s84
    %s88 = sphi 0, %s87
    %s104 = sphi 0, %s88
    %s110 = sphi 0, %s112
    %s113 = sphi 0, %s110
    %s114 = sphi 0, %s113
    %s130 = sphi 0, %s114
  $region4: #{transformer_v5.8} parent=0 // loop_header_branch
    %13 = sbr.rel (%p11) target = $region8
  $region5: #{transformer_v5.8} parent=0 // loop_body
    %s15 = ssub.s32 %s10, 1
    %s16 = ssub.s32 %s10, 2
    %s23 = sadd.s32 1, %s18
    %p24 = scmp.ge.s32.totalorder %s23, 2
    %s25 = scalar_select %p24, 0, %s23
    %s26 = sadd.s32 1, %s17
    %s27 = scalar_select %p24, %s26, %s17
    %p28 = scmp.ge.s32.totalorder %s27, 1
    %s29 = scalar_select %p28, 0, %s27
    %s30 = ssub.s32 %s18, %s25
    %p31 = scmp.eq.s32.totalorder %s30, 0
    %s33 = sadd.s32 %s32, 1
    %s34 = scalar_select %p31, %s32, %s33
    %p37 = pneg %p31
    %p38 = scmp.eq.s32.totalorder %s10, 1
    %p39 = por %p37, %p38
    %p40 = scmp.ne.s32.totalorder %s32, %s35
    %p41 = scmp.eq.s32.totalorder %s10, 0
    %p42 = por %p40, %p41
    %p43 = scmp.ne.s32.totalorder %s32, %s35
    %p44 = scmp.eq.s32.totalorder %s15, 1
    %p45 = por %p43, %p44
    %p46 = scmp.ne.s32.totalorder %s35, %s36
    %p47 = scmp.eq.s32.totalorder %s15, 0
    %p48 = por %p46, %p47
    %p49 = scmp.ne.s32.totalorder %s35, %s36
    %p50 = scmp.eq.s32.totalorder %s16, 1
    %p51 = por %p49, %p50
    %p53 = scmp.ne.s32.totalorder %s36, %s52
    %p54 = scmp.eq.s32.totalorder %s16, 0
    %p55 = por %p53, %p54
    %s56 = ssub.s32 %s17, %s29
    %p57 = scmp.eq.s32.totalorder %s56, 0
    %s59 = sadd.s32 %s58, 1
    %s60 = scalar_select %p57, %s58, %s59
    %p63 = pneg %p57
    %p64 = scmp.eq.s32.totalorder %s10, 1
    %p65 = por %p63, %p64
    %p66 = scmp.ne.s32.totalorder %s58, %s61
    %p67 = scmp.eq.s32.totalorder %s10, 0
    %p68 = por %p66, %p67
    %p69 = scmp.ne.s32.totalorder %s58, %s61
    %p70 = scmp.eq.s32.totalorder %s15, 1
    %p71 = por %p69, %p70
    %p72 = scmp.ne.s32.totalorder %s61, %s62
    %p73 = scmp.eq.s32.totalorder %s15, 0
    %p74 = por %p72, %p73
    %p75 = scmp.ne.s32.totalorder %s61, %s62
    %p76 = scmp.eq.s32.totalorder %s16, 1
    %p77 = por %p75, %p76
    %p79 = scmp.ne.s32.totalorder %s62, %s78
    %p80 = scmp.eq.s32.totalorder %s16, 0
    %p81 = por %p79, %p80
    %s82 = ssub.s32 %s17, %s29
    %p83 = scmp.eq.s32.totalorder %s82, 0
    %s85 = sadd.s32 %s84, 1
    %s86 = scalar_select %p83, %s84, %s85
    %p89 = pneg %p83
    %p90 = scmp.eq.s32.totalorder %s10, 1
    %p91 = por %p89, %p90
    %p92 = scmp.ne.s32.totalorder %s84, %s87
    %p93 = scmp.eq.s32.totalorder %s10, 0
    %p94 = por %p92, %p93
    %p95 = scmp.ne.s32.totalorder %s84, %s87
    %p96 = scmp.eq.s32.totalorder %s15, 1
    %p97 = por %p95, %p96
    %p98 = scmp.ne.s32.totalorder %s87, %s88
    %p99 = scmp.eq.s32.totalorder %s15, 0
    %p100 = por %p98, %p99
    %p101 = scmp.ne.s32.totalorder %s87, %s88
    %p102 = scmp.eq.s32.totalorder %s16, 1
    %p103 = por %p101, %p102
    %p105 = scmp.ne.s32.totalorder %s88, %s104
    %p106 = scmp.eq.s32.totalorder %s16, 0
    %p107 = por %p105, %p106
    %s108 = ssub.s32 %s17, %s29
    %p109 = scmp.eq.s32.totalorder %s108, 0
    %s111 = sadd.s32 %s110, 1
    %s112 = scalar_select %p109, %s110, %s111
    %p115 = pneg %p109
    %p116 = scmp.eq.s32.totalorder %s10, 1
    %p117 = por %p115, %p116
    %p118 = scmp.ne.s32.totalorder %s110, %s113
    %p119 = scmp.eq.s32.totalorder %s10, 0
    %p120 = por %p118, %p119
    %p121 = scmp.ne.s32.totalorder %s110, %s113
    %p122 = scmp.eq.s32.totalorder %s15, 1
    %p123 = por %p121, %p122
    %p124 = scmp.ne.s32.totalorder %s113, %s114
    %p125 = scmp.eq.s32.totalorder %s15, 0
    %p126 = por %p124, %p125
    %p127 = scmp.ne.s32.totalorder %s113, %s114
    %p128 = scmp.eq.s32.totalorder %s16, 1
    %p129 = por %p127, %p128
    %p131 = scmp.ne.s32.totalorder %s114, %s130
    %p132 = scmp.eq.s32.totalorder %s16, 0
    %p133 = por %p131, %p132
    %p134 = scmp.le.s32.totalorder 1, %s10
    %p135 = scmp.lt.s32.totalorder %s10, 3
    %p136 = pnand %p134, %p135
    %p137 = pneg %p136
    // Predicated region
    $region9: #{transformer_v5.8} parent=5 // pred_check
      _
    $region10: #{transformer_v5.8} parent=5 // pred_check_branch
      %139 = sbr.rel (%p136) target = $region12
    $region11: #{transformer_v5.8} parent=5 // pred_region
      %s140 = ssub.s32 %s10, 1
      // Predicated region
      $region13: #{transformer_v5.8} parent=11 // pred_check
        %p141 = pneg %p74
      $region14: #{transformer_v5.8} parent=11 // pred_check_branch
        %143 = sbr.rel (%p141) target = $region16
      $region15: #{transformer_v5.8} parent=11 // pred_region
        %s144 = smul.u32 32, %s19
        %p145 = scmp.lt.s32.totalorder %s144, 31
        %s146 = scalar_select %p145, %s144, 31
        %s147 = smul.addr %s146, 4
        %s148 = scalar_lea.vmem %s1, %s147
        %s149 = smul.u32 32, %s19
      $region16: #{transformer_v5.8} parent=11 // pred_fallthru
        _
    $region12: #{transformer_v5.8} parent=5 // pred_fallthru
      _
    %p150 = scmp.lt.s32.totalorder %s10, 2
    // Predicated region
    $region17: #{transformer_v5.8} parent=5 // pred_check
      %p151 = pneg %p150
    $region18: #{transformer_v5.8} parent=5 // pred_check_branch
      %153 = sbr.rel (%p151) target = $region20
    $region19: #{transformer_v5.8} parent=5 // pred_region
      // Predicated region
      $region21: #{transformer_v5.8} parent=19 // pred_check
        %p154 = pneg %p42
      $region22: #{transformer_v5.8} parent=19 // pred_check_branch
        %156 = sbr.rel (%p154) target = $region24
      $region23: #{transformer_v5.8} parent=19 // pred_region
        %s157 = smul.u32 16, %s18
        %p158 = scmp.lt.s32.totalorder %s157, 31
        %s159 = scalar_select %p158, %s157, 31
        %s160 = smul.addr %s159, 4
        %s161 = scalar_lea.vmem %s0, %s160
        %s162 = smul.u32 16, %s18
      $region24: #{transformer_v5.8} parent=19 // pred_fallthru
        _
    $region20: #{transformer_v5.8} parent=5 // pred_fallthru
      _
    %p163 = scmp.le.s32.totalorder 1, %s10
    %p164 = scmp.lt.s32.totalorder %s10, 3
    %p165 = pnand %p163, %p164
    %p166 = pneg %p165
    // Predicated region
    $region25: #{transformer_v5.8} parent=5 // pred_check
      _
    $region26: #{transformer_v5.8} parent=5 // pred_check_branch
      %168 = sbr.rel (%p165) target = $region28
    $region27: #{transformer_v5.8} parent=5 // pred_region
      %s169 = ssub.s32 %s10, 1
      %s170 = smul.u32 16, %s20
      %p171 = scmp.lt.s32.totalorder %s170, 31
      %s172 = scalar_select %p171, %s170, 31
      %s173 = smul.addr %s172, 4
      %s174 = scalar_lea.vmem %s0, %s173
      %p175 = pneg %p48
      %p176 = pneg %p45
      %s177 = smul.u32 32, %s19
      %p178 = scmp.lt.s32.totalorder %s177, 31
      %s179 = scalar_select %p178, %s177, 31
      %s180 = smul.addr %s179, 4
      %s181 = scalar_lea.vmem %s1, %s180
      %p182 = pneg %p74
      %p183 = pneg %p71
      %p184 = pneg %p100
      %p185 = pneg %p97
      %s186 = smul.u32 2, %s19
      %p187 = scmp.lt.s32.totalorder %s186, 1
      %s188 = scalar_select %p187, %s186, 1
      %s189 = smul.addr %s188, 8
      %s190 = scalar_lea.vmem %s2, %s189
      %p191 = pneg %p126
      %p192 = pneg %p123
      %s193 = smul.u32 2, %s19
      %p194 = scmp.lt.s32.totalorder %s193, 1
      %s195 = scalar_select %p194, %s193, 1
      %s196 = smul.addr %s195, 8
      %s197 = scalar_lea.vmem %s3, %s196
      %s198 = smul.u32 16, %s20
      %p199 = scmp.lt.s32.totalorder %s198, 31
      %s200 = scalar_select %p199, %s198, 31
      %s201 = smul.addr %s200, 4
      %s202 = scalar_lea.vmem %s0, %s201
      %s203 = smul.u32 16, %s20
      %s204 = smul.u32 32, %s19
      %p205 = scmp.lt.s32.totalorder %s204, 31
      %s206 = scalar_select %p205, %s204, 31
      %s207 = smul.addr %s206, 4
      %s208 = scalar_lea.vmem %s1, %s207
      %s209 = smul.u32 32, %s19
      %s210 = smul.u32 2, %s19
      %p211 = scmp.lt.s32.totalorder %s210, 1
      %s212 = scalar_select %p211, %s210, 1
      %s213 = smul.addr %s212, 8
      %s214 = scalar_lea.vmem %s2, %s213
      %s215 = smul.u32 2, %s19
      %s216 = smul.u32 2, %s19
      %p217 = scmp.lt.s32.totalorder %s216, 1
      %s218 = scalar_select %p217, %s216, 1
      %s219 = smul.addr %s218, 8
      %s220 = scalar_lea.vmem %s3, %s219
      %s221 = smul.u32 2, %s19
      %p223 = scmp.eq.s32.totalorder %s20, 0
      // Predicated region
      $region29: #{transformer_v5.8} parent=27 // pred_check
        %p224 = pneg %p223
      $region30: #{transformer_v5.8} parent=27 // pred_check_branch
        %226 = sbr.rel (%p224) target = $region32
      $region31: #{transformer_v5.8} parent=27 // pred_region
        %227 = vst [vmem:[#allocation2] sm:$0xff] 2147483648
        %228 = vst [vmem:[#allocation2 + $0x8] sm:$0xff] 2147483648
      $region32: #{transformer_v5.8} parent=27 // pred_fallthru
        _
      %v229 = vld [vmem:[%s202] sm:$0xf]
      %v230 = vld [vmem:[%s202 + $0x4] sm:$0xf]
      %v231 = vld [vmem:[%s202 + $0x8] sm:$0xf]
      %v232 = vld [vmem:[%s202 + $0xc] sm:$0xf]
      %v233 = vld [vmem:[%s202 + $0x10] sm:$0xf]
      %v234 = vld [vmem:[%s202 + $0x14] sm:$0xf]
      %v235 = vld [vmem:[%s202 + $0x18] sm:$0xf]
      %v236 = vld [vmem:[%s202 + $0x1c] sm:$0xf]
      %v237 = vld [vmem:[%s202 + $0x20] sm:$0xf]
      %v238 = vld [vmem:[%s202 + $0x24] sm:$0xf]
      %v239 = vld [vmem:[%s202 + $0x28] sm:$0xf]
      %v240 = vld [vmem:[%s202 + $0x2c] sm:$0xf]
      %v241 = vld [vmem:[%s202 + $0x30] sm:$0xf]
      %v242 = vld [vmem:[%s202 + $0x34] sm:$0xf]
      %v243 = vld [vmem:[%s202 + $0x38] sm:$0xf]
      %v244 = vld [vmem:[%s202 + $0x3c] sm:$0xf]
      %v245 = vld [vmem:[%s208] sm:$0xf]
      %v246 = vld [vmem:[%s208 + $0x4] sm:$0xf]
      %v247 = vld [vmem:[%s208 + $0x8] sm:$0xf]
      %v248 = vld [vmem:[%s208 + $0xc] sm:$0xf]
      %v249 = vld [vmem:[%s208 + $0x10] sm:$0xf]
      %v250 = vld [vmem:[%s208 + $0x14] sm:$0xf]
      %v251 = vld [vmem:[%s208 + $0x18] sm:$0xf]
      %v252 = vld [vmem:[%s208 + $0x1c] sm:$0xf]
      %v253 = vld [vmem:[%s208 + $0x20] sm:$0xf]
      %v254 = vld [vmem:[%s208 + $0x24] sm:$0xf]
      %v255 = vld [vmem:[%s208 + $0x28] sm:$0xf]
      %v256 = vld [vmem:[%s208 + $0x2c] sm:$0xf]
      %v257 = vld [vmem:[%s208 + $0x30] sm:$0xf]
      %v258 = vld [vmem:[%s208 + $0x34] sm:$0xf]
      %v259 = vld [vmem:[%s208 + $0x38] sm:$0xf]
      %v260 = vld [vmem:[%s208 + $0x3c] sm:$0xf]
      %v261 = vld [vmem:[%s208 + $0x40] sm:$0xf]
      %v262 = vld [vmem:[%s208 + $0x44] sm:$0xf]
      %v263 = vld [vmem:[%s208 + $0x48] sm:$0xf]
      %v264 = vld [vmem:[%s208 + $0x4c] sm:$0xf]
      %v265 = vld [vmem:[%s208 + $0x50] sm:$0xf]
      %v266 = vld [vmem:[%s208 + $0x54] sm:$0xf]
      %v267 = vld [vmem:[%s208 + $0x58] sm:$0xf]
      %v268 = vld [vmem:[%s208 + $0x5c] sm:$0xf]
      %v269 = vld [vmem:[%s208 + $0x60] sm:$0xf]
      %v270 = vld [vmem:[%s208 + $0x64] sm:$0xf]
      %v271 = vld [vmem:[%s208 + $0x68] sm:$0xf]
      %v272 = vld [vmem:[%s208 + $0x6c] sm:$0xf]
      %v273 = vld [vmem:[%s208 + $0x70] sm:$0xf]
      %v274 = vld [vmem:[%s208 + $0x74] sm:$0xf]
      %v275 = vld [vmem:[%s208 + $0x78] sm:$0xf]
      %v276 = vld [vmem:[%s208 + $0x7c] sm:$0xf]
      %v293 = vunpack.c.l.b16 %v229
      %v294 = vunpack.c.l.b16 %v230
      %v295 = vunpack.c.l.b16 %v231
      %v296 = vunpack.c.l.b16 %v232
      %v297 = vunpack.c.l.b16 %v233
      %v298 = vunpack.c.l.b16 %v234
      %v299 = vunpack.c.l.b16 %v235
      %v300 = vunpack.c.l.b16 %v236
      %v301 = vunpack.c.l.b16 %v237
      %v302 = vunpack.c.l.b16 %v238
      %v303 = vunpack.c.l.b16 %v239
      %v304 = vunpack.c.l.b16 %v240
      %v305 = vunpack.c.l.b16 %v241
      %v306 = vunpack.c.l.b16 %v242
      %v307 = vunpack.c.l.b16 %v243
      %v308 = vunpack.c.l.b16 %v244
      %v309 = vpack.c.b16 %v294, %v293
      %v310 = vpack.c.b16 %v296, %v295
      %v311 = vpack.c.b16 %v298, %v297
      %v312 = vpack.c.b16 %v300, %v299
      %v313 = vpack.c.b16 %v302, %v301
      %v314 = vpack.c.b16 %v304, %v303
      %v315 = vpack.c.b16 %v306, %v305
      %v316 = vpack.c.b16 %v308, %v307
      %v349 = vunpack.c.l.b16 %v245
      %v350 = vunpack.c.l.b16 %v246
      %v351 = vunpack.c.l.b16 %v247
      %v352 = vunpack.c.l.b16 %v248
      %v353 = vunpack.c.l.b16 %v249
      %v354 = vunpack.c.l.b16 %v250
      %v355 = vunpack.c.l.b16 %v251
      %v356 = vunpack.c.l.b16 %v252
      %v357 = vunpack.c.l.b16 %v253
      %v358 = vunpack.c.l.b16 %v254
      %v359 = vunpack.c.l.b16 %v255
      %v360 = vunpack.c.l.b16 %v256
      %v361 = vunpack.c.l.b16 %v257
      %v362 = vunpack.c.l.b16 %v258
      %v363 = vunpack.c.l.b16 %v259
      %v364 = vunpack.c.l.b16 %v260
      %v365 = vunpack.c.l.b16 %v261
      %v366 = vunpack.c.l.b16 %v262
      %v367 = vunpack.c.l.b16 %v263
      %v368 = vunpack.c.l.b16 %v264
      %v369 = vunpack.c.l.b16 %v265
      %v370 = vunpack.c.l.b16 %v266
      %v371 = vunpack.c.l.b16 %v267
      %v372 = vunpack.c.l.b16 %v268
      %v373 = vunpack.c.l.b16 %v269
      %v374 = vunpack.c.l.b16 %v270
      %v375 = vunpack.c.l.b16 %v271
      %v376 = vunpack.c.l.b16 %v272
      %v377 = vunpack.c.l.b16 %v273
      %v378 = vunpack.c.l.b16 %v274
      %v379 = vunpack.c.l.b16 %v275
      %v380 = vunpack.c.l.b16 %v276
      %v381 = vpack.c.b16 %v350, %v349
      %v382 = vpack.c.b16 %v352, %v351
      %v383 = vpack.c.b16 %v354, %v353
      %v384 = vpack.c.b16 %v356, %v355
      %v385 = vpack.c.b16 %v358, %v357
      %v386 = vpack.c.b16 %v360, %v359
      %v387 = vpack.c.b16 %v362, %v361
      %v388 = vpack.c.b16 %v364, %v363
      %v389 = vpack.c.b16 %v366, %v365
      %v390 = vpack.c.b16 %v368, %v367
      %v391 = vpack.c.b16 %v370, %v369
      %v392 = vpack.c.b16 %v372, %v371
      %v393 = vpack.c.b16 %v374, %v373
      %v394 = vpack.c.b16 %v376, %v375
      %v395 = vpack.c.b16 %v378, %v377
      %v396 = vpack.c.b16 %v380, %v379
      %vm397 = vcmask 293888
      %v399 = vsel %vm397, %v309, 0
      %v402 = vsel %vm397, %v310, 0
      %v405 = vsel %vm397, %v311, 0
      %v408 = vsel %vm397, %v312, 0
      %v411 = vsel %vm397, %v313, 0
      %v414 = vsel %vm397, %v314, 0
      %v417 = vsel %vm397, %v315, 0
      %v420 = vsel %vm397, %v316, 0
      %v423 = vsel %vm397, %v381, 0
      %v426 = vsel %vm397, %v382, 0
      %v429 = vsel %vm397, %v383, 0
      %v432 = vsel %vm397, %v384, 0
      %v435 = vsel %vm397, %v385, 0
      %v438 = vsel %vm397, %v386, 0
      %v441 = vsel %vm397, %v387, 0
      %v444 = vsel %vm397, %v388, 0
      %v447 = vsel %vm397, %v389, 0
      %v450 = vsel %vm397, %v390, 0
      %v453 = vsel %vm397, %v391, 0
      %v456 = vsel %vm397, %v392, 0
      %v459 = vsel %vm397, %v393, 0
      %v462 = vsel %vm397, %v394, 0
      %v465 = vsel %vm397, %v395, 0
      %v468 = vsel %vm397, %v396, 0
      %470 = vmatprep.subr.bf16.mxu0 0
      %471 = vmatpush1.bf16.xpose.msra.mxu0 %v423
      %472 = vmatprep.subr.bf16.mxu0 0
      %473 = vmatpush1.bf16.xpose.msra.mxu0 %v426
      %474 = vmatprep.subr.bf16.mxu0 0
      %475 = vmatpush1.bf16.xpose.msra.mxu0 %v429
      %476 = vmatprep.subr.bf16.mxu0 0
      %477 = vmatpush1.bf16.xpose.msra.mxu0 %v432
      %478 = vmatprep.subr.bf16.mxu0 0
      %479 = vmatpush1.bf16.xpose.msra.mxu0 %v435
      %480 = vmatprep.subr.bf16.mxu0 0
      %481 = vmatpush1.bf16.xpose.msra.mxu0 %v438
      %482 = vmatprep.subr.bf16.mxu0 0
      %483 = vmatpush1.bf16.xpose.msra.mxu0 %v441
      %484 = vmatprep.subr.bf16.mxu0 0
      %485 = vmatpush1.bf16.xpose.msra.mxu0 %v444
      %486 = vmatprep.subr.bf16.mxu0 0
      %487 = vmatpush1.bf16.xpose.msra.mxu0 %v447
      %488 = vmatprep.subr.bf16.mxu0 0
      %489 = vmatpush1.bf16.xpose.msra.mxu0 %v450
      %490 = vmatprep.subr.bf16.mxu0 0
      %491 = vmatpush1.bf16.xpose.msra.mxu0 %v453
      %492 = vmatprep.subr.bf16.mxu0 0
      %493 = vmatpush1.bf16.xpose.msra.mxu0 %v456
      %494 = vmatprep.subr.bf16.mxu0 0
      %495 = vmatpush1.bf16.xpose.msra.mxu0 %v459
      %496 = vmatprep.subr.bf16.mxu0 0
      %497 = vmatpush1.bf16.xpose.msra.mxu0 %v462
      %498 = vmatprep.subr.bf16.mxu0 0
      %499 = vmatpush1.bf16.xpose.msra.mxu0 %v465
      %500 = vmatprep.subr.bf16.mxu0 0
      %501 = vmatpush1.bf16.xpose.msra.mxu0 %v468
      %502 = vmatprep.mubr.bf16.mxu0 0
      %503 = vmatmul.mubr.bf16.gmra.mrb[0].mxu0 %v399
      %v504 = vpop.f32.mrb[0].mxu0
      %v505 = vadd.f32 0.0, %v504
      %v506 = vpop.f32.mrb[0].mxu0
      %v507 = vadd.f32 0.0, %v506
      %v508 = vpop.f32.mrb[0].mxu0
      %v509 = vadd.f32 0.0, %v508
      %v510 = vpop.f32.mrb[0].mxu0
      %v511 = vadd.f32 0.0, %v510
      %512 = vmatprep.mubr.bf16.mxu0 0
      %513 = vmatmul.mubr.bf16.gmra.mrb[0].mxu0 %v402
      %v514 = vpop.f32.mrb[0].mxu0
      %v515 = vadd.f32 0.0, %v514
      %v516 = vpop.f32.mrb[0].mxu0
      %v517 = vadd.f32 0.0, %v516
      %v518 = vpop.f32.mrb[0].mxu0
      %v519 = vadd.f32 0.0, %v518
      %v520 = vpop.f32.mrb[0].mxu0
      %v521 = vadd.f32 0.0, %v520
      %522 = vmatprep.mubr.bf16.mxu0 0
      %523 = vmatmul.mubr.bf16.gmra.mrb[0].mxu0 %v405
      %v524 = vpop.f32.mrb[0].mxu0
      %v525 = vadd.f32 0.0, %v524
      %v526 = vpop.f32.mrb[0].mxu0
      %v527 = vadd.f32 0.0, %v526
      %v528 = vpop.f32.mrb[0].mxu0
      %v529 = vadd.f32 0.0, %v528
      %v530 = vpop.f32.mrb[0].mxu0
      %v531 = vadd.f32 0.0, %v530
      %532 = vmatprep.mubr.bf16.mxu0 0
      %533 = vmatmul.mubr.bf16.gmra.mrb[0].mxu0 %v408
      %v534 = vpop.f32.mrb[0].mxu0
      %v535 = vadd.f32 0.0, %v534
      %v536 = vpop.f32.mrb[0].mxu0
      %v537 = vadd.f32 0.0, %v536
      %v538 = vpop.f32.mrb[0].mxu0
      %v539 = vadd.f32 0.0, %v538
      %v540 = vpop.f32.mrb[0].mxu0
      %v541 = vadd.f32 0.0, %v540
      %542 = vmatprep.mubr.bf16.mxu0 0
      %543 = vmatmul.mubr.bf16.gmra.mrb[0].mxu0 %v411
      %v544 = vpop.f32.mrb[0].mxu0
      %v545 = vadd.f32 0.0, %v544
      %v546 = vpop.f32.mrb[0].mxu0
      %v547 = vadd.f32 0.0, %v546
      %v548 = vpop.f32.mrb[0].mxu0
      %v549 = vadd.f32 0.0, %v548
      %v550 = vpop.f32.mrb[0].mxu0
      %v551 = vadd.f32 0.0, %v550
      %552 = vmatprep.mubr.bf16.mxu0 0
      %553 = vmatmul.mubr.bf16.gmra.mrb[0].mxu0 %v414
      %v554 = vpop.f32.mrb[0].mxu0
      %v555 = vadd.f32 0.0, %v554
      %v556 = vpop.f32.mrb[0].mxu0
      %v557 = vadd.f32 0.0, %v556
      %v558 = vpop.f32.mrb[0].mxu0
      %v559 = vadd.f32 0.0, %v558
      %v560 = vpop.f32.mrb[0].mxu0
      %v561 = vadd.f32 0.0, %v560
      %562 = vmatprep.mubr.bf16.mxu0 0
      %563 = vmatmul.mubr.bf16.gmra.mrb[0].mxu0 %v417
      %v564 = vpop.f32.mrb[0].mxu0
      %v565 = vadd.f32 0.0, %v564
      %v566 = vpop.f32.mrb[0].mxu0
      %v567 = vadd.f32 0.0, %v566
      %v568 = vpop.f32.mrb[0].mxu0
      %v569 = vadd.f32 0.0, %v568
      %v570 = vpop.f32.mrb[0].mxu0
      %v571 = vadd.f32 0.0, %v570
      %572 = vmatprep.mubr.bf16.mxu0 0
      %573 = vmatmul.mubr.bf16.gmra.mrb[0].mxu0 %v420
      %v574 = vpop.f32.mrb[0].mxu0
      %v575 = vadd.f32 0.0, %v574
      %v576 = vpop.f32.mrb[0].mxu0
      %v577 = vadd.f32 0.0, %v576
      %v578 = vpop.f32.mrb[0].mxu0
      %v579 = vadd.f32 0.0, %v578
      %v580 = vpop.f32.mrb[0].mxu0
      %v581 = vadd.f32 0.0, %v580
      %582 = vdwg.mxu0
      %vm615 = vcmp.lt.s32.totalorder %v505, 0
      %vm616 = vcmp.lt.s32.totalorder %v507, 0
      %vm617 = vcmp.lt.s32.totalorder %v509, 0
      %vm618 = vcmp.lt.s32.totalorder %v511, 0
      %vm619 = vcmp.lt.s32.totalorder %v515, 0
      %vm620 = vcmp.lt.s32.totalorder %v517, 0
      %vm621 = vcmp.lt.s32.totalorder %v519, 0
      %vm622 = vcmp.lt.s32.totalorder %v521, 0
      %vm623 = vcmp.lt.s32.totalorder %v525, 0
      %vm624 = vcmp.lt.s32.totalorder %v527, 0
      %vm625 = vcmp.lt.s32.totalorder %v529, 0
      %vm626 = vcmp.lt.s32.totalorder %v531, 0
      %vm627 = vcmp.lt.s32.totalorder %v535, 0
      %vm628 = vcmp.lt.s32.totalorder %v537, 0
      %vm629 = vcmp.lt.s32.totalorder %v539, 0
      %vm630 = vcmp.lt.s32.totalorder %v541, 0
      %vm631 = vcmp.lt.s32.totalorder %v545, 0
      %vm632 = vcmp.lt.s32.totalorder %v547, 0
      %vm633 = vcmp.lt.s32.totalorder %v549, 0
      %vm634 = vcmp.lt.s32.totalorder %v551, 0
      %vm635 = vcmp.lt.s32.totalorder %v555, 0
      %vm636 = vcmp.lt.s32.totalorder %v557, 0
      %vm637 = vcmp.lt.s32.totalorder %v559, 0
      %vm638 = vcmp.lt.s32.totalorder %v561, 0
      %vm639 = vcmp.lt.s32.totalorder %v565, 0
      %vm640 = vcmp.lt.s32.totalorder %v567, 0
      %vm641 = vcmp.lt.s32.totalorder %v569, 0
      %vm642 = vcmp.lt.s32.totalorder %v571, 0
      %vm643 = vcmp.lt.s32.totalorder %v575, 0
      %vm644 = vcmp.lt.s32.totalorder %v577, 0
      %vm645 = vcmp.lt.s32.totalorder %v579, 0
      %vm646 = vcmp.lt.s32.totalorder %v581, 0
      %v647 = vxor.u32 %v505, 2147483647
      %v648 = vxor.u32 %v507, 2147483647
      %v649 = vxor.u32 %v509, 2147483647
      %v650 = vxor.u32 %v511, 2147483647
      %v651 = vxor.u32 %v515, 2147483647
      %v652 = vxor.u32 %v517, 2147483647
      %v653 = vxor.u32 %v519, 2147483647
      %v654 = vxor.u32 %v521, 2147483647
      %v655 = vxor.u32 %v525, 2147483647
      %v656 = vxor.u32 %v527, 2147483647
      %v657 = vxor.u32 %v529, 2147483647
      %v658 = vxor.u32 %v531, 2147483647
      %v659 = vxor.u32 %v535, 2147483647
      %v660 = vxor.u32 %v537, 2147483647
      %v661 = vxor.u32 %v539, 2147483647
      %v662 = vxor.u32 %v541, 2147483647
      %v663 = vxor.u32 %v545, 2147483647
      %v664 = vxor.u32 %v547, 2147483647
      %v665 = vxor.u32 %v549, 2147483647
      %v666 = vxor.u32 %v551, 2147483647
      %v667 = vxor.u32 %v555, 2147483647
      %v668 = vxor.u32 %v557, 2147483647
      %v669 = vxor.u32 %v559, 2147483647
      %v670 = vxor.u32 %v561, 2147483647
      %v671 = vxor.u32 %v565, 2147483647
      %v672 = vxor.u32 %v567, 2147483647
      %v673 = vxor.u32 %v569, 2147483647
      %v674 = vxor.u32 %v571, 2147483647
      %v675 = vxor.u32 %v575, 2147483647
      %v676 = vxor.u32 %v577, 2147483647
      %v677 = vxor.u32 %v579, 2147483647
      %v678 = vxor.u32 %v581, 2147483647
      %v679 = vsel %vm615, %v647, %v505
      %v680 = vsel %vm616, %v648, %v507
      %v681 = vsel %vm617, %v649, %v509
      %v682 = vsel %vm618, %v650, %v511
      %v683 = vsel %vm619, %v651, %v515
      %v684 = vsel %vm620, %v652, %v517
      %v685 = vsel %vm621, %v653, %v519
      %v686 = vsel %vm622, %v654, %v521
      %v687 = vsel %vm623, %v655, %v525
      %v688 = vsel %vm624, %v656, %v527
      %v689 = vsel %vm625, %v657, %v529
      %v690 = vsel %vm626, %v658, %v531
      %v691 = vsel %vm627, %v659, %v535
      %v692 = vsel %vm628, %v660, %v537
      %v693 = vsel %vm629, %v661, %v539
      %v694 = vsel %vm630, %v662, %v541
      %v695 = vsel %vm631, %v663, %v545
      %v696 = vsel %vm632, %v664, %v547
      %v697 = vsel %vm633, %v665, %v549
      %v698 = vsel %vm634, %v666, %v551
      %v699 = vsel %vm635, %v667, %v555
      %v700 = vsel %vm636, %v668, %v557
      %v701 = vsel %vm637, %v669, %v559
      %v702 = vsel %vm638, %v670, %v561
      %v703 = vsel %vm639, %v671, %v565
      %v704 = vsel %vm640, %v672, %v567
      %v705 = vsel %vm641, %v673, %v569
      %v706 = vsel %vm642, %v674, %v571
      %v707 = vsel %vm643, %v675, %v575
      %v708 = vsel %vm644, %v676, %v577
      %v709 = vsel %vm645, %v677, %v579
      %v710 = vsel %vm646, %v678, %v581
      %v711 = vlaneseq
      %v712 = vshrl.u32 %v711, 7
      %v713 = vadd.s32 %v712, 8
      %v714 = vadd.s32 %v712, 16
      %v715 = vadd.s32 %v712, 24
      %v716 = vadd.s32 %v712, 32
      %v717 = vadd.s32 %v712, 40
      %v718 = vadd.s32 %v712, 48
      %v719 = vadd.s32 %v712, 56
      %v720 = vadd.s32 %v712, 64
      %v721 = vadd.s32 %v712, 72
      %v722 = vadd.s32 %v712, 80
      %v723 = vadd.s32 %v712, 88
      %v724 = vadd.s32 %v712, 96
      %v725 = vadd.s32 %v712, 104
      %v726 = vadd.s32 %v712, 112
      %v727 = vadd.s32 %v712, 120
      %s728 = smul.u32 %s20, 128
      %v729 = vstv %s728
      %v730 = vadd.s32 %v712, %v729
      %v731 = vadd.s32 %v713, %v729
      %v732 = vadd.s32 %v714, %v729
      %v733 = vadd.s32 %v715, %v729
      %v734 = vadd.s32 %v716, %v729
      %v735 = vadd.s32 %v717, %v729
      %v736 = vadd.s32 %v718, %v729
      %v737 = vadd.s32 %v719, %v729
      %v738 = vadd.s32 %v720, %v729
      %v739 = vadd.s32 %v721, %v729
      %v740 = vadd.s32 %v722, %v729
      %v741 = vadd.s32 %v723, %v729
      %v742 = vadd.s32 %v724, %v729
      %v743 = vadd.s32 %v725, %v729
      %v744 = vadd.s32 %v726, %v729
      %v745 = vadd.s32 %v727, %v729
      %v746 = vand.u32 %v679, 4294967040
      %v747 = vand.u32 %v680, 4294967040
      %v748 = vand.u32 %v681, 4294967040
      %v749 = vand.u32 %v682, 4294967040
      %v750 = vand.u32 %v683, 4294967040
      %v751 = vand.u32 %v684, 4294967040
      %v752 = vand.u32 %v685, 4294967040
      %v753 = vand.u32 %v686, 4294967040
      %v754 = vand.u32 %v687, 4294967040
      %v755 = vand.u32 %v688, 4294967040
      %v756 = vand.u32 %v689, 4294967040
      %v757 = vand.u32 %v690, 4294967040
      %v758 = vand.u32 %v691, 4294967040
      %v759 = vand.u32 %v692, 4294967040
      %v760 = vand.u32 %v693, 4294967040
      %v761 = vand.u32 %v694, 4294967040
      %v762 = vand.u32 %v695, 4294967040
      %v763 = vand.u32 %v696, 4294967040
      %v764 = vand.u32 %v697, 4294967040
      %v765 = vand.u32 %v698, 4294967040
      %v766 = vand.u32 %v699, 4294967040
      %v767 = vand.u32 %v700, 4294967040
      %v768 = vand.u32 %v701, 4294967040
      %v769 = vand.u32 %v702, 4294967040
      %v770 = vand.u32 %v703, 4294967040
      %v771 = vand.u32 %v704, 4294967040
      %v772 = vand.u32 %v705, 4294967040
      %v773 = vand.u32 %v706, 4294967040
      %v774 = vand.u32 %v707, 4294967040
      %v775 = vand.u32 %v708, 4294967040
      %v776 = vand.u32 %v709, 4294967040
      %v777 = vand.u32 %v710, 4294967040
      %v778 = vsub.s32 255, %v730
      %v779 = vsub.s32 255, %v731
      %v780 = vsub.s32 255, %v732
      %v781 = vsub.s32 255, %v733
      %v782 = vsub.s32 255, %v734
      %v783 = vsub.s32 255, %v735
      %v784 = vsub.s32 255, %v736
      %v785 = vsub.s32 255, %v737
      %v786 = vsub.s32 255, %v738
      %v787 = vsub.s32 255, %v739
      %v788 = vsub.s32 255, %v740
      %v789 = vsub.s32 255, %v741
      %v790 = vsub.s32 255, %v742
      %v791 = vsub.s32 255, %v743
      %v792 = vsub.s32 255, %v744
      %v793 = vsub.s32 255, %v745
      %v794 = vor.u32 %v746, %v778
      %v795 = vor.u32 %v747, %v778
      %v796 = vor.u32 %v748, %v779
      %v797 = vor.u32 %v749, %v779
      %v798 = vor.u32 %v750, %v780
      %v799 = vor.u32 %v751, %v780
      %v800 = vor.u32 %v752, %v781
      %v801 = vor.u32 %v753, %v781
      %v802 = vor.u32 %v754, %v782
      %v803 = vor.u32 %v755, %v782
      %v804 = vor.u32 %v756, %v783
      %v805 = vor.u32 %v757, %v783
      %v806 = vor.u32 %v758, %v784
      %v807 = vor.u32 %v759, %v784
      %v808 = vor.u32 %v760, %v785
      %v809 = vor.u32 %v761, %v785
      %v810 = vor.u32 %v762, %v786
      %v811 = vor.u32 %v763, %v786
      %v812 = vor.u32 %v764, %v787
      %v813 = vor.u32 %v765, %v787
      %v814 = vor.u32 %v766, %v788
      %v815 = vor.u32 %v767, %v788
      %v816 = vor.u32 %v768, %v789
      %v817 = vor.u32 %v769, %v789
      %v818 = vor.u32 %v770, %v790
      %v819 = vor.u32 %v771, %v790
      %v820 = vor.u32 %v772, %v791
      %v821 = vor.u32 %v773, %v791
      %v822 = vor.u32 %v774, %v792
      %v823 = vor.u32 %v775, %v792
      %v824 = vor.u32 %v776, %v793
      %v825 = vor.u32 %v777, %v793
      %v826 = vld [vmem:[#allocation2] sm:$0xff]
      %v827 = vld [vmem:[#allocation2 + $0x8] sm:$0xff]
      %vm828 = vcmp.gt.s32.totalorder %v826, %v796
      %v829 = vsel %vm828, %v826, %v796
      %vm830 = vcmp.gt.s32.totalorder %v794, %v798
      %v831 = vsel %vm830, %v794, %v798
      %vm832 = vcmp.gt.s32.totalorder %v829, %v800
      %v833 = vsel %vm832, %v829, %v800
      %vm834 = vcmp.gt.s32.totalorder %v831, %v802
      %v835 = vsel %vm834, %v831, %v802
      %vm836 = vcmp.gt.s32.totalorder %v833, %v804
      %v837 = vsel %vm836, %v833, %v804
      %vm838 = vcmp.gt.s32.totalorder %v835, %v806
      %v839 = vsel %vm838, %v835, %v806
      %vm840 = vcmp.gt.s32.totalorder %v837, %v808
      %v841 = vsel %vm840, %v837, %v808
      %vm842 = vcmp.gt.s32.totalorder %v839, %v810
      %v843 = vsel %vm842, %v839, %v810
      %vm844 = vcmp.gt.s32.totalorder %v841, %v812
      %v845 = vsel %vm844, %v841, %v812
      %vm846 = vcmp.gt.s32.totalorder %v843, %v814
      %v847 = vsel %vm846, %v843, %v814
      %vm848 = vcmp.gt.s32.totalorder %v845, %v816
      %v849 = vsel %vm848, %v845, %v816
      %vm850 = vcmp.gt.s32.totalorder %v847, %v818
      %v851 = vsel %vm850, %v847, %v818
      %vm852 = vcmp.gt.s32.totalorder %v849, %v820
      %v853 = vsel %vm852, %v849, %v820
      %vm854 = vcmp.gt.s32.totalorder %v851, %v822
      %v855 = vsel %vm854, %v851, %v822
      %vm856 = vcmp.gt.s32.totalorder %v853, %v824
      %v857 = vsel %vm856, %v853, %v824
      %vm858 = vcmp.gt.s32.totalorder %v857, %v855
      %v859 = vsel %vm858, %v857, %v855
      %v860 = vrot.slane %v859, 4
      %vm861 = vcmp.gt.s32.totalorder %v859, %v860
      %v862 = vsel %vm861, %v859, %v860
      %v863 = vrot.slane %v862, 2
      %vm864 = vcmp.gt.s32.totalorder %v862, %v863
      %v865 = vsel %vm864, %v862, %v863
      %v866 = vrot.slane %v865, 1
      %vm867 = vcmp.gt.s32.totalorder %v865, %v866
      %v868 = vsel %vm867, %v865, %v866
      %vm869 = vcmp.gt.s32.totalorder %v827, %v797
      %v870 = vsel %vm869, %v827, %v797
      %vm871 = vcmp.gt.s32.totalorder %v795, %v799
      %v872 = vsel %vm871, %v795, %v799
      %vm873 = vcmp.gt.s32.totalorder %v870, %v801
      %v874 = vsel %vm873, %v870, %v801
      %vm875 = vcmp.gt.s32.totalorder %v872, %v803
      %v876 = vsel %vm875, %v872, %v803
      %vm877 = vcmp.gt.s32.totalorder %v874, %v805
      %v878 = vsel %vm877, %v874, %v805
      %vm879 = vcmp.gt.s32.totalorder %v876, %v807
      %v880 = vsel %vm879, %v876, %v807
      %vm881 = vcmp.gt.s32.totalorder %v878, %v809
      %v882 = vsel %vm881, %v878, %v809
      %vm883 = vcmp.gt.s32.totalorder %v880, %v811
      %v884 = vsel %vm883, %v880, %v811
      %vm885 = vcmp.gt.s32.totalorder %v882, %v813
      %v886 = vsel %vm885, %v882, %v813
      %vm887 = vcmp.gt.s32.totalorder %v884, %v815
      %v888 = vsel %vm887, %v884, %v815
      %vm889 = vcmp.gt.s32.totalorder %v886, %v817
      %v890 = vsel %vm889, %v886, %v817
      %vm891 = vcmp.gt.s32.totalorder %v888, %v819
      %v892 = vsel %vm891, %v888, %v819
      %vm893 = vcmp.gt.s32.totalorder %v890, %v821
      %v894 = vsel %vm893, %v890, %v821
      %vm895 = vcmp.gt.s32.totalorder %v892, %v823
      %v896 = vsel %vm895, %v892, %v823
      %vm897 = vcmp.gt.s32.totalorder %v894, %v825
      %v898 = vsel %vm897, %v894, %v825
      %vm899 = vcmp.gt.s32.totalorder %v898, %v896
      %v900 = vsel %vm899, %v898, %v896
      %v901 = vrot.slane %v900, 4
      %vm902 = vcmp.gt.s32.totalorder %v900, %v901
      %v903 = vsel %vm902, %v900, %v901
      %v904 = vrot.slane %v903, 2
      %vm905 = vcmp.gt.s32.totalorder %v903, %v904
      %v906 = vsel %vm905, %v903, %v904
      %v907 = vrot.slane %v906, 1
      %vm908 = vcmp.gt.s32.totalorder %v906, %v907
      %v909 = vsel %vm908, %v906, %v907
      %vm910 = vcmp.eq.s32.totalorder %v826, %v868
      %vm911 = vcmp.eq.s32.totalorder %v827, %v909
      %vm912 = vcmp.eq.s32.totalorder %v794, %v868
      %vm913 = vcmp.eq.s32.totalorder %v795, %v909
      %vm914 = vcmp.eq.s32.totalorder %v796, %v868
      %vm915 = vcmp.eq.s32.totalorder %v797, %v909
      %vm916 = vcmp.eq.s32.totalorder %v798, %v868
      %vm917 = vcmp.eq.s32.totalorder %v799, %v909
      %vm918 = vcmp.eq.s32.totalorder %v800, %v868
      %vm919 = vcmp.eq.s32.totalorder %v801, %v909
      %vm920 = vcmp.eq.s32.totalorder %v802, %v868
      %vm921 = vcmp.eq.s32.totalorder %v803, %v909
      %vm922 = vcmp.eq.s32.totalorder %v804, %v868
      %vm923 = vcmp.eq.s32.totalorder %v805, %v909
      %vm924 = vcmp.eq.s32.totalorder %v806, %v868
      %vm925 = vcmp.eq.s32.totalorder %v807, %v909
      %vm926 = vcmp.eq.s32.totalorder %v808, %v868
      %vm927 = vcmp.eq.s32.totalorder %v809, %v909
      %vm928 = vcmp.eq.s32.totalorder %v810, %v868
      %vm929 = vcmp.eq.s32.totalorder %v811, %v909
      %vm930 = vcmp.eq.s32.totalorder %v812, %v868
      %vm931 = vcmp.eq.s32.totalorder %v813, %v909
      %vm932 = vcmp.eq.s32.totalorder %v814, %v868
      %vm933 = vcmp.eq.s32.totalorder %v815, %v909
      %vm934 = vcmp.eq.s32.totalorder %v816, %v868
      %vm935 = vcmp.eq.s32.totalorder %v817, %v909
      %vm936 = vcmp.eq.s32.totalorder %v818, %v868
      %vm937 = vcmp.eq.s32.totalorder %v819, %v909
      %vm938 = vcmp.eq.s32.totalorder %v820, %v868
      %vm939 = vcmp.eq.s32.totalorder %v821, %v909
      %vm940 = vcmp.eq.s32.totalorder %v822, %v868
      %vm941 = vcmp.eq.s32.totalorder %v823, %v909
      %vm942 = vcmp.eq.s32.totalorder %v824, %v868
      %vm943 = vcmp.eq.s32.totalorder %v825, %v909
      %v944 = vsel %vm910, 2147483648, %v826
      %v945 = vsel %vm911, 2147483648, %v827
      %v946 = vsel %vm912, 2147483648, %v794
      %v947 = vsel %vm913, 2147483648, %v795
      %v948 = vsel %vm914, 2147483648, %v796
      %v949 = vsel %vm915, 2147483648, %v797
      %v950 = vsel %vm916, 2147483648, %v798
      %v951 = vsel %vm917, 2147483648, %v799
      %v952 = vsel %vm918, 2147483648, %v800
      %v953 = vsel %vm919, 2147483648, %v801
      %v954 = vsel %vm920, 2147483648, %v802
      %v955 = vsel %vm921, 2147483648, %v803
      %v956 = vsel %vm922, 2147483648, %v804
      %v957 = vsel %vm923, 2147483648, %v805
      %v958 = vsel %vm924, 2147483648, %v806
      %v959 = vsel %vm925, 2147483648, %v807
      %v960 = vsel %vm926, 2147483648, %v808
      %v961 = vsel %vm927, 2147483648, %v809
      %v962 = vsel %vm928, 2147483648, %v810
      %v963 = vsel %vm929, 2147483648, %v811
      %v964 = vsel %vm930, 2147483648, %v812
      %v965 = vsel %vm931, 2147483648, %v813
      %v966 = vsel %vm932, 2147483648, %v814
      %v967 = vsel %vm933, 2147483648, %v815
      %v968 = vsel %vm934, 2147483648, %v816
      %v969 = vsel %vm935, 2147483648, %v817
      %v970 = vsel %vm936, 2147483648, %v818
      %v971 = vsel %vm937, 2147483648, %v819
      %v972 = vsel %vm938, 2147483648, %v820
      %v973 = vsel %vm939, 2147483648, %v821
      %v974 = vsel %vm940, 2147483648, %v822
      %v975 = vsel %vm941, 2147483648, %v823
      %v976 = vsel %vm942, 2147483648, %v824
      %v977 = vsel %vm943, 2147483648, %v825
      %vm978 = vcmp.gt.s32.totalorder %v944, %v948
      %v979 = vsel %vm978, %v944, %v948
      %vm980 = vcmp.gt.s32.totalorder %v946, %v950
      %v981 = vsel %vm980, %v946, %v950
      %vm982 = vcmp.gt.s32.totalorder %v979, %v952
      %v983 = vsel %vm982, %v979, %v952
      %vm984 = vcmp.gt.s32.totalorder %v981, %v954
      %v985 = vsel %vm984, %v981, %v954
      %vm986 = vcmp.gt.s32.totalorder %v983, %v956
      %v987 = vsel %vm986, %v983, %v956
      %vm988 = vcmp.gt.s32.totalorder %v985, %v958
      %v989 = vsel %vm988, %v985, %v958
      %vm990 = vcmp.gt.s32.totalorder %v987, %v960
      %v991 = vsel %vm990, %v987, %v960
      %vm992 = vcmp.gt.s32.totalorder %v989, %v962
      %v993 = vsel %vm992, %v989, %v962
      %vm994 = vcmp.gt.s32.totalorder %v991, %v964
      %v995 = vsel %vm994, %v991, %v964
      %vm996 = vcmp.gt.s32.totalorder %v993, %v966
      %v997 = vsel %vm996, %v993, %v966
      %vm998 = vcmp.gt.s32.totalorder %v995, %v968
      %v999 = vsel %vm998, %v995, %v968
      %vm1000 = vcmp.gt.s32.totalorder %v997, %v970
      %v1001 = vsel %vm1000, %v997, %v970
      %vm1002 = vcmp.gt.s32.totalorder %v999, %v972
      %v1003 = vsel %vm1002, %v999, %v972
      %vm1004 = vcmp.gt.s32.totalorder %v1001, %v974
      %v1005 = vsel %vm1004, %v1001, %v974
      %vm1006 = vcmp.gt.s32.totalorder %v1003, %v976
      %v1007 = vsel %vm1006, %v1003, %v976
      %vm1008 = vcmp.gt.s32.totalorder %v1007, %v1005
      %v1009 = vsel %vm1008, %v1007, %v1005
      %v1010 = vrot.slane %v1009, 4
      %vm1011 = vcmp.gt.s32.totalorder %v1009, %v1010
      %v1012 = vsel %vm1011, %v1009, %v1010
      %v1013 = vrot.slane %v1012, 2
      %vm1014 = vcmp.gt.s32.totalorder %v1012, %v1013
      %v1015 = vsel %vm1014, %v1012, %v1013
      %v1016 = vrot.slane %v1015, 1
      %vm1017 = vcmp.gt.s32.totalorder %v1015, %v1016
      %v1018 = vsel %vm1017, %v1015, %v1016
      %vm1019 = vcmp.gt.s32.totalorder %v945, %v949
      %v1020 = vsel %vm1019, %v945, %v949
      %vm1021 = vcmp.gt.s32.totalorder %v947, %v951
      %v1022 = vsel %vm1021, %v947, %v951
      %vm1023 = vcmp.gt.s32.totalorder %v1020, %v953
      %v1024 = vsel %vm1023, %v1020, %v953
      %vm1025 = vcmp.gt.s32.totalorder %v1022, %v955
      %v1026 = vsel %vm1025, %v1022, %v955
      %vm1027 = vcmp.gt.s32.totalorder %v1024, %v957
      %v1028 = vsel %vm1027, %v1024, %v957
      %vm1029 = vcmp.gt.s32.totalorder %v1026, %v959
      %v1030 = vsel %vm1029, %v1026, %v959
      %vm1031 = vcmp.gt.s32.totalorder %v1028, %v961
      %v1032 = vsel %vm1031, %v1028, %v961
      %vm1033 = vcmp.gt.s32.totalorder %v1030, %v963
      %v1034 = vsel %vm1033, %v1030, %v963
      %vm1035 = vcmp.gt.s32.totalorder %v1032, %v965
      %v1036 = vsel %vm1035, %v1032, %v965
      %vm1037 = vcmp.gt.s32.totalorder %v1034, %v967
      %v1038 = vsel %vm1037, %v1034, %v967
      %vm1039 = vcmp.gt.s32.totalorder %v1036, %v969
      %v1040 = vsel %vm1039, %v1036, %v969
      %vm1041 = vcmp.gt.s32.totalorder %v1038, %v971
      %v1042 = vsel %vm1041, %v1038, %v971
      %vm1043 = vcmp.gt.s32.totalorder %v1040, %v973
      %v1044 = vsel %vm1043, %v1040, %v973
      %vm1045 = vcmp.gt.s32.totalorder %v1042, %v975
      %v1046 = vsel %vm1045, %v1042, %v975
      %vm1047 = vcmp.gt.s32.totalorder %v1044, %v977
      %v1048 = vsel %vm1047, %v1044, %v977
      %vm1049 = vcmp.gt.s32.totalorder %v1048, %v1046
      %v1050 = vsel %vm1049, %v1048, %v1046
      %v1051 = vrot.slane %v1050, 4
      %vm1052 = vcmp.gt.s32.totalorder %v1050, %v1051
      %v1053 = vsel %vm1052, %v1050, %v1051
      %v1054 = vrot.slane %v1053, 2
      %vm1055 = vcmp.gt.s32.totalorder %v1053, %v1054
      %v1056 = vsel %vm1055, %v1053, %v1054
      %v1057 = vrot.slane %v1056, 1
      %vm1058 = vcmp.gt.s32.totalorder %v1056, %v1057
      %v1059 = vsel %vm1058, %v1056, %v1057
      %vm1060 = vcmp.eq.s32.totalorder %v944, %v1018
      %vm1061 = vcmp.eq.s32.totalorder %v945, %v1059
      %vm1062 = vcmp.eq.s32.totalorder %v946, %v1018
      %vm1063 = vcmp.eq.s32.totalorder %v947, %v1059
      %vm1064 = vcmp.eq.s32.totalorder %v948, %v1018
      %vm1065 = vcmp.eq.s32.totalorder %v949, %v1059
      %vm1066 = vcmp.eq.s32.totalorder %v950, %v1018
      %vm1067 = vcmp.eq.s32.totalorder %v951, %v1059
      %vm1068 = vcmp.eq.s32.totalorder %v952, %v1018
      %vm1069 = vcmp.eq.s32.totalorder %v953, %v1059
      %vm1070 = vcmp.eq.s32.totalorder %v954, %v1018
      %vm1071 = vcmp.eq.s32.totalorder %v955, %v1059
      %vm1072 = vcmp.eq.s32.totalorder %v956, %v1018
      %vm1073 = vcmp.eq.s32.totalorder %v957, %v1059
      %vm1074 = vcmp.eq.s32.totalorder %v958, %v1018
      %vm1075 = vcmp.eq.s32.totalorder %v959, %v1059
      %vm1076 = vcmp.eq.s32.totalorder %v960, %v1018
      %vm1077 = vcmp.eq.s32.totalorder %v961, %v1059
      %vm1078 = vcmp.eq.s32.totalorder %v962, %v1018
      %vm1079 = vcmp.eq.s32.totalorder %v963, %v1059
      %vm1080 = vcmp.eq.s32.totalorder %v964, %v1018
      %vm1081 = vcmp.eq.s32.totalorder %v965, %v1059
      %vm1082 = vcmp.eq.s32.totalorder %v966, %v1018
      %vm1083 = vcmp.eq.s32.totalorder %v967, %v1059
      %vm1084 = vcmp.eq.s32.totalorder %v968, %v1018
      %vm1085 = vcmp.eq.s32.totalorder %v969, %v1059
      %vm1086 = vcmp.eq.s32.totalorder %v970, %v1018
      %vm1087 = vcmp.eq.s32.totalorder %v971, %v1059
      %vm1088 = vcmp.eq.s32.totalorder %v972, %v1018
      %vm1089 = vcmp.eq.s32.totalorder %v973, %v1059
      %vm1090 = vcmp.eq.s32.totalorder %v974, %v1018
      %vm1091 = vcmp.eq.s32.totalorder %v975, %v1059
      %vm1092 = vcmp.eq.s32.totalorder %v976, %v1018
      %vm1093 = vcmp.eq.s32.totalorder %v977, %v1059
      %v1094 = vsel %vm1060, 2147483648, %v944
      %v1095 = vsel %vm1061, 2147483648, %v945
      %v1096 = vsel %vm1062, 2147483648, %v946
      %v1097 = vsel %vm1063, 2147483648, %v947
      %v1098 = vsel %vm1064, 2147483648, %v948
      %v1099 = vsel %vm1065, 2147483648, %v949
      %v1100 = vsel %vm1066, 2147483648, %v950
      %v1101 = vsel %vm1067, 2147483648, %v951
      %v1102 = vsel %vm1068, 2147483648, %v952
      %v1103 = vsel %vm1069, 2147483648, %v953
      %v1104 = vsel %vm1070, 2147483648, %v954
      %v1105 = vsel %vm1071, 2147483648, %v955
      %v1106 = vsel %vm1072, 2147483648, %v956
      %v1107 = vsel %vm1073, 2147483648, %v957
      %v1108 = vsel %vm1074, 2147483648, %v958
      %v1109 = vsel %vm1075, 2147483648, %v959
      %v1110 = vsel %vm1076, 2147483648, %v960
      %v1111 = vsel %vm1077, 2147483648, %v961
      %v1112 = vsel %vm1078, 2147483648, %v962
      %v1113 = vsel %vm1079, 2147483648, %v963
      %v1114 = vsel %vm1080, 2147483648, %v964
      %v1115 = vsel %vm1081, 2147483648, %v965
      %v1116 = vsel %vm1082, 2147483648, %v966
      %v1117 = vsel %vm1083, 2147483648, %v967
      %v1118 = vsel %vm1084, 2147483648, %v968
      %v1119 = vsel %vm1085, 2147483648, %v969
      %v1120 = vsel %vm1086, 2147483648, %v970
      %v1121 = vsel %vm1087, 2147483648, %v971
      %v1122 = vsel %vm1088, 2147483648, %v972
      %v1123 = vsel %vm1089, 2147483648, %v973
      %v1124 = vsel %vm1090, 2147483648, %v974
      %v1125 = vsel %vm1091, 2147483648, %v975
      %v1126 = vsel %vm1092, 2147483648, %v976
      %v1127 = vsel %vm1093, 2147483648, %v977
      %vm1128 = vcmp.gt.s32.totalorder %v1094, %v1098
      %v1129 = vsel %vm1128, %v1094, %v1098
      %vm1130 = vcmp.gt.s32.totalorder %v1096, %v1100
      %v1131 = vsel %vm1130, %v1096, %v1100
      %vm1132 = vcmp.gt.s32.totalorder %v1129, %v1102
      %v1133 = vsel %vm1132, %v1129, %v1102
      %vm1134 = vcmp.gt.s32.totalorder %v1131, %v1104
      %v1135 = vsel %vm1134, %v1131, %v1104
      %vm1136 = vcmp.gt.s32.totalorder %v1133, %v1106
      %v1137 = vsel %vm1136, %v1133, %v1106
      %vm1138 = vcmp.gt.s32.totalorder %v1135, %v1108
      %v1139 = vsel %vm1138, %v1135, %v1108
      %vm1140 = vcmp.gt.s32.totalorder %v1137, %v1110
      %v1141 = vsel %vm1140, %v1137, %v1110
      %vm1142 = vcmp.gt.s32.totalorder %v1139, %v1112
      %v1143 = vsel %vm1142, %v1139, %v1112
      %vm1144 = vcmp.gt.s32.totalorder %v1141, %v1114
      %v1145 = vsel %vm1144, %v1141, %v1114
      %vm1146 = vcmp.gt.s32.totalorder %v1143, %v1116
      %v1147 = vsel %vm1146, %v1143, %v1116
      %vm1148 = vcmp.gt.s32.totalorder %v1145, %v1118
      %v1149 = vsel %vm1148, %v1145, %v1118
      %vm1150 = vcmp.gt.s32.totalorder %v1147, %v1120
      %v1151 = vsel %vm1150, %v1147, %v1120
      %vm1152 = vcmp.gt.s32.totalorder %v1149, %v1122
      %v1153 = vsel %vm1152, %v1149, %v1122
      %vm1154 = vcmp.gt.s32.totalorder %v1151, %v1124
      %v1155 = vsel %vm1154, %v1151, %v1124
      %vm1156 = vcmp.gt.s32.totalorder %v1153, %v1126
      %v1157 = vsel %vm1156, %v1153, %v1126
      %vm1158 = vcmp.gt.s32.totalorder %v1157, %v1155
      %v1159 = vsel %vm1158, %v1157, %v1155
      %v1160 = vrot.slane %v1159, 4
      %vm1161 = vcmp.gt.s32.totalorder %v1159, %v1160
      %v1162 = vsel %vm1161, %v1159, %v1160
      %v1163 = vrot.slane %v1162, 2
      %vm1164 = vcmp.gt.s32.totalorder %v1162, %v1163
      %v1165 = vsel %vm1164, %v1162, %v1163
      %v1166 = vrot.slane %v1165, 1
      %vm1167 = vcmp.gt.s32.totalorder %v1165, %v1166
      %v1168 = vsel %vm1167, %v1165, %v1166
      %vm1169 = vcmp.gt.s32.totalorder %v1095, %v1099
      %v1170 = vsel %vm1169, %v1095, %v1099
      %vm1171 = vcmp.gt.s32.totalorder %v1097, %v1101
      %v1172 = vsel %vm1171, %v1097, %v1101
      %vm1173 = vcmp.gt.s32.totalorder %v1170, %v1103
      %v1174 = vsel %vm1173, %v1170, %v1103
      %vm1175 = vcmp.gt.s32.totalorder %v1172, %v1105
      %v1176 = vsel %vm1175, %v1172, %v1105
      %vm1177 = vcmp.gt.s32.totalorder %v1174, %v1107
      %v1178 = vsel %vm1177, %v1174, %v1107
      %vm1179 = vcmp.gt.s32.totalorder %v1176, %v1109
      %v1180 = vsel %vm1179, %v1176, %v1109
      %vm1181 = vcmp.gt.s32.totalorder %v1178, %v1111
      %v1182 = vsel %vm1181, %v1178, %v1111
      %vm1183 = vcmp.gt.s32.totalorder %v1180, %v1113
      %v1184 = vsel %vm1183, %v1180, %v1113
      %vm1185 = vcmp.gt.s32.totalorder %v1182, %v1115
      %v1186 = vsel %vm1185, %v1182, %v1115
      %vm1187 = vcmp.gt.s32.totalorder %v1184, %v1117
      %v1188 = vsel %vm1187, %v1184, %v1117
      %vm1189 = vcmp.gt.s32.totalorder %v1186, %v1119
      %v1190 = vsel %vm1189, %v1186, %v1119
      %vm1191 = vcmp.gt.s32.totalorder %v1188, %v1121
      %v1192 = vsel %vm1191, %v1188, %v1121
      %vm1193 = vcmp.gt.s32.totalorder %v1190, %v1123
      %v1194 = vsel %vm1193, %v1190, %v1123
      %vm1195 = vcmp.gt.s32.totalorder %v1192, %v1125
      %v1196 = vsel %vm1195, %v1192, %v1125
      %vm1197 = vcmp.gt.s32.totalorder %v1194, %v1127
      %v1198 = vsel %vm1197, %v1194, %v1127
      %vm1199 = vcmp.gt.s32.totalorder %v1198, %v1196
      %v1200 = vsel %vm1199, %v1198, %v1196
      %v1201 = vrot.slane %v1200, 4
      %vm1202 = vcmp.gt.s32.totalorder %v1200, %v1201
      %v1203 = vsel %vm1202, %v1200, %v1201
      %v1204 = vrot.slane %v1203, 2
      %vm1205 = vcmp.gt.s32.totalorder %v1203, %v1204
      %v1206 = vsel %vm1205, %v1203, %v1204
      %v1207 = vrot.slane %v1206, 1
      %vm1208 = vcmp.gt.s32.totalorder %v1206, %v1207
      %v1209 = vsel %vm1208, %v1206, %v1207
      %vm1210 = vcmp.eq.s32.totalorder %v1094, %v1168
      %vm1211 = vcmp.eq.s32.totalorder %v1095, %v1209
      %vm1212 = vcmp.eq.s32.totalorder %v1096, %v1168
      %vm1213 = vcmp.eq.s32.totalorder %v1097, %v1209
      %vm1214 = vcmp.eq.s32.totalorder %v1098, %v1168
      %vm1215 = vcmp.eq.s32.totalorder %v1099, %v1209
      %vm1216 = vcmp.eq.s32.totalorder %v1100, %v1168
      %vm1217 = vcmp.eq.s32.totalorder %v1101, %v1209
      %vm1218 = vcmp.eq.s32.totalorder %v1102, %v1168
      %vm1219 = vcmp.eq.s32.totalorder %v1103, %v1209
      %vm1220 = vcmp.eq.s32.totalorder %v1104, %v1168
      %vm1221 = vcmp.eq.s32.totalorder %v1105, %v1209
      %vm1222 = vcmp.eq.s32.totalorder %v1106, %v1168
      %vm1223 = vcmp.eq.s32.totalorder %v1107, %v1209
      %vm1224 = vcmp.eq.s32.totalorder %v1108, %v1168
      %vm1225 = vcmp.eq.s32.totalorder %v1109, %v1209
      %vm1226 = vcmp.eq.s32.totalorder %v1110, %v1168
      %vm1227 = vcmp.eq.s32.totalorder %v1111, %v1209
      %vm1228 = vcmp.eq.s32.totalorder %v1112, %v1168
      %vm1229 = vcmp.eq.s32.totalorder %v1113, %v1209
      %vm1230 = vcmp.eq.s32.totalorder %v1114, %v1168
      %vm1231 = vcmp.eq.s32.totalorder %v1115, %v1209
      %vm1232 = vcmp.eq.s32.totalorder %v1116, %v1168
      %vm1233 = vcmp.eq.s32.totalorder %v1117, %v1209
      %vm1234 = vcmp.eq.s32.totalorder %v1118, %v1168
      %vm1235 = vcmp.eq.s32.totalorder %v1119, %v1209
      %vm1236 = vcmp.eq.s32.totalorder %v1120, %v1168
      %vm1237 = vcmp.eq.s32.totalorder %v1121, %v1209
      %vm1238 = vcmp.eq.s32.totalorder %v1122, %v1168
      %vm1239 = vcmp.eq.s32.totalorder %v1123, %v1209
      %vm1240 = vcmp.eq.s32.totalorder %v1124, %v1168
      %vm1241 = vcmp.eq.s32.totalorder %v1125, %v1209
      %vm1242 = vcmp.eq.s32.totalorder %v1126, %v1168
      %vm1243 = vcmp.eq.s32.totalorder %v1127, %v1209
      %v1244 = vsel %vm1210, 2147483648, %v1094
      %v1245 = vsel %vm1211, 2147483648, %v1095
      %v1246 = vsel %vm1212, 2147483648, %v1096
      %v1247 = vsel %vm1213, 2147483648, %v1097
      %v1248 = vsel %vm1214, 2147483648, %v1098
      %v1249 = vsel %vm1215, 2147483648, %v1099
      %v1250 = vsel %vm1216, 2147483648, %v1100
      %v1251 = vsel %vm1217, 2147483648, %v1101
      %v1252 = vsel %vm1218, 2147483648, %v1102
      %v1253 = vsel %vm1219, 2147483648, %v1103
      %v1254 = vsel %vm1220, 2147483648, %v1104
      %v1255 = vsel %vm1221, 2147483648, %v1105
      %v1256 = vsel %vm1222, 2147483648, %v1106
      %v1257 = vsel %vm1223, 2147483648, %v1107
      %v1258 = vsel %vm1224, 2147483648, %v1108
      %v1259 = vsel %vm1225, 2147483648, %v1109
      %v1260 = vsel %vm1226, 2147483648, %v1110
      %v1261 = vsel %vm1227, 2147483648, %v1111
      %v1262 = vsel %vm1228, 2147483648, %v1112
      %v1263 = vsel %vm1229, 2147483648, %v1113
      %v1264 = vsel %vm1230, 2147483648, %v1114
      %v1265 = vsel %vm1231, 2147483648, %v1115
      %v1266 = vsel %vm1232, 2147483648, %v1116
      %v1267 = vsel %vm1233, 2147483648, %v1117
      %v1268 = vsel %vm1234, 2147483648, %v1118
      %v1269 = vsel %vm1235, 2147483648, %v1119
      %v1270 = vsel %vm1236, 2147483648, %v1120
      %v1271 = vsel %vm1237, 2147483648, %v1121
      %v1272 = vsel %vm1238, 2147483648, %v1122
      %v1273 = vsel %vm1239, 2147483648, %v1123
      %v1274 = vsel %vm1240, 2147483648, %v1124
      %v1275 = vsel %vm1241, 2147483648, %v1125
      %v1276 = vsel %vm1242, 2147483648, %v1126
      %v1277 = vsel %vm1243, 2147483648, %v1127
      %vm1278 = vcmp.gt.s32.totalorder %v1244, %v1248
      %v1279 = vsel %vm1278, %v1244, %v1248
      %vm1280 = vcmp.gt.s32.totalorder %v1246, %v1250
      %v1281 = vsel %vm1280, %v1246, %v1250
      %vm1282 = vcmp.gt.s32.totalorder %v1279, %v1252
      %v1283 = vsel %vm1282, %v1279, %v1252
      %vm1284 = vcmp.gt.s32.totalorder %v1281, %v1254
      %v1285 = vsel %vm1284, %v1281, %v1254
      %vm1286 = vcmp.gt.s32.totalorder %v1283, %v1256
      %v1287 = vsel %vm1286, %v1283, %v1256
      %vm1288 = vcmp.gt.s32.totalorder %v1285, %v1258
      %v1289 = vsel %vm1288, %v1285, %v1258
      %vm1290 = vcmp.gt.s32.totalorder %v1287, %v1260
      %v1291 = vsel %vm1290, %v1287, %v1260
      %vm1292 = vcmp.gt.s32.totalorder %v1289, %v1262
      %v1293 = vsel %vm1292, %v1289, %v1262
      %vm1294 = vcmp.gt.s32.totalorder %v1291, %v1264
      %v1295 = vsel %vm1294, %v1291, %v1264
      %vm1296 = vcmp.gt.s32.totalorder %v1293, %v1266
      %v1297 = vsel %vm1296, %v1293, %v1266
      %vm1298 = vcmp.gt.s32.totalorder %v1295, %v1268
      %v1299 = vsel %vm1298, %v1295, %v1268
      %vm1300 = vcmp.gt.s32.totalorder %v1297, %v1270
      %v1301 = vsel %vm1300, %v1297, %v1270
      %vm1302 = vcmp.gt.s32.totalorder %v1299, %v1272
      %v1303 = vsel %vm1302, %v1299, %v1272
      %vm1304 = vcmp.gt.s32.totalorder %v1301, %v1274
      %v1305 = vsel %vm1304, %v1301, %v1274
      %vm1306 = vcmp.gt.s32.totalorder %v1303, %v1276
      %v1307 = vsel %vm1306, %v1303, %v1276
      %vm1308 = vcmp.gt.s32.totalorder %v1307, %v1305
      %v1309 = vsel %vm1308, %v1307, %v1305
      %v1310 = vrot.slane %v1309, 4
      %vm1311 = vcmp.gt.s32.totalorder %v1309, %v1310
      %v1312 = vsel %vm1311, %v1309, %v1310
      %v1313 = vrot.slane %v1312, 2
      %vm1314 = vcmp.gt.s32.totalorder %v1312, %v1313
      %v1315 = vsel %vm1314, %v1312, %v1313
      %v1316 = vrot.slane %v1315, 1
      %vm1317 = vcmp.gt.s32.totalorder %v1315, %v1316
      %v1318 = vsel %vm1317, %v1315, %v1316
      %vm1319 = vcmp.gt.s32.totalorder %v1245, %v1249
      %v1320 = vsel %vm1319, %v1245, %v1249
      %vm1321 = vcmp.gt.s32.totalorder %v1247, %v1251
      %v1322 = vsel %vm1321, %v1247, %v1251
      %vm1323 = vcmp.gt.s32.totalorder %v1320, %v1253
      %v1324 = vsel %vm1323, %v1320, %v1253
      %vm1325 = vcmp.gt.s32.totalorder %v1322, %v1255
      %v1326 = vsel %vm1325, %v1322, %v1255
      %vm1327 = vcmp.gt.s32.totalorder %v1324, %v1257
      %v1328 = vsel %vm1327, %v1324, %v1257
      %vm1329 = vcmp.gt.s32.totalorder %v1326, %v1259
      %v1330 = vsel %vm1329, %v1326, %v1259
      %vm1331 = vcmp.gt.s32.totalorder %v1328, %v1261
      %v1332 = vsel %vm1331, %v1328, %v1261
      %vm1333 = vcmp.gt.s32.totalorder %v1330, %v1263
      %v1334 = vsel %vm1333, %v1330, %v1263
      %vm1335 = vcmp.gt.s32.totalorder %v1332, %v1265
      %v1336 = vsel %vm1335, %v1332, %v1265
      %vm1337 = vcmp.gt.s32.totalorder %v1334, %v1267
      %v1338 = vsel %vm1337, %v1334, %v1267
      %vm1339 = vcmp.gt.s32.totalorder %v1336, %v1269
      %v1340 = vsel %vm1339, %v1336, %v1269
      %vm1341 = vcmp.gt.s32.totalorder %v1338, %v1271
      %v1342 = vsel %vm1341, %v1338, %v1271
      %vm1343 = vcmp.gt.s32.totalorder %v1340, %v1273
      %v1344 = vsel %vm1343, %v1340, %v1273
      %vm1345 = vcmp.gt.s32.totalorder %v1342, %v1275
      %v1346 = vsel %vm1345, %v1342, %v1275
      %vm1347 = vcmp.gt.s32.totalorder %v1344, %v1277
      %v1348 = vsel %vm1347, %v1344, %v1277
      %vm1349 = vcmp.gt.s32.totalorder %v1348, %v1346
      %v1350 = vsel %vm1349, %v1348, %v1346
      %v1351 = vrot.slane %v1350, 4
      %vm1352 = vcmp.gt.s32.totalorder %v1350, %v1351
      %v1353 = vsel %vm1352, %v1350, %v1351
      %v1354 = vrot.slane %v1353, 2
      %vm1355 = vcmp.gt.s32.totalorder %v1353, %v1354
      %v1356 = vsel %vm1355, %v1353, %v1354
      %v1357 = vrot.slane %v1356, 1
      %vm1358 = vcmp.gt.s32.totalorder %v1356, %v1357
      %v1359 = vsel %vm1358, %v1356, %v1357
      %vm1360 = vcmp.eq.s32.totalorder %v1244, %v1318
      %vm1361 = vcmp.eq.s32.totalorder %v1245, %v1359
      %vm1362 = vcmp.eq.s32.totalorder %v1246, %v1318
      %vm1363 = vcmp.eq.s32.totalorder %v1247, %v1359
      %vm1364 = vcmp.eq.s32.totalorder %v1248, %v1318
      %vm1365 = vcmp.eq.s32.totalorder %v1249, %v1359
      %vm1366 = vcmp.eq.s32.totalorder %v1250, %v1318
      %vm1367 = vcmp.eq.s32.totalorder %v1251, %v1359
      %vm1368 = vcmp.eq.s32.totalorder %v1252, %v1318
      %vm1369 = vcmp.eq.s32.totalorder %v1253, %v1359
      %vm1370 = vcmp.eq.s32.totalorder %v1254, %v1318
      %vm1371 = vcmp.eq.s32.totalorder %v1255, %v1359
      %vm1372 = vcmp.eq.s32.totalorder %v1256, %v1318
      %vm1373 = vcmp.eq.s32.totalorder %v1257, %v1359
      %vm1374 = vcmp.eq.s32.totalorder %v1258, %v1318
      %vm1375 = vcmp.eq.s32.totalorder %v1259, %v1359
      %vm1376 = vcmp.eq.s32.totalorder %v1260, %v1318
      %vm1377 = vcmp.eq.s32.totalorder %v1261, %v1359
      %vm1378 = vcmp.eq.s32.totalorder %v1262, %v1318
      %vm1379 = vcmp.eq.s32.totalorder %v1263, %v1359
      %vm1380 = vcmp.eq.s32.totalorder %v1264, %v1318
      %vm1381 = vcmp.eq.s32.totalorder %v1265, %v1359
      %vm1382 = vcmp.eq.s32.totalorder %v1266, %v1318
      %vm1383 = vcmp.eq.s32.totalorder %v1267, %v1359
      %vm1384 = vcmp.eq.s32.totalorder %v1268, %v1318
      %vm1385 = vcmp.eq.s32.totalorder %v1269, %v1359
      %vm1386 = vcmp.eq.s32.totalorder %v1270, %v1318
      %vm1387 = vcmp.eq.s32.totalorder %v1271, %v1359
      %vm1388 = vcmp.eq.s32.totalorder %v1272, %v1318
      %vm1389 = vcmp.eq.s32.totalorder %v1273, %v1359
      %vm1390 = vcmp.eq.s32.totalorder %v1274, %v1318
      %vm1391 = vcmp.eq.s32.totalorder %v1275, %v1359
      %vm1392 = vcmp.eq.s32.totalorder %v1276, %v1318
      %vm1393 = vcmp.eq.s32.totalorder %v1277, %v1359
      %v1394 = vsel %vm1360, 2147483648, %v1244
      %v1395 = vsel %vm1361, 2147483648, %v1245
      %v1396 = vsel %vm1362, 2147483648, %v1246
      %v1397 = vsel %vm1363, 2147483648, %v1247
      %v1398 = vsel %vm1364, 2147483648, %v1248
      %v1399 = vsel %vm1365, 2147483648, %v1249
      %v1400 = vsel %vm1366, 2147483648, %v1250
      %v1401 = vsel %vm1367, 2147483648, %v1251
      %v1402 = vsel %vm1368, 2147483648, %v1252
      %v1403 = vsel %vm1369, 2147483648, %v1253
      %v1404 = vsel %vm1370, 2147483648, %v1254
      %v1405 = vsel %vm1371, 2147483648, %v1255
      %v1406 = vsel %vm1372, 2147483648, %v1256
      %v1407 = vsel %vm1373, 2147483648, %v1257
      %v1408 = vsel %vm1374, 2147483648, %v1258
      %v1409 = vsel %vm1375, 2147483648, %v1259
      %v1410 = vsel %vm1376, 2147483648, %v1260
      %v1411 = vsel %vm1377, 2147483648, %v1261
      %v1412 = vsel %vm1378, 2147483648, %v1262
      %v1413 = vsel %vm1379, 2147483648, %v1263
      %v1414 = vsel %vm1380, 2147483648, %v1264
      %v1415 = vsel %vm1381, 2147483648, %v1265
      %v1416 = vsel %vm1382, 2147483648, %v1266
      %v1417 = vsel %vm1383, 2147483648, %v1267
      %v1418 = vsel %vm1384, 2147483648, %v1268
      %v1419 = vsel %vm1385, 2147483648, %v1269
      %v1420 = vsel %vm1386, 2147483648, %v1270
      %v1421 = vsel %vm1387, 2147483648, %v1271
      %v1422 = vsel %vm1388, 2147483648, %v1272
      %v1423 = vsel %vm1389, 2147483648, %v1273
      %v1424 = vsel %vm1390, 2147483648, %v1274
      %v1425 = vsel %vm1391, 2147483648, %v1275
      %v1426 = vsel %vm1392, 2147483648, %v1276
      %v1427 = vsel %vm1393, 2147483648, %v1277
      %vm1428 = vcmp.gt.s32.totalorder %v1394, %v1398
      %v1429 = vsel %vm1428, %v1394, %v1398
      %vm1430 = vcmp.gt.s32.totalorder %v1396, %v1400
      %v1431 = vsel %vm1430, %v1396, %v1400
      %vm1432 = vcmp.gt.s32.totalorder %v1429, %v1402
      %v1433 = vsel %vm1432, %v1429, %v1402
      %vm1434 = vcmp.gt.s32.totalorder %v1431, %v1404
      %v1435 = vsel %vm1434, %v1431, %v1404
      %vm1436 = vcmp.gt.s32.totalorder %v1433, %v1406
      %v1437 = vsel %vm1436, %v1433, %v1406
      %vm1438 = vcmp.gt.s32.totalorder %v1435, %v1408
      %v1439 = vsel %vm1438, %v1435, %v1408
      %vm1440 = vcmp.gt.s32.totalorder %v1437, %v1410
      %v1441 = vsel %vm1440, %v1437, %v1410
      %vm1442 = vcmp.gt.s32.totalorder %v1439, %v1412
      %v1443 = vsel %vm1442, %v1439, %v1412
      %vm1444 = vcmp.gt.s32.totalorder %v1441, %v1414
      %v1445 = vsel %vm1444, %v1441, %v1414
      %vm1446 = vcmp.gt.s32.totalorder %v1443, %v1416
      %v1447 = vsel %vm1446, %v1443, %v1416
      %vm1448 = vcmp.gt.s32.totalorder %v1445, %v1418
      %v1449 = vsel %vm1448, %v1445, %v1418
      %vm1450 = vcmp.gt.s32.totalorder %v1447, %v1420
      %v1451 = vsel %vm1450, %v1447, %v1420
      %vm1452 = vcmp.gt.s32.totalorder %v1449, %v1422
      %v1453 = vsel %vm1452, %v1449, %v1422
      %vm1454 = vcmp.gt.s32.totalorder %v1451, %v1424
      %v1455 = vsel %vm1454, %v1451, %v1424
      %vm1456 = vcmp.gt.s32.totalorder %v1453, %v1426
      %v1457 = vsel %vm1456, %v1453, %v1426
      %vm1458 = vcmp.gt.s32.totalorder %v1457, %v1455
      %v1459 = vsel %vm1458, %v1457, %v1455
      %v1460 = vrot.slane %v1459, 4
      %vm1461 = vcmp.gt.s32.totalorder %v1459, %v1460
      %v1462 = vsel %vm1461, %v1459, %v1460
      %v1463 = vrot.slane %v1462, 2
      %vm1464 = vcmp.gt.s32.totalorder %v1462, %v1463
      %v1465 = vsel %vm1464, %v1462, %v1463
      %v1466 = vrot.slane %v1465, 1
      %vm1467 = vcmp.gt.s32.totalorder %v1465, %v1466
      %v1468 = vsel %vm1467, %v1465, %v1466
      %vm1469 = vcmp.gt.s32.totalorder %v1395, %v1399
      %v1470 = vsel %vm1469, %v1395, %v1399
      %vm1471 = vcmp.gt.s32.totalorder %v1397, %v1401
      %v1472 = vsel %vm1471, %v1397, %v1401
      %vm1473 = vcmp.gt.s32.totalorder %v1470, %v1403
      %v1474 = vsel %vm1473, %v1470, %v1403
      %vm1475 = vcmp.gt.s32.totalorder %v1472, %v1405
      %v1476 = vsel %vm1475, %v1472, %v1405
      %vm1477 = vcmp.gt.s32.totalorder %v1474, %v1407
      %v1478 = vsel %vm1477, %v1474, %v1407
      %vm1479 = vcmp.gt.s32.totalorder %v1476, %v1409
      %v1480 = vsel %vm1479, %v1476, %v1409
      %vm1481 = vcmp.gt.s32.totalorder %v1478, %v1411
      %v1482 = vsel %vm1481, %v1478, %v1411
      %vm1483 = vcmp.gt.s32.totalorder %v1480, %v1413
      %v1484 = vsel %vm1483, %v1480, %v1413
      %vm1485 = vcmp.gt.s32.totalorder %v1482, %v1415
      %v1486 = vsel %vm1485, %v1482, %v1415
      %vm1487 = vcmp.gt.s32.totalorder %v1484, %v1417
      %v1488 = vsel %vm1487, %v1484, %v1417
      %vm1489 = vcmp.gt.s32.totalorder %v1486, %v1419
      %v1490 = vsel %vm1489, %v1486, %v1419
      %vm1491 = vcmp.gt.s32.totalorder %v1488, %v1421
      %v1492 = vsel %vm1491, %v1488, %v1421
      %vm1493 = vcmp.gt.s32.totalorder %v1490, %v1423
      %v1494 = vsel %vm1493, %v1490, %v1423
      %vm1495 = vcmp.gt.s32.totalorder %v1492, %v1425
      %v1496 = vsel %vm1495, %v1492, %v1425
      %vm1497 = vcmp.gt.s32.totalorder %v1494, %v1427
      %v1498 = vsel %vm1497, %v1494, %v1427
      %vm1499 = vcmp.gt.s32.totalorder %v1498, %v1496
      %v1500 = vsel %vm1499, %v1498, %v1496
      %v1501 = vrot.slane %v1500, 4
      %vm1502 = vcmp.gt.s32.totalorder %v1500, %v1501
      %v1503 = vsel %vm1502, %v1500, %v1501
      %v1504 = vrot.slane %v1503, 2
      %vm1505 = vcmp.gt.s32.totalorder %v1503, %v1504
      %v1506 = vsel %vm1505, %v1503, %v1504
      %v1507 = vrot.slane %v1506, 1
      %vm1508 = vcmp.gt.s32.totalorder %v1506, %v1507
      %v1509 = vsel %vm1508, %v1506, %v1507
      %vm1510 = vcmask 1040384
      %v1511 = vsel %vm1510, %v868, %v1018
      %v1512 = vsel %vm1510, %v909, %v1059
      %vm1513 = vcmask 1041408
      %v1514 = vsel %vm1513, %v1511, %v1168
      %v1515 = vsel %vm1513, %v1512, %v1209
      %vm1516 = vcmask 1042432
      %v1517 = vsel %vm1516, %v1514, %v1318
      %v1518 = vsel %vm1516, %v1515, %v1359
      %vm1519 = vcmask 1043456
      %v1520 = vsel %vm1519, %v1517, %v1468
      %v1521 = vsel %vm1519, %v1518, %v1509
      %1522 = vst [vmem:[#allocation2] sm:$0x1f] %v1520
      %1523 = vst [vmem:[#allocation2 + $0x8] sm:$0x1f] %v1521
      %p1524 = scmp.eq.s32.totalorder %s20, 1
      // Predicated region
      $region33: #{transformer_v5.8} parent=27 // pred_check
        %p1525 = pneg %p1524
      $region34: #{transformer_v5.8} parent=27 // pred_check_branch
        %1527 = sbr.rel (%p1525) target = $region36
      $region35: #{transformer_v5.8} parent=27 // pred_region
        %v1528 = vld [vmem:[#allocation2] sm:$0x1f]
        %v1529 = vld [vmem:[#allocation2 + $0x8] sm:$0x1f]
        %v1530 = vand.u32 %v1528, 255
        %v1531 = vand.u32 %v1529, 255
        %v1532 = vsub.s32 255, %v1530
        %v1533 = vsub.s32 255, %v1531
        %1534 = vst [vmem:[%s220] sm:$0x1f] %v1532
        %1535 = vst [vmem:[%s220 + $0x8] sm:$0x1f] %v1533
        %v1536 = vand.u32 %v1528, 4294967040
        %v1537 = vand.u32 %v1529, 4294967040
        %vm1538 = vcmp.lt.s32.totalorder %v1536, 0
        %vm1539 = vcmp.lt.s32.totalorder %v1537, 0
        %v1540 = vxor.u32 %v1536, 2147483647
        %v1541 = vxor.u32 %v1537, 2147483647
        %v1542 = vsel %vm1538, %v1540, %v1536
        %v1543 = vsel %vm1539, %v1541, %v1537
        %1546 = vst [vmem:[%s214] sm:$0x1f] %v1542
        %1547 = vst [vmem:[%s214 + $0x8] sm:$0x1f] %v1543
      $region36: #{transformer_v5.8} parent=27 // pred_fallthru
        _
      %s1548 = smul.u32 2, %s19
      %p1549 = scmp.lt.s32.totalorder %s1548, 1
      %s1550 = scalar_select %p1549, %s1548, 1
      %s1551 = smul.addr %s1550, 8
      %s1552 = scalar_lea.vmem %s2, %s1551
      %s1553 = smul.u32 2, %s19
      %p1554 = scmp.lt.s32.totalorder %s1553, 1
      %s1555 = scalar_select %p1554, %s1553, 1
      %s1556 = smul.addr %s1555, 8
      %s1557 = scalar_lea.vmem %s3, %s1556
      // Predicated region
      $region37: #{transformer_v5.8} parent=27 // pred_check
        %p1558 = pneg %p97
      $region38: #{transformer_v5.8} parent=27 // pred_check_branch
        %1560 = sbr.rel (%p1558) target = $region40
      $region39: #{transformer_v5.8} parent=27 // pred_region
        %s1561 = smul.u32 2, %s19
      $region40: #{transformer_v5.8} parent=27 // pred_fallthru
        _
      // Predicated region
      $region41: #{transformer_v5.8} parent=27 // pred_check
        %p1562 = pneg %p123
      $region42: #{transformer_v5.8} parent=27 // pred_check_branch
        %1564 = sbr.rel (%p1562) target = $region44
      $region43: #{transformer_v5.8} parent=27 // pred_region
        %s1565 = smul.u32 2, %s19
      $region44: #{transformer_v5.8} parent=27 // pred_fallthru
        _
      // Predicated region
      $region45: #{transformer_v5.8} parent=27 // pred_check
        %p1566 = pneg %p97
      $region46: #{transformer_v5.8} parent=27 // pred_check_branch
        %1568 = sbr.rel (%p1566) target = $region48
      $region47: #{transformer_v5.8} parent=27 // pred_region
        %s1569 = smul.u32 2, %s19
        %p1570 = scmp.lt.s32.totalorder %s1569, 1
        %s1571 = scalar_select %p1570, %s1569, 1
        %s1572 = smul.addr %s1571, 8
        %s1573 = scalar_lea.vmem %s2, %s1572
      $region48: #{transformer_v5.8} parent=27 // pred_fallthru
        _
      // Predicated region
      $region49: #{transformer_v5.8} parent=27 // pred_check
        %p1574 = pneg %p123
      $region50: #{transformer_v5.8} parent=27 // pred_check_branch
        %1576 = sbr.rel (%p1574) target = $region52
      $region51: #{transformer_v5.8} parent=27 // pred_region
        %s1577 = smul.u32 2, %s19
        %p1578 = scmp.lt.s32.totalorder %s1577, 1
        %s1579 = scalar_select %p1578, %s1577, 1
        %s1580 = smul.addr %s1579, 8
        %s1581 = scalar_lea.vmem %s3, %s1580
      $region52: #{transformer_v5.8} parent=27 // pred_fallthru
        _
    $region28: #{transformer_v5.8} parent=5 // pred_fallthru
      _
    %p1582 = scmp.le.s32.totalorder 2, %s10
    // Predicated region
    $region53: #{transformer_v5.8} parent=5 // pred_check
      %p1583 = pneg %p1582
    $region54: #{transformer_v5.8} parent=5 // pred_check_branch
      %1585 = sbr.rel (%p1583) target = $region56
    $region55: #{transformer_v5.8} parent=5 // pred_region
      %s1586 = ssub.s32 %s10, 2
    $region56: #{transformer_v5.8} parent=5 // pred_fallthru
      _
  $region6: #{transformer_v5.8} parent=0 // loop_footer
    %s14 = sadd.s32 1, %s10
  $region7: #{transformer_v5.8} parent=0 // loop_footer_branch
    %9 = sbr.rel target = $region3
  $region8: #{transformer_v5.8} parent=0 // loop_exit
    _

// kernel: transformer_v5.5
$region0: #{transformer_v5.5}
  #allocation0 [shape = 'u32[]', space=smem, size = 0x4, offset = 0x4, fixed_abs, tag = 'smem constant byte address 0x4 - core index']
  #allocation1 [shape = 'u32[144,128]{1,0:T(1,128)}', space=vmem, size = 0x12000, scoped, tag = 'internal scratch']
  %s0 = inlined_call_operand.vmem [shape: f32[4,36], index: 0, kind: input, shape index: {}]
  %s1 = inlined_call_operand.vmem [shape: f32[4,1], index: 1, kind: input, shape index: {}]
  %s2 = inlined_call_operand.vmem [shape: f32[36,256], index: 2, kind: input, shape index: {}]
  %s3 = inlined_call_operand.vmem [shape: f32[4,256], index: 3, kind: output, shape index: {}]
  %s4 = sld [smem:[#allocation0]]
  $region22: #{transformer_v5.5} parent=0
    _
  %s6 = ssub.s32 1, %s4
  %s7 = scalar_select 0, %s6, %s4
  // Predicated region
  $region2: #{transformer_v5.5} parent=0 // pred_check
    _
  $region3: #{transformer_v5.5} parent=0 // pred_check_branch
    %9 = sbr.rel (0) target = $region5
  $region4: #{transformer_v5.5} parent=0 // pred_region
    _
  $region5: #{transformer_v5.5} parent=0 // pred_fallthru
    _
  // Predicated region
  $region6: #{transformer_v5.5} parent=0 // pred_check
    _
  $region7: #{transformer_v5.5} parent=0 // pred_check_branch
    %11 = sbr.rel (0) target = $region9
  $region8: #{transformer_v5.5} parent=0 // pred_region
    _
  $region9: #{transformer_v5.5} parent=0 // pred_fallthru
    _
  // Predicated region
  $region10: #{transformer_v5.5} parent=0 // pred_check
    _
  $region11: #{transformer_v5.5} parent=0 // pred_check_branch
    %13 = sbr.rel (0) target = $region13
  $region12: #{transformer_v5.5} parent=0 // pred_region
    _
  $region13: #{transformer_v5.5} parent=0 // pred_fallthru
    _
  %v14 = vld [vmem:[%s0] sm:$0xf]
  %v15 = vld [vmem:[%s2] sm:$0xff]
  %v16 = vld [vmem:[%s2 + $0x8] sm:$0xff]
  %v17 = vld [vmem:[%s2 + $0x10] sm:$0xff]
  %v18 = vld [vmem:[%s2 + $0x18] sm:$0xff]
  %v19 = vld [vmem:[%s2 + $0x20] sm:$0xff]
  %v20 = vld [vmem:[%s2 + $0x28] sm:$0xff]
  %v21 = vld [vmem:[%s2 + $0x30] sm:$0xff]
  %v22 = vld [vmem:[%s2 + $0x38] sm:$0xff]
  %v23 = vld [vmem:[%s2 + $0x40] sm:$0xf]
  %v24 = vld [vmem:[%s2 + $0x48] sm:$0xf]
  %v25 = vld [vmem:[%s1] sm:$0xf]
  %27 = vset.pattern.permute.xlu0 0
  %28 = vperm.xlu0 %27, %v25
  %v29 = vpop.permute.xlu0 %28
  %vm31 = vcmask 293888
  %v33 = vsel %vm31, %v14, 0
  %vm35 = vcmask 1043456
  %v37 = vsel %vm35, %v23, 0
  %v40 = vsel %vm35, %v24, 0
  %42 = vmatprep.subr.mxu0 %v16
  %43 = vmatpush1.msra.mxu0 %v15
  %44 = vmatprep.subr.mxu0 %v18
  %45 = vmatpush1.msra.mxu0 %v17
  %46 = vmatprep.subr.mxu0 %v20
  %47 = vmatpush1.msra.mxu0 %v19
  %48 = vmatprep.subr.mxu0 %v22
  %49 = vmatpush1.msra.mxu0 %v21
  %50 = vmatprep.subr.mxu0 %v40
  %51 = vmatpush1.msra.mxu0 %v37
  %52 = vmatprep.subr.mxu0 0.0
  %53 = vmatpush1.msra.mxu0 0.0
  %54 = vmatprep.subr.mxu0 0.0
  %55 = vmatpush1.msra.mxu0 0.0
  %56 = vmatprep.subr.mxu0 0.0
  %57 = vmatpush1.msra.mxu0 0.0
  %58 = vmatprep.subr.mxu0 0.0
  %59 = vmatpush1.msra.mxu0 0.0
  %60 = vmatprep.subr.mxu0 0.0
  %61 = vmatpush1.msra.mxu0 0.0
  %62 = vmatprep.subr.mxu0 0.0
  %63 = vmatpush1.msra.mxu0 0.0
  %64 = vmatprep.subr.mxu0 0.0
  %65 = vmatpush1.msra.mxu0 0.0
  %66 = vmatprep.subr.mxu0 0.0
  %67 = vmatpush1.msra.mxu0 0.0
  %68 = vmatprep.subr.mxu0 0.0
  %69 = vmatpush1.msra.mxu0 0.0
  %70 = vmatprep.subr.mxu0 0.0
  %71 = vmatpush1.msra.mxu0 0.0
  %72 = vmatprep.subr.mxu0 0.0
  %73 = vmatpush1.msra.mxu0 0.0
  %74 = vmatprep.subr.mxu0 0.0
  %75 = vmatpush1.msra.mxu0 0.0
  %76 = vmatprep.subr.mxu0 0.0
  %77 = vmatpush1.msra.mxu0 0.0
  %78 = vmatprep.subr.mxu0 0.0
  %79 = vmatpush1.msra.mxu0 0.0
  %80 = vmatprep.subr.mxu0 0.0
  %81 = vmatpush1.msra.mxu0 0.0
  %82 = vmatprep.subr.mxu0 0.0
  %83 = vmatpush1.msra.mxu0 0.0
  %84 = vmatprep.subr.mxu0 0.0
  %85 = vmatpush1.msra.mxu0 0.0
  %86 = vmatprep.subr.mxu0 0.0
  %87 = vmatpush1.msra.mxu0 0.0
  %88 = vmatprep.subr.mxu0 0.0
  %89 = vmatpush1.msra.mxu0 0.0
  %90 = vmatprep.subr.mxu0 0.0
  %91 = vmatpush1.msra.mxu0 0.0
  %92 = vmatprep.subr.mxu0 0.0
  %93 = vmatpush1.msra.mxu0 0.0
  %94 = vmatprep.subr.mxu0 0.0
  %95 = vmatpush1.msra.mxu0 0.0
  %96 = vmatprep.subr.mxu0 0.0
  %97 = vmatpush1.msra.mxu0 0.0
  %98 = vmatprep.subr.mxu0 0.0
  %99 = vmatpush1.msra.mxu0 0.0
  %100 = vmatprep.subr.mxu0 0.0
  %101 = vmatpush1.msra.mxu0 0.0
  %102 = vmatprep.subr.mxu0 0.0
  %103 = vmatpush1.msra.mxu0 0.0
  %104 = vmatprep.subr.mxu0 0.0
  %105 = vmatpush1.msra.mxu0 0.0
  %106 = vmatprep.mubr.f32.mxu0 0.0
  %107 = vmatmul.mubr.f32.gmra.mrb[0].mxu0 %v33
  %v108 = vpop.f32.mrb[0].mxu0
  %v109 = vadd.f32 %v29, %v108
  %v110 = vpop.f32.mrb[0].mxu0
  %v111 = vadd.f32 %v29, %v110
  %112 = vdwg.mxu0
  %v113 = vmax.f32 %v109, 0.0
  %v114 = vmax.f32 %v111, 0.0
  %v117 = vcombine.low %v113, %v114
  %119 = vst [vmem:[%s3] sm:$0xff] %v117
  // Predicated region
  $region14: #{transformer_v5.5} parent=0 // pred_check
    _
  $region15: #{transformer_v5.5} parent=0 // pred_check_branch
    %121 = sbr.rel (0) target = $region17
  $region16: #{transformer_v5.5} parent=0 // pred_region
    _
  $region17: #{transformer_v5.5} parent=0 // pred_fallthru
    _
  // Predicated region
  $region18: #{transformer_v5.5} parent=0 // pred_check
    _
  $region19: #{transformer_v5.5} parent=0 // pred_check_branch
    %123 = sbr.rel (0) target = $region21
  $region20: #{transformer_v5.5} parent=0 // pred_region
    _
  $region21: #{transformer_v5.5} parent=0 // pred_fallthru
    _

// kernel: squeeze.83
$region0: #{squeeze.83}
  %s0 = inlined_call_operand.vmem [shape: f32[1,4,16,16], index: 0, kind: input, shape index: {}]
  %s1 = inlined_call_operand.vmem [shape: f32[4,256], index: 1, kind: output, shape index: {}]
  $region1: #{squeeze.83} parent=0
    #allocation0 [shape = 'u8[8192]{0}', space=vmem, size = 0x2000, scoped, tag = 'scoped mem for output reshape']
    %v2 = vld [vmem:[%s0] ss:$8 sm:$0xf]
    %v3 = vld [vmem:[%s0] ss:$8 sm:$0xf0]
    %vm4 = vcmask 1047556
    %v5 = vsel %vm4, %v3, %v2
    %vm6 = vcmask 130048
    %7 = vst.msk [vmem:[#allocation0] ss:$8 sm:$0x3] %vm6, %v5
    %s8 = scalar_lea.vmem [#allocation0], 4294967281
    %9 = vst.msk [vmem:[%s8] ss:$8 sm:$0xc] %vm6, %v5
    %s10 = scalar_lea.vmem [#allocation0], 4294967266
    %11 = vst.msk [vmem:[%s10] ss:$8 sm:$0x30] %vm6, %v5
    %s12 = scalar_lea.vmem [#allocation0], 4294967251
    %13 = vst.msk [vmem:[%s12] ss:$8 sm:$0xc0] %vm6, %v5
    %s14 = scalar_lea.vmem %s0, 7
    %s15 = smov 3
    %v16 = vld [vmem:[%s14] ss:$16 sm:%s15]
    %s17 = scalar_lea.vmem %s0, 7
    %s18 = smov 12
    %v19 = vld [vmem:[%s17] ss:$16 sm:%s18]
    %vm20 = vcmask 1043458
    %v21 = vsel %vm20, %v19, %v16
    %s22 = scalar_lea.vmem %s0, 4294967247
    %s23 = smov 48
    %v24 = vld [vmem:[%s22] ss:$16 sm:%s23]
    %vm25 = vcmask 1045508
    %v26 = vsel %vm25, %v24, %v21
    %s27 = scalar_lea.vmem %s0, 4294967247
    %s28 = smov 192
    %v29 = vld [vmem:[%s27] ss:$16 sm:%s28]
    %vm30 = vcmask 1047558
    %v31 = vsel %vm30, %v29, %v26
    %32 = vrot.lane.b32.xlu0 %v31, 112
    %v33 = vpop.permute.xlu0 %32
    %vm34 = vcmask 1048448
    %35 = vst.msk [vmem:[#allocation0] sm:$0xf] %vm34, %v33
    %s36 = scalar_lea.vmem [#allocation0], 4
    %37 = vst.msk [vmem:[%s36] sm:$0xf0] %vm34, %v33
    %s38 = scalar_lea.vmem %s0, 6
    %s39 = smov 3
    %v40 = vld [vmem:[%s38] ss:$16 sm:%s39]
    %s41 = scalar_lea.vmem %s0, 6
    %s42 = smov 12
    %v43 = vld [vmem:[%s41] ss:$16 sm:%s42]
    %vm44 = vcmask 1043458
    %v45 = vsel %vm44, %v43, %v40
    %s46 = scalar_lea.vmem %s0, 4294967246
    %s47 = smov 48
    %v48 = vld [vmem:[%s46] ss:$16 sm:%s47]
    %vm49 = vcmask 1045508
    %v50 = vsel %vm49, %v48, %v45
    %s51 = scalar_lea.vmem %s0, 4294967246
    %s52 = smov 192
    %v53 = vld [vmem:[%s51] ss:$16 sm:%s52]
    %vm54 = vcmask 1047558
    %v55 = vsel %vm54, %v53, %v50
    %56 = vrot.lane.b32.xlu0 %v55, 96
    %v57 = vpop.permute.xlu0 %56
    %vm58 = vcmask 917248
    %59 = vst.msk [vmem:[#allocation0] sm:$0xf] %vm58, %v57
    %s60 = scalar_lea.vmem [#allocation0], 4
    %61 = vst.msk [vmem:[%s60] sm:$0xf0] %vm58, %v57
    %s62 = scalar_lea.vmem %s0, 5
    %s63 = smov 3
    %v64 = vld [vmem:[%s62] ss:$16 sm:%s63]
    %s65 = scalar_lea.vmem %s0, 5
    %s66 = smov 12
    %v67 = vld [vmem:[%s65] ss:$16 sm:%s66]
    %vm68 = vcmask 1043458
    %v69 = vsel %vm68, %v67, %v64
    %s70 = scalar_lea.vmem %s0, 4294967245
    %s71 = smov 48
    %v72 = vld [vmem:[%s70] ss:$16 sm:%s71]
    %vm73 = vcmask 1045508
    %v74 = vsel %vm73, %v72, %v69
    %s75 = scalar_lea.vmem %s0, 4294967245
    %s76 = smov 192
    %v77 = vld [vmem:[%s75] ss:$16 sm:%s76]
    %vm78 = vcmask 1047558
    %v79 = vsel %vm78, %v77, %v74
    %80 = vrot.lane.b32.xlu0 %v79, 80
    %v81 = vpop.permute.xlu0 %80
    %vm82 = vcmask 786048
    %83 = vst.msk [vmem:[#allocation0] sm:$0xf] %vm82, %v81
    %s84 = scalar_lea.vmem [#allocation0], 4
    %85 = vst.msk [vmem:[%s84] sm:$0xf0] %vm82, %v81
    %s86 = scalar_lea.vmem %s0, 4
    %s87 = smov 3
    %v88 = vld [vmem:[%s86] ss:$16 sm:%s87]
    %s89 = scalar_lea.vmem %s0, 4
    %s90 = smov 12
    %v91 = vld [vmem:[%s89] ss:$16 sm:%s90]
    %vm92 = vcmask 1043458
    %v93 = vsel %vm92, %v91, %v88
    %s94 = scalar_lea.vmem %s0, 4294967244
    %s95 = smov 48
    %v96 = vld [vmem:[%s94] ss:$16 sm:%s95]
    %vm97 = vcmask 1045508
    %v98 = vsel %vm97, %v96, %v93
    %s99 = scalar_lea.vmem %s0, 4294967244
    %s100 = smov 192
    %v101 = vld [vmem:[%s99] ss:$16 sm:%s100]
    %vm102 = vcmask 1047558
    %v103 = vsel %vm102, %v101, %v98
    %104 = vrot.lane.b32.xlu0 %v103, 64
    %v105 = vpop.permute.xlu0 %104
    %vm106 = vcmask 654848
    %107 = vst.msk [vmem:[#allocation0] sm:$0xf] %vm106, %v105
    %s108 = scalar_lea.vmem [#allocation0], 4
    %109 = vst.msk [vmem:[%s108] sm:$0xf0] %vm106, %v105
    %s110 = scalar_lea.vmem %s0, 3
    %s111 = smov 3
    %v112 = vld [vmem:[%s110] ss:$16 sm:%s111]
    %s113 = scalar_lea.vmem %s0, 3
    %s114 = smov 12
    %v115 = vld [vmem:[%s113] ss:$16 sm:%s114]
    %vm116 = vcmask 1043458
    %v117 = vsel %vm116, %v115, %v112
    %s118 = scalar_lea.vmem %s0, 4294967243
    %s119 = smov 48
    %v120 = vld [vmem:[%s118] ss:$16 sm:%s119]
    %vm121 = vcmask 1045508
    %v122 = vsel %vm121, %v120, %v117
    %s123 = scalar_lea.vmem %s0, 4294967243
    %s124 = smov 192
    %v125 = vld [vmem:[%s123] ss:$16 sm:%s124]
    %vm126 = vcmask 1047558
    %v127 = vsel %vm126, %v125, %v122
    %128 = vrot.lane.b32.xlu0 %v127, 48
    %v129 = vpop.permute.xlu0 %128
    %vm130 = vcmask 523648
    %131 = vst.msk [vmem:[#allocation0] sm:$0xf] %vm130, %v129
    %s132 = scalar_lea.vmem [#allocation0], 4
    %133 = vst.msk [vmem:[%s132] sm:$0xf0] %vm130, %v129
    %s134 = scalar_lea.vmem %s0, 2
    %s135 = smov 3
    %v136 = vld [vmem:[%s134] ss:$16 sm:%s135]
    %s137 = scalar_lea.vmem %s0, 2
    %s138 = smov 12
    %v139 = vld [vmem:[%s137] ss:$16 sm:%s138]
    %vm140 = vcmask 1043458
    %v141 = vsel %vm140, %v139, %v136
    %s142 = scalar_lea.vmem %s0, 4294967242
    %s143 = smov 48
    %v144 = vld [vmem:[%s142] ss:$16 sm:%s143]
    %vm145 = vcmask 1045508
    %v146 = vsel %vm145, %v144, %v141
    %s147 = scalar_lea.vmem %s0, 4294967242
    %s148 = smov 192
    %v149 = vld [vmem:[%s147] ss:$16 sm:%s148]
    %vm150 = vcmask 1047558
    %v151 = vsel %vm150, %v149, %v146
    %152 = vrot.lane.b32.xlu0 %v151, 32
    %v153 = vpop.permute.xlu0 %152
    %vm154 = vcmask 392448
    %155 = vst.msk [vmem:[#allocation0] sm:$0xf] %vm154, %v153
    %s156 = scalar_lea.vmem [#allocation0], 4
    %157 = vst.msk [vmem:[%s156] sm:$0xf0] %vm154, %v153
    %s158 = scalar_lea.vmem %s0, 1
    %s159 = smov 3
    %v160 = vld [vmem:[%s158] ss:$16 sm:%s159]
    %s161 = scalar_lea.vmem %s0, 1
    %s162 = smov 12
    %v163 = vld [vmem:[%s161] ss:$16 sm:%s162]
    %vm164 = vcmask 1043458
    %v165 = vsel %vm164, %v163, %v160
    %s166 = scalar_lea.vmem %s0, 4294967241
    %s167 = smov 48
    %v168 = vld [vmem:[%s166] ss:$16 sm:%s167]
    %vm169 = vcmask 1045508
    %v170 = vsel %vm169, %v168, %v165
    %s171 = scalar_lea.vmem %s0, 4294967241
    %s172 = smov 192
    %v173 = vld [vmem:[%s171] ss:$16 sm:%s172]
    %vm174 = vcmask 1047558
    %v175 = vsel %vm174, %v173, %v170
    %176 = vrot.lane.b32.xlu0 %v175, 16
    %v177 = vpop.permute.xlu0 %176
    %vm178 = vcmask 261248
    %179 = vst.msk [vmem:[#allocation0] sm:$0xf] %vm178, %v177
    %s180 = scalar_lea.vmem [#allocation0], 4
    %181 = vst.msk [vmem:[%s180] sm:$0xf0] %vm178, %v177
    %s183 = sshllo.u32 0, 4
    %v185 = vld [vmem:[#allocation0] sm:%s183]
    %s186 = sshllo.u32 0, 4
    %187 = vst [vmem:[%s1] sm:%s186] %v185
    %s188 = scalar_lea.vmem [#allocation0], 8
    %v189 = vld [vmem:[%s188] sm:%s183]
    %s190 = sshllo.u32 0, 4
    %s191 = scalar_lea.vmem %s1, 4
    %192 = vst [vmem:[%s191] sm:%s190] %v189

// kernel: transformer_v5.6
$region0: #{transformer_v5.6}
  #allocation0 [shape = 'u32[]', space=smem, size = 0x4, offset = 0x4, fixed_abs, tag = 'smem constant byte address 0x4 - core index']
  #allocation1 [shape = 'u32[144,128]{1,0:T(1,128)}', space=vmem, size = 0x12000, scoped, tag = 'internal scratch']
  %s0 = inlined_call_operand.vmem [shape: f32[4,36], index: 0, kind: input, shape index: {}]
  %s1 = inlined_call_operand.vmem [shape: f32[4,1], index: 1, kind: input, shape index: {}]
  %s2 = inlined_call_operand.vmem [shape: f32[36,256], index: 2, kind: input, shape index: {}]
  %s3 = inlined_call_operand.vmem [shape: f32[4,256], index: 3, kind: output, shape index: {}]
  %s4 = sld [smem:[#allocation0]]
  $region22: #{transformer_v5.6} parent=0
    _
  %s6 = ssub.s32 1, %s4
  %s7 = scalar_select 0, %s6, %s4
  // Predicated region
  $region2: #{transformer_v5.6} parent=0 // pred_check
    _
  $region3: #{transformer_v5.6} parent=0 // pred_check_branch
    %9 = sbr.rel (0) target = $region5
  $region4: #{transformer_v5.6} parent=0 // pred_region
    _
  $region5: #{transformer_v5.6} parent=0 // pred_fallthru
    _
  // Predicated region
  $region6: #{transformer_v5.6} parent=0 // pred_check
    _
  $region7: #{transformer_v5.6} parent=0 // pred_check_branch
    %11 = sbr.rel (0) target = $region9
  $region8: #{transformer_v5.6} parent=0 // pred_region
    _
  $region9: #{transformer_v5.6} parent=0 // pred_fallthru
    _
  // Predicated region
  $region10: #{transformer_v5.6} parent=0 // pred_check
    _
  $region11: #{transformer_v5.6} parent=0 // pred_check_branch
    %13 = sbr.rel (0) target = $region13
  $region12: #{transformer_v5.6} parent=0 // pred_region
    _
  $region13: #{transformer_v5.6} parent=0 // pred_fallthru
    _
  %v14 = vld [vmem:[%s0] sm:$0xf]
  %v15 = vld [vmem:[%s2] sm:$0xff]
  %v16 = vld [vmem:[%s2 + $0x8] sm:$0xff]
  %v17 = vld [vmem:[%s2 + $0x10] sm:$0xff]
  %v18 = vld [vmem:[%s2 + $0x18] sm:$0xff]
  %v19 = vld [vmem:[%s2 + $0x20] sm:$0xff]
  %v20 = vld [vmem:[%s2 + $0x28] sm:$0xff]
  %v21 = vld [vmem:[%s2 + $0x30] sm:$0xff]
  %v22 = vld [vmem:[%s2 + $0x38] sm:$0xff]
  %v23 = vld [vmem:[%s2 + $0x40] sm:$0xf]
  %v24 = vld [vmem:[%s2 + $0x48] sm:$0xf]
  %v25 = vld [vmem:[%s1] sm:$0xf]
  %27 = vset.pattern.permute.xlu0 0
  %28 = vperm.xlu0 %27, %v25
  %v29 = vpop.permute.xlu0 %28
  %vm31 = vcmask 293888
  %v33 = vsel %vm31, %v14, 0
  %vm35 = vcmask 1043456
  %v37 = vsel %vm35, %v23, 0
  %v40 = vsel %vm35, %v24, 0
  %42 = vmatprep.subr.mxu0 %v16
  %43 = vmatpush1.msra.mxu0 %v15
  %44 = vmatprep.subr.mxu0 %v18
  %45 = vmatpush1.msra.mxu0 %v17
  %46 = vmatprep.subr.mxu0 %v20
  %47 = vmatpush1.msra.mxu0 %v19
  %48 = vmatprep.subr.mxu0 %v22
  %49 = vmatpush1.msra.mxu0 %v21
  %50 = vmatprep.subr.mxu0 %v40
  %51 = vmatpush1.msra.mxu0 %v37
  %52 = vmatprep.subr.mxu0 0.0
  %53 = vmatpush1.msra.mxu0 0.0
  %54 = vmatprep.subr.mxu0 0.0
  %55 = vmatpush1.msra.mxu0 0.0
  %56 = vmatprep.subr.mxu0 0.0
  %57 = vmatpush1.msra.mxu0 0.0
  %58 = vmatprep.subr.mxu0 0.0
  %59 = vmatpush1.msra.mxu0 0.0
  %60 = vmatprep.subr.mxu0 0.0
  %61 = vmatpush1.msra.mxu0 0.0
  %62 = vmatprep.subr.mxu0 0.0
  %63 = vmatpush1.msra.mxu0 0.0
  %64 = vmatprep.subr.mxu0 0.0
  %65 = vmatpush1.msra.mxu0 0.0
  %66 = vmatprep.subr.mxu0 0.0
  %67 = vmatpush1.msra.mxu0 0.0
  %68 = vmatprep.subr.mxu0 0.0
  %69 = vmatpush1.msra.mxu0 0.0
  %70 = vmatprep.subr.mxu0 0.0
  %71 = vmatpush1.msra.mxu0 0.0
  %72 = vmatprep.subr.mxu0 0.0
  %73 = vmatpush1.msra.mxu0 0.0
  %74 = vmatprep.subr.mxu0 0.0
  %75 = vmatpush1.msra.mxu0 0.0
  %76 = vmatprep.subr.mxu0 0.0
  %77 = vmatpush1.msra.mxu0 0.0
  %78 = vmatprep.subr.mxu0 0.0
  %79 = vmatpush1.msra.mxu0 0.0
  %80 = vmatprep.subr.mxu0 0.0
  %81 = vmatpush1.msra.mxu0 0.0
  %82 = vmatprep.subr.mxu0 0.0
  %83 = vmatpush1.msra.mxu0 0.0
  %84 = vmatprep.subr.mxu0 0.0
  %85 = vmatpush1.msra.mxu0 0.0
  %86 = vmatprep.subr.mxu0 0.0
  %87 = vmatpush1.msra.mxu0 0.0
  %88 = vmatprep.subr.mxu0 0.0
  %89 = vmatpush1.msra.mxu0 0.0
  %90 = vmatprep.subr.mxu0 0.0
  %91 = vmatpush1.msra.mxu0 0.0
  %92 = vmatprep.subr.mxu0 0.0
  %93 = vmatpush1.msra.mxu0 0.0
  %94 = vmatprep.subr.mxu0 0.0
  %95 = vmatpush1.msra.mxu0 0.0
  %96 = vmatprep.subr.mxu0 0.0
  %97 = vmatpush1.msra.mxu0 0.0
  %98 = vmatprep.subr.mxu0 0.0
  %99 = vmatpush1.msra.mxu0 0.0
  %100 = vmatprep.subr.mxu0 0.0
  %101 = vmatpush1.msra.mxu0 0.0
  %102 = vmatprep.subr.mxu0 0.0
  %103 = vmatpush1.msra.mxu0 0.0
  %104 = vmatprep.subr.mxu0 0.0
  %105 = vmatpush1.msra.mxu0 0.0
  %106 = vmatprep.mubr.f32.mxu0 0.0
  %107 = vmatmul.mubr.f32.gmra.mrb[0].mxu0 %v33
  %v108 = vpop.f32.mrb[0].mxu0
  %v109 = vadd.f32 %v29, %v108
  %v110 = vpop.f32.mrb[0].mxu0
  %v111 = vadd.f32 %v29, %v110
  %112 = vdwg.mxu0
  %v115 = vcombine.low %v109, %v111
  %117 = vst [vmem:[%s3] sm:$0xff] %v115
  // Predicated region
  $region14: #{transformer_v5.6} parent=0 // pred_check
    _
  $region15: #{transformer_v5.6} parent=0 // pred_check_branch
    %119 = sbr.rel (0) target = $region17
  $region16: #{transformer_v5.6} parent=0 // pred_region
    _
  $region17: #{transformer_v5.6} parent=0 // pred_fallthru
    _
  // Predicated region
  $region18: #{transformer_v5.6} parent=0 // pred_check
    _
  $region19: #{transformer_v5.6} parent=0 // pred_check_branch
    %121 = sbr.rel (0) target = $region21
  $region20: #{transformer_v5.6} parent=0 // pred_region
    _
  $region21: #{transformer_v5.6} parent=0 // pred_fallthru
    _

// kernel: transformer_v5.9
$region0: #{transformer_v5.9}
  #allocation0 [shape = 'u32[]', space=smem, size = 0x4, offset = 0x4, fixed_abs, tag = 'smem constant byte address 0x4 - core index']
  #allocation1 [shape = 'u32[144,128]{1,0:T(1,128)}', space=vmem, size = 0x12000, scoped, tag = 'internal scratch']
  %s0 = inlined_call_operand.vmem [shape: f32[4,256], index: 0, kind: input, shape index: {}]
  %s1 = inlined_call_operand.vmem [shape: f32[4,256], index: 1, kind: input, shape index: {}]
  %s2 = inlined_call_operand.vmem [shape: f32[4,256], index: 2, kind: input, shape index: {}]
  %s3 = inlined_call_operand.vmem [shape: f32[4,256], index: 3, kind: input, shape index: {}]
  %s4 = inlined_call_operand.vmem [shape: f32[5,256], index: 4, kind: input, shape index: {}]
  %s5 = inlined_call_operand.vmem [shape: f32[4,256], index: 5, kind: input, shape index: {}]
  %s6 = inlined_call_operand.vmem [shape: f32[4,256], index: 6, kind: input, shape index: {}]
  %s7 = inlined_call_operand.vmem [shape: f32[4,16], index: 7, kind: input, shape index: {}]
  %s8 = inlined_call_operand.vmem [shape: f32[4,1], index: 8, kind: input, shape index: {}]
  %s9 = inlined_call_operand.vmem [shape: f32[4,4], index: 9, kind: input, shape index: {}]
  %s10 = inlined_call_operand.vmem [shape: f32[4,4], index: 10, kind: input, shape index: {}]
  %s11 = inlined_call_operand.vmem [shape: f32[4,4], index: 11, kind: input, shape index: {}]
  %s12 = inlined_call_operand.vmem [shape: f32[4,1], index: 12, kind: input, shape index: {}]
  %s13 = inlined_call_operand.vmem [shape: f32[4,256], index: 13, kind: output, shape index: {}]
  %s14 = sld [smem:[#allocation0]]
  $region62: #{transformer_v5.9} parent=0
    _
  %s16 = ssub.s32 1, %s14
  %s17 = scalar_select 0, %s16, %s14
  // Predicated region
  $region2: #{transformer_v5.9} parent=0 // pred_check
    _
  $region3: #{transformer_v5.9} parent=0 // pred_check_branch
    %19 = sbr.rel (0) target = $region5
  $region4: #{transformer_v5.9} parent=0 // pred_region
    _
  $region5: #{transformer_v5.9} parent=0 // pred_fallthru
    _
  // Predicated region
  $region6: #{transformer_v5.9} parent=0 // pred_check
    _
  $region7: #{transformer_v5.9} parent=0 // pred_check_branch
    %21 = sbr.rel (0) target = $region9
  $region8: #{transformer_v5.9} parent=0 // pred_region
    _
  $region9: #{transformer_v5.9} parent=0 // pred_fallthru
    _
  // Predicated region
  $region10: #{transformer_v5.9} parent=0 // pred_check
    _
  $region11: #{transformer_v5.9} parent=0 // pred_check_branch
    %23 = sbr.rel (0) target = $region13
  $region12: #{transformer_v5.9} parent=0 // pred_region
    _
  $region13: #{transformer_v5.9} parent=0 // pred_fallthru
    _
  // Predicated region
  $region14: #{transformer_v5.9} parent=0 // pred_check
    _
  $region15: #{transformer_v5.9} parent=0 // pred_check_branch
    %25 = sbr.rel (0) target = $region17
  $region16: #{transformer_v5.9} parent=0 // pred_region
    _
  $region17: #{transformer_v5.9} parent=0 // pred_fallthru
    _
  // Predicated region
  $region18: #{transformer_v5.9} parent=0 // pred_check
    _
  $region19: #{transformer_v5.9} parent=0 // pred_check_branch
    %27 = sbr.rel (0) target = $region21
  $region20: #{transformer_v5.9} parent=0 // pred_region
    _
  $region21: #{transformer_v5.9} parent=0 // pred_fallthru
    _
  // Predicated region
  $region22: #{transformer_v5.9} parent=0 // pred_check
    _
  $region23: #{transformer_v5.9} parent=0 // pred_check_branch
    %29 = sbr.rel (0) target = $region25
  $region24: #{transformer_v5.9} parent=0 // pred_region
    _
  $region25: #{transformer_v5.9} parent=0 // pred_fallthru
    _
  // Predicated region
  $region26: #{transformer_v5.9} parent=0 // pred_check
    _
  $region27: #{transformer_v5.9} parent=0 // pred_check_branch
    %31 = sbr.rel (0) target = $region29
  $region28: #{transformer_v5.9} parent=0 // pred_region
    _
  $region29: #{transformer_v5.9} parent=0 // pred_fallthru
    _
  // Predicated region
  $region30: #{transformer_v5.9} parent=0 // pred_check
    _
  $region31: #{transformer_v5.9} parent=0 // pred_check_branch
    %33 = sbr.rel (0) target = $region33
  $region32: #{transformer_v5.9} parent=0 // pred_region
    _
  $region33: #{transformer_v5.9} parent=0 // pred_fallthru
    _
  // Predicated region
  $region34: #{transformer_v5.9} parent=0 // pred_check
    _
  $region35: #{transformer_v5.9} parent=0 // pred_check_branch
    %35 = sbr.rel (0) target = $region37
  $region36: #{transformer_v5.9} parent=0 // pred_region
    _
  $region37: #{transformer_v5.9} parent=0 // pred_fallthru
    _
  // Predicated region
  $region38: #{transformer_v5.9} parent=0 // pred_check
    _
  $region39: #{transformer_v5.9} parent=0 // pred_check_branch
    %37 = sbr.rel (0) target = $region41
  $region40: #{transformer_v5.9} parent=0 // pred_region
    _
  $region41: #{transformer_v5.9} parent=0 // pred_fallthru
    _
  // Predicated region
  $region42: #{transformer_v5.9} parent=0 // pred_check
    _
  $region43: #{transformer_v5.9} parent=0 // pred_check_branch
    %39 = sbr.rel (0) target = $region45
  $region44: #{transformer_v5.9} parent=0 // pred_region
    _
  $region45: #{transformer_v5.9} parent=0 // pred_fallthru
    _
  // Predicated region
  $region46: #{transformer_v5.9} parent=0 // pred_check
    _
  $region47: #{transformer_v5.9} parent=0 // pred_check_branch
    %41 = sbr.rel (0) target = $region49
  $region48: #{transformer_v5.9} parent=0 // pred_region
    _
  $region49: #{transformer_v5.9} parent=0 // pred_fallthru
    _
  // Predicated region
  $region50: #{transformer_v5.9} parent=0 // pred_check
    _
  $region51: #{transformer_v5.9} parent=0 // pred_check_branch
    %43 = sbr.rel (0) target = $region53
  $region52: #{transformer_v5.9} parent=0 // pred_region
    _
  $region53: #{transformer_v5.9} parent=0 // pred_fallthru
    _
  %v44 = vld [vmem:[%s7] sm:$0xf]
  %v45 = vld [vmem:[%s4] sm:$0x1f]
  %v46 = vld [vmem:[%s4 + $0x8] sm:$0x1f]
  %v47 = vld [vmem:[%s0] sm:$0xff]
  %v49 = vcombine.high %v47, %v47
  %vm50 = vcmask 31744
  %v52 = vsel %vm50, %v44, 0
  %vm54 = vcmask 1043456
  %v55 = vsel %vm54, %v47, 0
  %v57 = vsel %vm54, %v49, 0
  %59 = vmatprep.subr.mxu0 %v57
  %60 = vmatpush1.msra.mxu0 %v55
  %61 = vmatprep.subr.mxu0 0.0
  %62 = vmatpush1.msra.mxu0 0.0
  %63 = vmatprep.subr.mxu0 0.0
  %64 = vmatpush1.msra.mxu0 0.0
  %65 = vmatprep.subr.mxu0 0.0
  %66 = vmatpush1.msra.mxu0 0.0
  %67 = vmatprep.subr.mxu0 0.0
  %68 = vmatpush1.msra.mxu0 0.0
  %69 = vmatprep.subr.mxu0 0.0
  %70 = vmatpush1.msra.mxu0 0.0
  %71 = vmatprep.subr.mxu0 0.0
  %72 = vmatpush1.msra.mxu0 0.0
  %73 = vmatprep.subr.mxu0 0.0
  %74 = vmatpush1.msra.mxu0 0.0
  %75 = vmatprep.subr.mxu0 0.0
  %76 = vmatpush1.msra.mxu0 0.0
  %77 = vmatprep.subr.mxu0 0.0
  %78 = vmatpush1.msra.mxu0 0.0
  %79 = vmatprep.subr.mxu0 0.0
  %80 = vmatpush1.msra.mxu0 0.0
  %81 = vmatprep.subr.mxu0 0.0
  %82 = vmatpush1.msra.mxu0 0.0
  %83 = vmatprep.subr.mxu0 0.0
  %84 = vmatpush1.msra.mxu0 0.0
  %85 = vmatprep.subr.mxu0 0.0
  %86 = vmatpush1.msra.mxu0 0.0
  %87 = vmatprep.subr.mxu0 0.0
  %88 = vmatpush1.msra.mxu0 0.0
  %89 = vmatprep.subr.mxu0 0.0
  %90 = vmatpush1.msra.mxu0 0.0
  %91 = vmatprep.subr.mxu0 0.0
  %92 = vmatpush1.msra.mxu0 0.0
  %93 = vmatprep.subr.mxu0 0.0
  %94 = vmatpush1.msra.mxu0 0.0
  %95 = vmatprep.subr.mxu0 0.0
  %96 = vmatpush1.msra.mxu0 0.0
  %97 = vmatprep.subr.mxu0 0.0
  %98 = vmatpush1.msra.mxu0 0.0
  %99 = vmatprep.subr.mxu0 0.0
  %100 = vmatpush1.msra.mxu0 0.0
  %101 = vmatprep.subr.mxu0 0.0
  %102 = vmatpush1.msra.mxu0 0.0
  %103 = vmatprep.subr.mxu0 0.0
  %104 = vmatpush1.msra.mxu0 0.0
  %105 = vmatprep.subr.mxu0 0.0
  %106 = vmatpush1.msra.mxu0 0.0
  %107 = vmatprep.subr.mxu0 0.0
  %108 = vmatpush1.msra.mxu0 0.0
  %109 = vmatprep.subr.mxu0 0.0
  %110 = vmatpush1.msra.mxu0 0.0
  %111 = vmatprep.subr.mxu0 0.0
  %112 = vmatpush1.msra.mxu0 0.0
  %113 = vmatprep.subr.mxu0 0.0
  %114 = vmatpush1.msra.mxu0 0.0
  %115 = vmatprep.subr.mxu0 0.0
  %116 = vmatpush1.msra.mxu0 0.0
  %117 = vmatprep.subr.mxu0 0.0
  %118 = vmatpush1.msra.mxu0 0.0
  %119 = vmatprep.subr.mxu0 0.0
  %120 = vmatpush1.msra.mxu0 0.0
  %121 = vmatprep.subr.mxu0 0.0
  %122 = vmatpush1.msra.mxu0 0.0
  %123 = vmatprep.mubr.f32.mxu0 0.0
  %124 = vmatmul.mubr.f32.gmra.mrb[0].mxu0 %v52
  %v125 = vpop.f32.mrb[0].mxu0
  %v126 = vadd.f32 0.0, %v125
  %v127 = vpop.f32.mrb[0].mxu0
  %v128 = vadd.f32 0.0, %v127
  %129 = vdwg.mxu0
  %v130 = vlaneseq
  %v131 = vshrl.u32 %v130, 7
  %v132 = vsub.s32 1, %v131
  %v133 = vrot.slane %v45, %v132
  %v134 = vlaneseq
  %v135 = vshrl.u32 %v134, 7
  %v136 = vsub.s32 1, %v135
  %v137 = vrot.slane %v46, %v136
  %v138 = vmul.f32 %v126, %v133
  %v139 = vmul.f32 %v128, %v137
  %v140 = vld [vmem:[%s1] sm:$0xff]
  %141 = vrot.lane.b32.xlu0 %v44, 124
  %v142 = vpop.permute.xlu0 %141
  %v144 = vcombine.high %v140, %v140
  %v145 = vsel %vm50, %v142, 0
  %v147 = vsel %vm54, %v140, 0
  %v149 = vsel %vm54, %v144, 0
  %151 = vmatprep.subr.mxu0 %v149
  %152 = vmatpush1.msra.mxu0 %v147
  %153 = vmatprep.subr.mxu0 0.0
  %154 = vmatpush1.msra.mxu0 0.0
  %155 = vmatprep.subr.mxu0 0.0
  %156 = vmatpush1.msra.mxu0 0.0
  %157 = vmatprep.subr.mxu0 0.0
  %158 = vmatpush1.msra.mxu0 0.0
  %159 = vmatprep.subr.mxu0 0.0
  %160 = vmatpush1.msra.mxu0 0.0
  %161 = vmatprep.subr.mxu0 0.0
  %162 = vmatpush1.msra.mxu0 0.0
  %163 = vmatprep.subr.mxu0 0.0
  %164 = vmatpush1.msra.mxu0 0.0
  %165 = vmatprep.subr.mxu0 0.0
  %166 = vmatpush1.msra.mxu0 0.0
  %167 = vmatprep.subr.mxu0 0.0
  %168 = vmatpush1.msra.mxu0 0.0
  %169 = vmatprep.subr.mxu0 0.0
  %170 = vmatpush1.msra.mxu0 0.0
  %171 = vmatprep.subr.mxu0 0.0
  %172 = vmatpush1.msra.mxu0 0.0
  %173 = vmatprep.subr.mxu0 0.0
  %174 = vmatpush1.msra.mxu0 0.0
  %175 = vmatprep.subr.mxu0 0.0
  %176 = vmatpush1.msra.mxu0 0.0
  %177 = vmatprep.subr.mxu0 0.0
  %178 = vmatpush1.msra.mxu0 0.0
  %179 = vmatprep.subr.mxu0 0.0
  %180 = vmatpush1.msra.mxu0 0.0
  %181 = vmatprep.subr.mxu0 0.0
  %182 = vmatpush1.msra.mxu0 0.0
  %183 = vmatprep.subr.mxu0 0.0
  %184 = vmatpush1.msra.mxu0 0.0
  %185 = vmatprep.subr.mxu0 0.0
  %186 = vmatpush1.msra.mxu0 0.0
  %187 = vmatprep.subr.mxu0 0.0
  %188 = vmatpush1.msra.mxu0 0.0
  %189 = vmatprep.subr.mxu0 0.0
  %190 = vmatpush1.msra.mxu0 0.0
  %191 = vmatprep.subr.mxu0 0.0
  %192 = vmatpush1.msra.mxu0 0.0
  %193 = vmatprep.subr.mxu0 0.0
  %194 = vmatpush1.msra.mxu0 0.0
  %195 = vmatprep.subr.mxu0 0.0
  %196 = vmatpush1.msra.mxu0 0.0
  %197 = vmatprep.subr.mxu0 0.0
  %198 = vmatpush1.msra.mxu0 0.0
  %199 = vmatprep.subr.mxu0 0.0
  %200 = vmatpush1.msra.mxu0 0.0
  %201 = vmatprep.subr.mxu0 0.0
  %202 = vmatpush1.msra.mxu0 0.0
  %203 = vmatprep.subr.mxu0 0.0
  %204 = vmatpush1.msra.mxu0 0.0
  %205 = vmatprep.subr.mxu0 0.0
  %206 = vmatpush1.msra.mxu0 0.0
  %207 = vmatprep.subr.mxu0 0.0
  %208 = vmatpush1.msra.mxu0 0.0
  %209 = vmatprep.subr.mxu0 0.0
  %210 = vmatpush1.msra.mxu0 0.0
  %211 = vmatprep.subr.mxu0 0.0
  %212 = vmatpush1.msra.mxu0 0.0
  %213 = vmatprep.subr.mxu0 0.0
  %214 = vmatpush1.msra.mxu0 0.0
  %215 = vmatprep.mubr.f32.mxu0 0.0
  %216 = vmatmul.mubr.f32.gmra.mrb[0].mxu0 %v145
  %v217 = vpop.f32.mrb[0].mxu0
  %v218 = vadd.f32 0.0, %v217
  %v219 = vpop.f32.mrb[0].mxu0
  %v220 = vadd.f32 0.0, %v219
  %221 = vdwg.mxu0
  %v222 = vlaneseq
  %v223 = vshrl.u32 %v222, 7
  %v224 = vsub.s32 2, %v223
  %v225 = vrot.slane %v45, %v224
  %v226 = vlaneseq
  %v227 = vshrl.u32 %v226, 7
  %v228 = vsub.s32 2, %v227
  %v229 = vrot.slane %v46, %v228
  %v230 = vmul.f32 %v218, %v225
  %v231 = vmul.f32 %v220, %v229
  %v232 = vadd.f32 %v138, %v230
  %v233 = vadd.f32 %v139, %v231
  %v234 = vld [vmem:[%s2] sm:$0xff]
  %235 = vrot.lane.b32.xlu0 %v44, 120
  %v236 = vpop.permute.xlu0 %235
  %v238 = vcombine.high %v234, %v234
  %v239 = vsel %vm50, %v236, 0
  %v241 = vsel %vm54, %v234, 0
  %v243 = vsel %vm54, %v238, 0
  %245 = vmatprep.subr.mxu0 %v243
  %246 = vmatpush1.msra.mxu0 %v241
  %247 = vmatprep.subr.mxu0 0.0
  %248 = vmatpush1.msra.mxu0 0.0
  %249 = vmatprep.subr.mxu0 0.0
  %250 = vmatpush1.msra.mxu0 0.0
  %251 = vmatprep.subr.mxu0 0.0
  %252 = vmatpush1.msra.mxu0 0.0
  %253 = vmatprep.subr.mxu0 0.0
  %254 = vmatpush1.msra.mxu0 0.0
  %255 = vmatprep.subr.mxu0 0.0
  %256 = vmatpush1.msra.mxu0 0.0
  %257 = vmatprep.subr.mxu0 0.0
  %258 = vmatpush1.msra.mxu0 0.0
  %259 = vmatprep.subr.mxu0 0.0
  %260 = vmatpush1.msra.mxu0 0.0
  %261 = vmatprep.subr.mxu0 0.0
  %262 = vmatpush1.msra.mxu0 0.0
  %263 = vmatprep.subr.mxu0 0.0
  %264 = vmatpush1.msra.mxu0 0.0
  %265 = vmatprep.subr.mxu0 0.0
  %266 = vmatpush1.msra.mxu0 0.0
  %267 = vmatprep.subr.mxu0 0.0
  %268 = vmatpush1.msra.mxu0 0.0
  %269 = vmatprep.subr.mxu0 0.0
  %270 = vmatpush1.msra.mxu0 0.0
  %271 = vmatprep.subr.mxu0 0.0
  %272 = vmatpush1.msra.mxu0 0.0
  %273 = vmatprep.subr.mxu0 0.0
  %274 = vmatpush1.msra.mxu0 0.0
  %275 = vmatprep.subr.mxu0 0.0
  %276 = vmatpush1.msra.mxu0 0.0
  %277 = vmatprep.subr.mxu0 0.0
  %278 = vmatpush1.msra.mxu0 0.0
  %279 = vmatprep.subr.mxu0 0.0
  %280 = vmatpush1.msra.mxu0 0.0
  %281 = vmatprep.subr.mxu0 0.0
  %282 = vmatpush1.msra.mxu0 0.0
  %283 = vmatprep.subr.mxu0 0.0
  %284 = vmatpush1.msra.mxu0 0.0
  %285 = vmatprep.subr.mxu0 0.0
  %286 = vmatpush1.msra.mxu0 0.0
  %287 = vmatprep.subr.mxu0 0.0
  %288 = vmatpush1.msra.mxu0 0.0
  %289 = vmatprep.subr.mxu0 0.0
  %290 = vmatpush1.msra.mxu0 0.0
  %291 = vmatprep.subr.mxu0 0.0
  %292 = vmatpush1.msra.mxu0 0.0
  %293 = vmatprep.subr.mxu0 0.0
  %294 = vmatpush1.msra.mxu0 0.0
  %295 = vmatprep.subr.mxu0 0.0
  %296 = vmatpush1.msra.mxu0 0.0
  %297 = vmatprep.subr.mxu0 0.0
  %298 = vmatpush1.msra.mxu0 0.0
  %299 = vmatprep.subr.mxu0 0.0
  %300 = vmatpush1.msra.mxu0 0.0
  %301 = vmatprep.subr.mxu0 0.0
  %302 = vmatpush1.msra.mxu0 0.0
  %303 = vmatprep.subr.mxu0 0.0
  %304 = vmatpush1.msra.mxu0 0.0
  %305 = vmatprep.subr.mxu0 0.0
  %306 = vmatpush1.msra.mxu0 0.0
  %307 = vmatprep.subr.mxu0 0.0
  %308 = vmatpush1.msra.mxu0 0.0
  %309 = vmatprep.mubr.f32.mxu0 0.0
  %310 = vmatmul.mubr.f32.gmra.mrb[0].mxu0 %v239
  %v311 = vpop.f32.mrb[0].mxu0
  %v312 = vadd.f32 0.0, %v311
  %v313 = vpop.f32.mrb[0].mxu0
  %v314 = vadd.f32 0.0, %v313
  %315 = vdwg.mxu0
  %v316 = vlaneseq
  %v317 = vshrl.u32 %v316, 7
  %v318 = vsub.s32 3, %v317
  %v319 = vrot.slane %v45, %v318
  %v320 = vlaneseq
  %v321 = vshrl.u32 %v320, 7
  %v322 = vsub.s32 3, %v321
  %v323 = vrot.slane %v46, %v322
  %v324 = vmul.f32 %v312, %v319
  %v325 = vmul.f32 %v314, %v323
  %v326 = vadd.f32 %v232, %v324
  %v327 = vadd.f32 %v233, %v325
  %v328 = vld [vmem:[%s3] sm:$0xff]
  %329 = vrot.lane.b32.xlu0 %v44, 116
  %v330 = vpop.permute.xlu0 %329
  %v332 = vcombine.high %v328, %v328
  %v333 = vsel %vm50, %v330, 0
  %v335 = vsel %vm54, %v328, 0
  %v337 = vsel %vm54, %v332, 0
  %339 = vmatprep.subr.mxu0 %v337
  %340 = vmatpush1.msra.mxu0 %v335
  %341 = vmatprep.subr.mxu0 0.0
  %342 = vmatpush1.msra.mxu0 0.0
  %343 = vmatprep.subr.mxu0 0.0
  %344 = vmatpush1.msra.mxu0 0.0
  %345 = vmatprep.subr.mxu0 0.0
  %346 = vmatpush1.msra.mxu0 0.0
  %347 = vmatprep.subr.mxu0 0.0
  %348 = vmatpush1.msra.mxu0 0.0
  %349 = vmatprep.subr.mxu0 0.0
  %350 = vmatpush1.msra.mxu0 0.0
  %351 = vmatprep.subr.mxu0 0.0
  %352 = vmatpush1.msra.mxu0 0.0
  %353 = vmatprep.subr.mxu0 0.0
  %354 = vmatpush1.msra.mxu0 0.0
  %355 = vmatprep.subr.mxu0 0.0
  %356 = vmatpush1.msra.mxu0 0.0
  %357 = vmatprep.subr.mxu0 0.0
  %358 = vmatpush1.msra.mxu0 0.0
  %359 = vmatprep.subr.mxu0 0.0
  %360 = vmatpush1.msra.mxu0 0.0
  %361 = vmatprep.subr.mxu0 0.0
  %362 = vmatpush1.msra.mxu0 0.0
  %363 = vmatprep.subr.mxu0 0.0
  %364 = vmatpush1.msra.mxu0 0.0
  %365 = vmatprep.subr.mxu0 0.0
  %366 = vmatpush1.msra.mxu0 0.0
  %367 = vmatprep.subr.mxu0 0.0
  %368 = vmatpush1.msra.mxu0 0.0
  %369 = vmatprep.subr.mxu0 0.0
  %370 = vmatpush1.msra.mxu0 0.0
  %371 = vmatprep.subr.mxu0 0.0
  %372 = vmatpush1.msra.mxu0 0.0
  %373 = vmatprep.subr.mxu0 0.0
  %374 = vmatpush1.msra.mxu0 0.0
  %375 = vmatprep.subr.mxu0 0.0
  %376 = vmatpush1.msra.mxu0 0.0
  %377 = vmatprep.subr.mxu0 0.0
  %378 = vmatpush1.msra.mxu0 0.0
  %379 = vmatprep.subr.mxu0 0.0
  %380 = vmatpush1.msra.mxu0 0.0
  %381 = vmatprep.subr.mxu0 0.0
  %382 = vmatpush1.msra.mxu0 0.0
  %383 = vmatprep.subr.mxu0 0.0
  %384 = vmatpush1.msra.mxu0 0.0
  %385 = vmatprep.subr.mxu0 0.0
  %386 = vmatpush1.msra.mxu0 0.0
  %387 = vmatprep.subr.mxu0 0.0
  %388 = vmatpush1.msra.mxu0 0.0
  %389 = vmatprep.subr.mxu0 0.0
  %390 = vmatpush1.msra.mxu0 0.0
  %391 = vmatprep.subr.mxu0 0.0
  %392 = vmatpush1.msra.mxu0 0.0
  %393 = vmatprep.subr.mxu0 0.0
  %394 = vmatpush1.msra.mxu0 0.0
  %395 = vmatprep.subr.mxu0 0.0
  %396 = vmatpush1.msra.mxu0 0.0
  %397 = vmatprep.subr.mxu0 0.0
  %398 = vmatpush1.msra.mxu0 0.0
  %399 = vmatprep.subr.mxu0 0.0
  %400 = vmatpush1.msra.mxu0 0.0
  %401 = vmatprep.subr.mxu0 0.0
  %402 = vmatpush1.msra.mxu0 0.0
  %403 = vmatprep.mubr.f32.mxu0 0.0
  %404 = vmatmul.mubr.f32.gmra.mrb[0].mxu0 %v333
  %v405 = vpop.f32.mrb[0].mxu0
  %v406 = vadd.f32 0.0, %v405
  %v407 = vpop.f32.mrb[0].mxu0
  %v408 = vadd.f32 0.0, %v407
  %409 = vdwg.mxu0
  %v410 = vlaneseq
  %v411 = vshrl.u32 %v410, 7
  %v412 = vsub.s32 4, %v411
  %v413 = vrot.slane %v45, %v412
  %v414 = vlaneseq
  %v415 = vshrl.u32 %v414, 7
  %v416 = vsub.s32 4, %v415
  %v417 = vrot.slane %v46, %v416
  %v418 = vmul.f32 %v406, %v413
  %v419 = vmul.f32 %v408, %v417
  %v420 = vadd.f32 %v326, %v418
  %v421 = vadd.f32 %v327, %v419
  %v422 = vld [vmem:[%s8] sm:$0xf]
  %424 = vset.pattern.permute.xlu0 0
  %425 = vperm.xlu0 %424, %v422
  %v426 = vpop.permute.xlu0 %425
  %v428 = vadd.f32 %v420, %v426
  %v429 = vadd.f32 %v421, %v426
  %v430 = vld [vmem:[%s9] sm:$0xf]
  %v431 = vld [vmem:[%s5] sm:$0xff]
  %v432 = vld [vmem:[%s10] sm:$0xf]
  %v433 = vld [vmem:[%s6] sm:$0xff]
  %v435 = vcombine.high %v433, %v433
  %v437 = vsel %vm50, %v432, 0
  %v439 = vsel %vm54, %v433, 0
  %v441 = vsel %vm54, %v435, 0
  %443 = vmatprep.subr.mxu0 %v441
  %444 = vmatpush1.msra.mxu0 %v439
  %445 = vmatprep.subr.mxu0 0.0
  %446 = vmatpush1.msra.mxu0 0.0
  %447 = vmatprep.subr.mxu0 0.0
  %448 = vmatpush1.msra.mxu0 0.0
  %449 = vmatprep.subr.mxu0 0.0
  %450 = vmatpush1.msra.mxu0 0.0
  %451 = vmatprep.subr.mxu0 0.0
  %452 = vmatpush1.msra.mxu0 0.0
  %453 = vmatprep.subr.mxu0 0.0
  %454 = vmatpush1.msra.mxu0 0.0
  %455 = vmatprep.subr.mxu0 0.0
  %456 = vmatpush1.msra.mxu0 0.0
  %457 = vmatprep.subr.mxu0 0.0
  %458 = vmatpush1.msra.mxu0 0.0
  %459 = vmatprep.subr.mxu0 0.0
  %460 = vmatpush1.msra.mxu0 0.0
  %461 = vmatprep.subr.mxu0 0.0
  %462 = vmatpush1.msra.mxu0 0.0
  %463 = vmatprep.subr.mxu0 0.0
  %464 = vmatpush1.msra.mxu0 0.0
  %465 = vmatprep.subr.mxu0 0.0
  %466 = vmatpush1.msra.mxu0 0.0
  %467 = vmatprep.subr.mxu0 0.0
  %468 = vmatpush1.msra.mxu0 0.0
  %469 = vmatprep.subr.mxu0 0.0
  %470 = vmatpush1.msra.mxu0 0.0
  %471 = vmatprep.subr.mxu0 0.0
  %472 = vmatpush1.msra.mxu0 0.0
  %473 = vmatprep.subr.mxu0 0.0
  %474 = vmatpush1.msra.mxu0 0.0
  %475 = vmatprep.subr.mxu0 0.0
  %476 = vmatpush1.msra.mxu0 0.0
  %477 = vmatprep.subr.mxu0 0.0
  %478 = vmatpush1.msra.mxu0 0.0
  %479 = vmatprep.subr.mxu0 0.0
  %480 = vmatpush1.msra.mxu0 0.0
  %481 = vmatprep.subr.mxu0 0.0
  %482 = vmatpush1.msra.mxu0 0.0
  %483 = vmatprep.subr.mxu0 0.0
  %484 = vmatpush1.msra.mxu0 0.0
  %485 = vmatprep.subr.mxu0 0.0
  %486 = vmatpush1.msra.mxu0 0.0
  %487 = vmatprep.subr.mxu0 0.0
  %488 = vmatpush1.msra.mxu0 0.0
  %489 = vmatprep.subr.mxu0 0.0
  %490 = vmatpush1.msra.mxu0 0.0
  %491 = vmatprep.subr.mxu0 0.0
  %492 = vmatpush1.msra.mxu0 0.0
  %493 = vmatprep.subr.mxu0 0.0
  %494 = vmatpush1.msra.mxu0 0.0
  %495 = vmatprep.subr.mxu0 0.0
  %496 = vmatpush1.msra.mxu0 0.0
  %497 = vmatprep.subr.mxu0 0.0
  %498 = vmatpush1.msra.mxu0 0.0
  %499 = vmatprep.subr.mxu0 0.0
  %500 = vmatpush1.msra.mxu0 0.0
  %501 = vmatprep.subr.mxu0 0.0
  %502 = vmatpush1.msra.mxu0 0.0
  %503 = vmatprep.subr.mxu0 0.0
  %504 = vmatpush1.msra.mxu0 0.0
  %505 = vmatprep.subr.mxu0 0.0
  %506 = vmatpush1.msra.mxu0 0.0
  %507 = vmatprep.mubr.f32.mxu0 0.0
  %508 = vmatmul.mubr.f32.gmra.mrb[0].mxu0 %v437
  %v509 = vpop.f32.mrb[0].mxu0
  %v510 = vadd.f32 0.0, %v509
  %v511 = vpop.f32.mrb[0].mxu0
  %v512 = vadd.f32 0.0, %v511
  %513 = vdwg.mxu0
  %v515 = vcombine.high %v431, %v431
  %v517 = vsel %vm50, %v430, 0
  %v519 = vsel %vm54, %v431, 0
  %v521 = vsel %vm54, %v515, 0
  %523 = vmatprep.subr.mxu0 %v521
  %524 = vmatpush1.msra.mxu0 %v519
  %525 = vmatprep.subr.mxu0 0.0
  %526 = vmatpush1.msra.mxu0 0.0
  %527 = vmatprep.subr.mxu0 0.0
  %528 = vmatpush1.msra.mxu0 0.0
  %529 = vmatprep.subr.mxu0 0.0
  %530 = vmatpush1.msra.mxu0 0.0
  %531 = vmatprep.subr.mxu0 0.0
  %532 = vmatpush1.msra.mxu0 0.0
  %533 = vmatprep.subr.mxu0 0.0
  %534 = vmatpush1.msra.mxu0 0.0
  %535 = vmatprep.subr.mxu0 0.0
  %536 = vmatpush1.msra.mxu0 0.0
  %537 = vmatprep.subr.mxu0 0.0
  %538 = vmatpush1.msra.mxu0 0.0
  %539 = vmatprep.subr.mxu0 0.0
  %540 = vmatpush1.msra.mxu0 0.0
  %541 = vmatprep.subr.mxu0 0.0
  %542 = vmatpush1.msra.mxu0 0.0
  %543 = vmatprep.subr.mxu0 0.0
  %544 = vmatpush1.msra.mxu0 0.0
  %545 = vmatprep.subr.mxu0 0.0
  %546 = vmatpush1.msra.mxu0 0.0
  %547 = vmatprep.subr.mxu0 0.0
  %548 = vmatpush1.msra.mxu0 0.0
  %549 = vmatprep.subr.mxu0 0.0
  %550 = vmatpush1.msra.mxu0 0.0
  %551 = vmatprep.subr.mxu0 0.0
  %552 = vmatpush1.msra.mxu0 0.0
  %553 = vmatprep.subr.mxu0 0.0
  %554 = vmatpush1.msra.mxu0 0.0
  %555 = vmatprep.subr.mxu0 0.0
  %556 = vmatpush1.msra.mxu0 0.0
  %557 = vmatprep.subr.mxu0 0.0
  %558 = vmatpush1.msra.mxu0 0.0
  %559 = vmatprep.subr.mxu0 0.0
  %560 = vmatpush1.msra.mxu0 0.0
  %561 = vmatprep.subr.mxu0 0.0
  %562 = vmatpush1.msra.mxu0 0.0
  %563 = vmatprep.subr.mxu0 0.0
  %564 = vmatpush1.msra.mxu0 0.0
  %565 = vmatprep.subr.mxu0 0.0
  %566 = vmatpush1.msra.mxu0 0.0
  %567 = vmatprep.subr.mxu0 0.0
  %568 = vmatpush1.msra.mxu0 0.0
  %569 = vmatprep.subr.mxu0 0.0
  %570 = vmatpush1.msra.mxu0 0.0
  %571 = vmatprep.subr.mxu0 0.0
  %572 = vmatpush1.msra.mxu0 0.0
  %573 = vmatprep.subr.mxu0 0.0
  %574 = vmatpush1.msra.mxu0 0.0
  %575 = vmatprep.subr.mxu0 0.0
  %576 = vmatpush1.msra.mxu0 0.0
  %577 = vmatprep.subr.mxu0 0.0
  %578 = vmatpush1.msra.mxu0 0.0
  %579 = vmatprep.subr.mxu0 0.0
  %580 = vmatpush1.msra.mxu0 0.0
  %581 = vmatprep.subr.mxu0 0.0
  %582 = vmatpush1.msra.mxu0 0.0
  %583 = vmatprep.subr.mxu0 0.0
  %584 = vmatpush1.msra.mxu0 0.0
  %585 = vmatprep.subr.mxu0 0.0
  %586 = vmatpush1.msra.mxu0 0.0
  %587 = vmatprep.mubr.f32.mxu0 0.0
  %588 = vmatmul.mubr.f32.gmra.mrb[0].mxu0 %v517
  %v589 = vpop.f32.mrb[0].mxu0
  %v590 = vadd.f32 %v510, %v589
  %v591 = vpop.f32.mrb[0].mxu0
  %v592 = vadd.f32 %v512, %v591
  %593 = vdwg.mxu0
  %v594 = vld [vmem:[%s11] sm:$0xf]
  %v596 = vsel %vm50, %v594, 0
  %v599 = vsel %vm54, %v428, 0
  %v602 = vsel %vm54, %v429, 0
  %604 = vmatprep.subr.mxu0 %v602
  %605 = vmatpush1.msra.mxu0 %v599
  %606 = vmatprep.subr.mxu0 0.0
  %607 = vmatpush1.msra.mxu0 0.0
  %608 = vmatprep.subr.mxu0 0.0
  %609 = vmatpush1.msra.mxu0 0.0
  %610 = vmatprep.subr.mxu0 0.0
  %611 = vmatpush1.msra.mxu0 0.0
  %612 = vmatprep.subr.mxu0 0.0
  %613 = vmatpush1.msra.mxu0 0.0
  %614 = vmatprep.subr.mxu0 0.0
  %615 = vmatpush1.msra.mxu0 0.0
  %616 = vmatprep.subr.mxu0 0.0
  %617 = vmatpush1.msra.mxu0 0.0
  %618 = vmatprep.subr.mxu0 0.0
  %619 = vmatpush1.msra.mxu0 0.0
  %620 = vmatprep.subr.mxu0 0.0
  %621 = vmatpush1.msra.mxu0 0.0
  %622 = vmatprep.subr.mxu0 0.0
  %623 = vmatpush1.msra.mxu0 0.0
  %624 = vmatprep.subr.mxu0 0.0
  %625 = vmatpush1.msra.mxu0 0.0
  %626 = vmatprep.subr.mxu0 0.0
  %627 = vmatpush1.msra.mxu0 0.0
  %628 = vmatprep.subr.mxu0 0.0
  %629 = vmatpush1.msra.mxu0 0.0
  %630 = vmatprep.subr.mxu0 0.0
  %631 = vmatpush1.msra.mxu0 0.0
  %632 = vmatprep.subr.mxu0 0.0
  %633 = vmatpush1.msra.mxu0 0.0
  %634 = vmatprep.subr.mxu0 0.0
  %635 = vmatpush1.msra.mxu0 0.0
  %636 = vmatprep.subr.mxu0 0.0
  %637 = vmatpush1.msra.mxu0 0.0
  %638 = vmatprep.subr.mxu0 0.0
  %639 = vmatpush1.msra.mxu0 0.0
  %640 = vmatprep.subr.mxu0 0.0
  %641 = vmatpush1.msra.mxu0 0.0
  %642 = vmatprep.subr.mxu0 0.0
  %643 = vmatpush1.msra.mxu0 0.0
  %644 = vmatprep.subr.mxu0 0.0
  %645 = vmatpush1.msra.mxu0 0.0
  %646 = vmatprep.subr.mxu0 0.0
  %647 = vmatpush1.msra.mxu0 0.0
  %648 = vmatprep.subr.mxu0 0.0
  %649 = vmatpush1.msra.mxu0 0.0
  %650 = vmatprep.subr.mxu0 0.0
  %651 = vmatpush1.msra.mxu0 0.0
  %652 = vmatprep.subr.mxu0 0.0
  %653 = vmatpush1.msra.mxu0 0.0
  %654 = vmatprep.subr.mxu0 0.0
  %655 = vmatpush1.msra.mxu0 0.0
  %656 = vmatprep.subr.mxu0 0.0
  %657 = vmatpush1.msra.mxu0 0.0
  %658 = vmatprep.subr.mxu0 0.0
  %659 = vmatpush1.msra.mxu0 0.0
  %660 = vmatprep.subr.mxu0 0.0
  %661 = vmatpush1.msra.mxu0 0.0
  %662 = vmatprep.subr.mxu0 0.0
  %663 = vmatpush1.msra.mxu0 0.0
  %664 = vmatprep.subr.mxu0 0.0
  %665 = vmatpush1.msra.mxu0 0.0
  %666 = vmatprep.subr.mxu0 0.0
  %667 = vmatpush1.msra.mxu0 0.0
  %668 = vmatprep.mubr.f32.mxu0 0.0
  %669 = vmatmul.mubr.f32.gmra.mrb[0].mxu0 %v596
  %v670 = vpop.f32.mrb[0].mxu0
  %v671 = vadd.f32 0.0, %v670
  %v672 = vpop.f32.mrb[0].mxu0
  %v673 = vadd.f32 0.0, %v672
  %674 = vdwg.mxu0
  %v675 = vadd.f32 %v590, %v671
  %v676 = vadd.f32 %v592, %v673
  %v677 = vld [vmem:[%s12] sm:$0xf]
  %679 = vset.pattern.permute.xlu0 0
  %680 = vperm.xlu0 %679, %v677
  %v681 = vpop.permute.xlu0 %680
  %v683 = vadd.f32 %v675, %v681
  %v684 = vadd.f32 %v676, %v681
  %v687 = vcombine.low %v683, %v684
  %689 = vst [vmem:[%s13] sm:$0xff] %v687
  // Predicated region
  $region54: #{transformer_v5.9} parent=0 // pred_check
    _
  $region55: #{transformer_v5.9} parent=0 // pred_check_branch
    %691 = sbr.rel (0) target = $region57
  $region56: #{transformer_v5.9} parent=0 // pred_region
    _
  $region57: #{transformer_v5.9} parent=0 // pred_fallthru
    _
  // Predicated region
  $region58: #{transformer_v5.9} parent=0 // pred_check
    _
  $region59: #{transformer_v5.9} parent=0 // pred_check_branch
    %693 = sbr.rel (0) target = $region61
  $region60: #{transformer_v5.9} parent=0 // pred_region
    _
  $region61: #{transformer_v5.9} parent=0 // pred_fallthru
    _

</llo_original>
